<compile_context>
chip_gen: v7x
topology: tpu7x:2x2x1
jax: 0.10.0
libtpu: 0.0.40
codegen_flags: <defaults>
</compile_context>

<pallas_src>
import jax
import jax.numpy as jnp
from jax.experimental import pallas as pl
from jax.experimental.pallas import tpu as pltpu

# ---------------- model hyper-parameters (small synthetic ELMo) -------------
CHAR_VOCAB = 64
CHAR_DIM = 16
MAX_CHARS = 16
FILTERS = ((1, 8), (2, 8), (3, 16))          # (width, n_filters)
MAX_WIDTH = max(w for w, _ in FILTERS)       # 3
N_FILT = sum(nf for _, nf in FILTERS)        # 32
PROJ_DIM = 32                                # ELMo projection dim
HID = PROJ_DIM                               # per-direction LSTM hidden
NGATE = 4 * HID                              # 128 gate pre-activations / cell
N_LSTM_LAYERS = 2
N_MIX = N_LSTM_LAYERS + 1                    # layers entering ScalarMix
OUT_DIM = 2 * PROJ_DIM                       # ELMo representation dim (64)


# --------------------------- fused ELMo kernel ------------------------------
def elmo_fused_kernel(ids_ref, cw_ref, convb_ref, mask_ref,
                      hww_ref, hwb_ref, projw_ref, projb_ref,
                      wih1_ref, b1_ref, wbig_ref, b2_ref, mixw_ref,
                      out_ref,
                      gxf_s, gxb_s, h1f_s, h1b_s, h2f_s, h2b_s):
    f32 = jnp.float32
    bf16 = jnp.bfloat16
    bblk, t_len, _ = ids_ref.shape
    n_rows = bblk * t_len

    # ---- char CNN: embedding gather + conv fused into one one-hot matmul ---
    ids2 = ids_ref[...].reshape(n_rows, MAX_CHARS)
    pad_ids = jnp.full((n_rows, MAX_WIDTH - 1), CHAR_VOCAB, jnp.int32)
    ids_pad = jnp.concatenate([ids2, pad_ids], axis=-1)       # (N, MC+2)
    iota_v = jax.lax.broadcasted_iota(jnp.int32, (1, 1, CHAR_VOCAB), 2)
    oh_pad = (ids_pad[..., None] == iota_v).astype(bf16)      # (N, MC+2, V)
    oh_win = jnp.concatenate(
        [oh_pad[:, k:k + MAX_CHARS, :] for k in range(MAX_WIDTH)],
        axis=-1)                                              # (N, MC, 3V)
    conv = jnp.dot(oh_win.reshape(n_rows * MAX_CHARS, MAX_WIDTH * CHAR_VOCAB),
                   cw_ref[...], preferred_element_type=f32)   # (N*MC, F)
    act = jnp.tanh(conv.reshape(n_rows, MAX_CHARS, N_FILT)
                   + convb_ref[...][None, :, :])
    # additive -1e30 mask keeps exact per-width valid-conv max-pool semantics
    pooled = jnp.max(act + mask_ref[...][None, :, :], axis=1)  # (N, F)

    # highway (carry gate) + projection to ELMo proj dim (f32 elementwise)
    hw = (jnp.dot(pooled.astype(bf16), hww_ref[...],
                  preferred_element_type=f32) + hwb_ref[...])
    nonlin = jax.nn.relu(hw[:, :N_FILT])
    gate = jax.nn.sigmoid(hw[:, N_FILT:])
    tok = gate * pooled + (1.0 - gate) * nonlin
    emb = (jnp.dot(tok.astype(bf16), projw_ref[...],
                   preferred_element_type=f32) + projb_ref[...])  # (N, P)

    # time-major layout for the recurrence: (T, Bblk, P)
    emb_bt = emb.reshape(bblk, t_len, PROJ_DIM)
    emb_tm = jnp.concatenate([emb_bt[b][:, None, :] for b in range(bblk)],
                             axis=1)                          # (T, B, P)

    # hoisted layer-1 input projections, fwd||bwd fused, biases folded in
    gx = (jnp.dot(emb_tm.reshape(t_len * bblk, PROJ_DIM).astype(bf16),
                  wih1_ref[...], preferred_element_type=f32)
          + b1_ref[...]).reshape(t_len, bblk, 2 * NGATE)
    gxf_s[...] = gx[:, :, :NGATE]
    gxb_s[...] = gx[:, :, NGATE:]

    wbig = wbig_ref[...]                                      # (128, 512) bf16
    b2 = b2_ref[...]
    b2f = jnp.broadcast_to(b2[:, :NGATE], (bblk, NGATE))      # hoisted bcasts
    b2b = jnp.broadcast_to(b2[:, NGATE:], (bblk, NGATE))

    def cell(g, c):
        # single sigmoid over the 128-wide gate slab; tanh(g) recovered as
        # 2*sigmoid(2g)-1 (g-gate columns pre-scaled by 2 at pack time)
        sg = jax.nn.sigmoid(g)
        i_g = sg[:, 0 * HID:1 * HID]
        f_g = sg[:, 1 * HID:2 * HID]
        g_g = 2.0 * sg[:, 2 * HID:3 * HID] - 1.0
        o_g = sg[:, 3 * HID:4 * HID]
        c_new = f_g * c + i_g * g_g
        return o_g * jnp.tanh(c_new), c_new

    # Wavefronted 4-cell recurrence: per iteration i run L1-fwd@i, L1-bwd@s,
    # L2-fwd@i-1, L2-bwd@s+1; a single (Bblk,128)x(128,512) MXU pass (block-
    # diagonal W_hh with layer-2's W_ih folded in) feeds all four cells.
    def step(i, carry):
        h0, c0, h1, c1, h2, c2, h3, c3 = carry
        i1f = jnp.minimum(i, t_len - 1)           # L1 fwd time (clamped)
        i1b = jnp.maximum(t_len - 1 - i, 0)       # L1 bwd seq index
        i2f = jnp.maximum(i - 1, 0)               # L2 fwd time
        i2b = jnp.minimum(t_len - i, t_len - 1)   # L2 bwd seq index

        h_all = jnp.concatenate([h0, h1, h2, h3], axis=-1)    # (B, 128)
        g_cat = jnp.dot(h_all.astype(bf16), wbig,
                        preferred_element_type=f32)           # (B, 512)
        nh0, nc0 = cell(g_cat[:, 0 * NGATE:1 * NGATE] + gxf_s[i1f], c0)
        nh1, nc1 = cell(g_cat[:, 1 * NGATE:2 * NGATE] + gxb_s[i1b], c1)
        nh2, nc2 = cell(g_cat[:, 2 * NGATE:3 * NGATE] + b2f, c2)
        nh3, nc3 = cell(g_cat[:, 3 * NGATE:4 * NGATE] + b2b, c3)

        v1 = i < t_len            # layer-1 cells valid
        v2 = i >= 1               # layer-2 cells valid (one-step lag)
        h0 = jnp.where(v1, nh0, h0); c0 = jnp.where(v1, nc0, c0)
        h1 = jnp.where(v1, nh1, h1); c1 = jnp.where(v1, nc1, c1)
        h2 = jnp.where(v2, nh2, h2); c2 = jnp.where(v2, nc2, c2)
        h3 = jnp.where(v2, nh3, h3); c3 = jnp.where(v2, nc3, c3)

        # frozen values re-written at clamped indices are harmless rewrites
        h1f_s[i1f] = h0
        h1b_s[i1b] = h1
        h2f_s[i2f] = h2
        h2b_s[i2b] = h3
        return h0, c0, h1, c1, h2, c2, h3, c3

    z = jnp.zeros((bblk, HID), f32)
    jax.lax.fori_loop(0, t_len + 1, step, (z, z, z, z, z, z, z, z),
                      unroll=True if t_len <= 16 else 4)

    # --------------------------- ScalarMix -----------------------------------
    w0 = mixw_ref[0]
    w1 = mixw_ref[1]
    w2 = mixw_ref[2]
    emb_cat = jnp.concatenate([emb_tm, emb_tm], axis=-1)      # (T, B, 64)
    h1_cat = jnp.concatenate([h1f_s[...], h1b_s[...]], axis=-1)
    h2_cat = jnp.concatenate([h2f_s[...], h2b_s[...]], axis=-1)
    mix = w0 * emb_cat + w1 * h1_cat + w2 * h2_cat            # (T, B, 64)
    for b in range(bblk):                                     # -> (B, T, 64)
        out_ref[b] = mix[:, b, :].astype(out_ref.dtype)


# ---------------------------- wrapper ----------------------------------------
def _w_spec(shape):
    zeros = (0,) * len(shape)
    return pl.BlockSpec(shape, lambda b, _z=zeros: _z)


@jax.jit
def elmo_forward(char_ids, packed):
    """char_ids: (B, T, MAX_CHARS) int32 -> (B, T, 2*PROJ_DIM) float32."""
    b_sz, t_len, n_chars = char_ids.shape
    assert n_chars == MAX_CHARS
    # batch rows per grid step: batch goes on the sublane axis inside the
    # kernel; keep >= 2 grid steps so both v7x TensorCores get work.
    bblk = max(1, min(32, b_sz // 2)) if b_sz > 1 else 1
    n_blk = pl.cdiv(b_sz, bblk)
    b_pad = n_blk * bblk
    ids = char_ids.astype(jnp.int32)
    if b_pad != b_sz:
        ids = jnp.pad(ids, ((0, b_pad - b_sz), (0, 0), (0, 0)))

    in_specs = [
        pl.BlockSpec((bblk, t_len, MAX_CHARS), lambda b: (b, 0, 0)),
        _w_spec(packed["cw"].shape),
        _w_spec(packed["conv_b"].shape),
        _w_spec(packed["pool_mask"].shape),
        _w_spec(packed["hw_w"].shape),
        _w_spec(packed["hw_b"].shape),
        _w_spec(packed["proj_w"].shape),
        _w_spec(packed["proj_b"].shape),
        _w_spec(packed["wih1"].shape),
        _w_spec(packed["b1"].shape),
        _w_spec(packed["wbig"].shape),
        _w_spec(packed["b2"].shape),
        pl.BlockSpec(memory_space=pltpu.MemorySpace.SMEM),    # mix weights
    ]
    out_spec = pl.BlockSpec((bblk, t_len, OUT_DIM), lambda b: (b, 0, 0))
    scratch = [
        pltpu.VMEM((t_len, bblk, NGATE), jnp.float32),   # L1 fwd x-gates
        pltpu.VMEM((t_len, bblk, NGATE), jnp.float32),   # L1 bwd x-gates
        pltpu.VMEM((t_len, bblk, HID), jnp.float32),     # layer1 fwd hidden
        pltpu.VMEM((t_len, bblk, HID), jnp.float32),     # layer1 bwd hidden
        pltpu.VMEM((t_len, bblk, HID), jnp.float32),     # layer2 fwd hidden
        pltpu.VMEM((t_len, bblk, HID), jnp.float32),     # layer2 bwd hidden
    ]

    out = pl.pallas_call(
        elmo_fused_kernel,
        out_shape=jax.ShapeDtypeStruct((b_pad, t_len, OUT_DIM), jnp.float32),
        grid_spec=pltpu.PrefetchScalarGridSpec(
            num_scalar_prefetch=0,
            grid=(n_blk,),
            in_specs=in_specs,
            out_specs=out_spec,
            scratch_shapes=scratch),
        compiler_params=pltpu.CompilerParams(
            dimension_semantics=("parallel",)),
    )(ids, packed["cw"], packed["conv_b"], packed["pool_mask"],
      packed["hw_w"], packed["hw_b"], packed["proj_w"], packed["proj_b"],
      packed["wih1"], packed["b1"], packed["wbig"], packed["b2"],
      packed["mixw"])

    return out[:b_sz] if b_pad != b_sz else out


# ---------------------------- parameters ------------------------------------
def init_params(key):
    ks = jax.random.split(key, 16)
    s = 0.1

    def nrm(k, shape):
        return jax.random.normal(k, shape, jnp.float32) * s

    # packed conv weights: per-shift weights for all filter widths fused into
    # one (MAX_WIDTH, CHAR_DIM, N_FILT) tensor (zero rows beyond each width)
    conv_w = jnp.zeros((MAX_WIDTH, CHAR_DIM, N_FILT), jnp.float32)
    conv_b = jnp.zeros((1, N_FILT), jnp.float32)
    col = 0
    for idx, (width, nf) in enumerate(FILTERS):
        conv_w = conv_w.at[:width, :, col:col + nf].set(
            nrm(ks[idx], (width, CHAR_DIM, nf)))
        conv_b = conv_b.at[:, col:col + nf].set(nrm(ks[3 + idx], (1, nf)))
        col += nf

    # additive mask excluding conv positions past each filter's valid range
    mask_cols = []
    pos = jnp.arange(MAX_CHARS)
    for width, nf in FILTERS:
        valid = MAX_CHARS - width + 1
        m = jnp.where(pos < valid, 0.0, -1e30).astype(jnp.float32)
        mask_cols.append(jnp.tile(m[:, None], (1, nf)))
    pool_mask = jnp.concatenate(mask_cols, axis=1)   # (MAX_CHARS, N_FILT)

    return {
        "char_emb": nrm(ks[6], (CHAR_VOCAB, CHAR_DIM)),
        "conv_w": conv_w,
        "conv_b": conv_b,
        "pool_mask": pool_mask,
        "hw_w": nrm(ks[7], (N_FILT, 2 * N_FILT)),
        "hw_b": nrm(ks[8], (1, 2 * N_FILT)),
        "proj_w": nrm(ks[9], (N_FILT, PROJ_DIM)),
        "proj_b": nrm(ks[10], (1, PROJ_DIM)),
        "w_ih": nrm(ks[11], (N_LSTM_LAYERS, 2, PROJ_DIM, NGATE)),
        "w_hh": nrm(ks[12], (N_LSTM_LAYERS, 2, HID, NGATE)),
        "b_lstm": nrm(ks[13], (N_LSTM_LAYERS, 2, NGATE)),
        "mix_s": nrm(ks[14], (N_MIX,)),
        "gamma": jnp.float32(1.0),
    }


def pack_params(p):
    """One-time packing of standard ELMo params into kernel-ready tensors."""
    bf16 = jnp.bfloat16
    # pre-scale g-gate columns by 2: in-kernel tanh(g) = 2*sigmoid(2g)-1
    gscale = jnp.ones((NGATE,), jnp.float32).at[2 * HID:3 * HID].set(2.0)
    w_ih = p["w_ih"] * gscale
    w_hh = p["w_hh"] * gscale
    b = p["b_lstm"] * gscale

    # char embedding folded into conv filters: one-hot(char) @ cw == emb-conv
    cw = jnp.einsum("vd,kdf->kvf", p["char_emb"], p["conv_w"])
    cw = cw.reshape(MAX_WIDTH * CHAR_VOCAB, N_FILT)          # (192, 32)

    # layer-1 input projections fused fwd||bwd, biases concatenated
    wih1 = jnp.concatenate([w_ih[0, 0], w_ih[0, 1]], axis=1)   # (32, 256)
    b1 = jnp.concatenate([b[0, 0], b[0, 1]], axis=0)[None, :]  # (1, 256)

    # fused 4-cell recurrent weight: rows = [h1f h1b h2f h2b] (32 each),
    # cols = per-cell 128-wide gate blocks [L1f | L1b | L2f | L2b];
    # layer-2 input weights (x = layer-1 hidden) are folded into the same pass
    wbig = jnp.zeros((4 * HID, 16 * HID), jnp.float32)
    wbig = wbig.at[0:HID, 0:4 * HID].set(w_hh[0, 0])
    wbig = wbig.at[HID:2 * HID, 4 * HID:8 * HID].set(w_hh[0, 1])
    wbig = wbig.at[0:HID, 8 * HID:12 * HID].set(w_ih[1, 0])
    wbig = wbig.at[2 * HID:3 * HID, 8 * HID:12 * HID].set(w_hh[1, 0])
    wbig = wbig.at[HID:2 * HID, 12 * HID:16 * HID].set(w_ih[1, 1])
    wbig = wbig.at[3 * HID:4 * HID, 12 * HID:16 * HID].set(w_hh[1, 1])

    b2 = jnp.concatenate([b[1, 0], b[1, 1]], axis=0)[None, :]  # (1, 256)
    mixw = (jax.nn.softmax(p["mix_s"]) * p["gamma"]).astype(jnp.float32)

    return {
        "cw": cw.astype(bf16),
        "conv_b": p["conv_b"],
        "pool_mask": p["pool_mask"],
        "hw_w": p["hw_w"].astype(bf16),
        "hw_b": p["hw_b"],
        "proj_w": p["proj_w"].astype(bf16),
        "proj_b": p["proj_b"],
        "wih1": wih1.astype(bf16),
        "b1": b1,
        "wbig": wbig.astype(bf16),
        "b2": b2,
        "mixw": mixw,
    }


# ------------------------------- main ---------------------------------------
if __name__ == "__main__":
    key = jax.random.PRNGKey(0)
    k_ids, k_par = jax.random.split(key)

    B, T = 2, 8
    char_ids = jax.random.randint(k_ids, (B, T, MAX_CHARS), 0, CHAR_VOCAB,
                                  dtype=jnp.int32)
    params = init_params(k_par)
    packed = pack_params(params)       # one-time weight packing (off the jit)

    out = elmo_forward(char_ids, packed)
    out = jax.block_until_ready(out)

    assert out.shape == (B, T, OUT_DIM), out.shape
    assert out.dtype == jnp.float32
    assert bool(jnp.all(jnp.isfinite(out)))
    print("KERNEL_OK")
</pallas_src>

<mosaic_0001>
module attributes {stable_mosaic.version = 11 : i64} {
  func.func @elmo_fused_kernel(%arg0: i32, %arg1: memref<1x8x16xi32, #tpu.memory_space<vmem>>, %arg2: memref<192x32xbf16, #tpu.memory_space<vmem>>, %arg3: memref<1x32xf32, #tpu.memory_space<vmem>>, %arg4: memref<16x32xf32, #tpu.memory_space<vmem>>, %arg5: memref<32x64xbf16, #tpu.memory_space<vmem>>, %arg6: memref<1x64xf32, #tpu.memory_space<vmem>>, %arg7: memref<32x32xbf16, #tpu.memory_space<vmem>>, %arg8: memref<1x32xf32, #tpu.memory_space<vmem>>, %arg9: memref<32x256xbf16, #tpu.memory_space<vmem>>, %arg10: memref<1x256xf32, #tpu.memory_space<vmem>>, %arg11: memref<128x512xbf16, #tpu.memory_space<vmem>>, %arg12: memref<1x256xf32, #tpu.memory_space<vmem>>, %arg13: memref<3xf32, #tpu.memory_space<smem>>, %arg14: memref<1x8x64xf32, #tpu.memory_space<vmem>>, %arg15: memref<8x1x128xf32, #tpu.memory_space<vmem>>, %arg16: memref<8x1x128xf32, #tpu.memory_space<vmem>>, %arg17: memref<8x1x32xf32, #tpu.memory_space<vmem>>, %arg18: memref<8x1x32xf32, #tpu.memory_space<vmem>>, %arg19: memref<8x1x32xf32, #tpu.memory_space<vmem>>, %arg20: memref<8x1x32xf32, #tpu.memory_space<vmem>>) attributes {dimension_semantics = [#tpu.dimension_semantics<parallel>], iteration_bounds = array<i64: 2>, scalar_prefetch = 0 : i64, scratch_operands = 6 : i64, tpu.core_type = #tpu.core_type<tc>, window_params = [{transform_indices = @transform_0, window_bounds = array<i64: 1, 8, 16>}, {pipeline_mode = #tpu.pipeline_mode<synchronous>, transform_indices = @transform_1, window_bounds = array<i64: 192, 32>}, {pipeline_mode = #tpu.pipeline_mode<synchronous>, transform_indices = @transform_2, window_bounds = array<i64: 1, 32>}, {pipeline_mode = #tpu.pipeline_mode<synchronous>, transform_indices = @transform_3, window_bounds = array<i64: 16, 32>}, {pipeline_mode = #tpu.pipeline_mode<synchronous>, transform_indices = @transform_4, window_bounds = array<i64: 32, 64>}, {pipeline_mode = #tpu.pipeline_mode<synchronous>, transform_indices = @transform_5, window_bounds = array<i64: 1, 64>}, {pipeline_mode = #tpu.pipeline_mode<synchronous>, transform_indices = @transform_6, window_bounds = array<i64: 32, 32>}, {pipeline_mode = #tpu.pipeline_mode<synchronous>, transform_indices = @transform_7, window_bounds = array<i64: 1, 32>}, {pipeline_mode = #tpu.pipeline_mode<synchronous>, transform_indices = @transform_8, window_bounds = array<i64: 32, 256>}, {pipeline_mode = #tpu.pipeline_mode<synchronous>, transform_indices = @transform_9, window_bounds = array<i64: 1, 256>}, {pipeline_mode = #tpu.pipeline_mode<synchronous>, transform_indices = @transform_10, window_bounds = array<i64: 128, 512>}, {pipeline_mode = #tpu.pipeline_mode<synchronous>, transform_indices = @transform_11, window_bounds = array<i64: 1, 256>}, {transform_indices = @transform_12, window_bounds = array<i64: 3>}, {transform_indices = @transform_13, window_bounds = array<i64: 1, 8, 64>}]} {
    %c0 = arith.constant 0 : index
    %c0_0 = arith.constant 0 : index
    %c0_1 = arith.constant 0 : index
    %0 = vector.load %arg1[%c0, %c0_0, %c0_1] : memref<1x8x16xi32, #tpu.memory_space<vmem>>, vector<1x8x16xi32>
    %1 = vector.shape_cast %0 : vector<1x8x16xi32> to vector<8x16xi32>
    %c64_i32 = arith.constant 64 : i32
    %2 = vector.broadcast %c64_i32 : i32 to vector<8x2xi32>
    %3 = tpu.concatenate %1, %2 in 1 : vector<8x16xi32>, vector<8x2xi32> -> vector<8x18xi32>
    %4 = tpu.iota {dimensions = array<i32: 2>} : vector<1x1x64xi32>
    %5 = vector.shape_cast %3 : vector<8x18xi32> to vector<8x18x1xi32>
    %6 = vector.broadcast %5 : vector<8x18x1xi32> to vector<8x18x64xi32>
    %7 = vector.broadcast %4 : vector<1x1x64xi32> to vector<8x18x64xi32>
    %8 = arith.cmpi eq, %6, %7 : vector<8x18x64xi32>
    %9 = arith.extui %8 : vector<8x18x64xi1> to vector<8x18x64xi32>
    %10 = arith.sitofp %9 : vector<8x18x64xi32> to vector<8x18x64xf32>
    %11 = arith.truncf %10 : vector<8x18x64xf32> to vector<8x18x64xbf16>
    %12 = vector.extract_strided_slice %11 {offsets = [0, 0, 0], sizes = [8, 16, 64], strides = [1, 1, 1]} : vector<8x18x64xbf16> to vector<8x16x64xbf16>
    %13 = vector.extract_strided_slice %11 {offsets = [0, 1, 0], sizes = [8, 16, 64], strides = [1, 1, 1]} : vector<8x18x64xbf16> to vector<8x16x64xbf16>
    %14 = vector.extract_strided_slice %11 {offsets = [0, 2, 0], sizes = [8, 16, 64], strides = [1, 1, 1]} : vector<8x18x64xbf16> to vector<8x16x64xbf16>
    %15 = tpu.concatenate %12, %13, %14 in 2 : vector<8x16x64xbf16>, vector<8x16x64xbf16>, vector<8x16x64xbf16> -> vector<8x16x192xbf16>
    %16 = vector.shape_cast %15 : vector<8x16x192xbf16> to vector<128x192xbf16>
    %c0_2 = arith.constant 0 : index
    %c0_3 = arith.constant 0 : index
    %17 = vector.load %arg2[%c0_2, %c0_3] : memref<192x32xbf16, #tpu.memory_space<vmem>>, vector<192x32xbf16>
    %cst = arith.constant dense<0.000000e+00> : vector<128x32xf32>
    %18 = tpu.matmul %16, %17, %cst {dimension_numbers = #tpu.dot_dimension_numbers<[1], [0], [0], [1], [0, 0, 1, 1], [], []>} : vector<128x192xbf16>, vector<192x32xbf16>, vector<128x32xf32> -> vector<128x32xf32>
    %19 = vector.shape_cast %18 : vector<128x32xf32> to vector<8x16x32xf32>
    %c0_4 = arith.constant 0 : index
    %c0_5 = arith.constant 0 : index
    %20 = vector.load %arg3[%c0_4, %c0_5] : memref<1x32xf32, #tpu.memory_space<vmem>>, vector<1x32xf32>
    %21 = vector.shape_cast %20 : vector<1x32xf32> to vector<1x1x32xf32>
    %22 = vector.broadcast %21 : vector<1x1x32xf32> to vector<8x16x32xf32>
    %23 = arith.addf %19, %22 : vector<8x16x32xf32>
    %24 = math.tanh %23 : vector<8x16x32xf32>
    %c0_6 = arith.constant 0 : index
    %c0_7 = arith.constant 0 : index
    %25 = vector.load %arg4[%c0_6, %c0_7] : memref<16x32xf32, #tpu.memory_space<vmem>>, vector<16x32xf32>
    %26 = vector.shape_cast %25 : vector<16x32xf32> to vector<1x16x32xf32>
    %27 = vector.broadcast %26 : vector<1x16x32xf32> to vector<8x16x32xf32>
    %28 = arith.addf %24, %27 : vector<8x16x32xf32>
    %cst_8 = arith.constant dense<0xFF800000> : vector<8x32xf32>
    %29 = vector.multi_reduction <maximumf>, %28, %cst_8 [1] : vector<8x16x32xf32> to vector<8x32xf32>
    %30 = arith.truncf %29 : vector<8x32xf32> to vector<8x32xbf16>
    %c0_9 = arith.constant 0 : index
    %c0_10 = arith.constant 0 : index
    %31 = vector.load %arg5[%c0_9, %c0_10] : memref<32x64xbf16, #tpu.memory_space<vmem>>, vector<32x64xbf16>
    %cst_11 = arith.constant dense<0.000000e+00> : vector<8x64xf32>
    %32 = tpu.matmul %30, %31, %cst_11 {dimension_numbers = #tpu.dot_dimension_numbers<[1], [0], [0], [1], [0, 0, 1, 1], [], []>} : vector<8x32xbf16>, vector<32x64xbf16>, vector<8x64xf32> -> vector<8x64xf32>
    %c0_12 = arith.constant 0 : index
    %c0_13 = arith.constant 0 : index
    %33 = vector.load %arg6[%c0_12, %c0_13] : memref<1x64xf32, #tpu.memory_space<vmem>>, vector<1x64xf32>
    %34 = vector.broadcast %33 : vector<1x64xf32> to vector<8x64xf32>
    %35 = arith.addf %32, %34 : vector<8x64xf32>
    %36 = vector.extract_strided_slice %35 {offsets = [0, 0], sizes = [8, 32], strides = [1, 1]} : vector<8x64xf32> to vector<8x32xf32>
    %cst_14 = arith.constant 0.000000e+00 : f32
    %37 = vector.broadcast %cst_14 : f32 to vector<8x32xf32>
    %38 = arith.maximumf %36, %37 : vector<8x32xf32>
    %39 = vector.extract_strided_slice %35 {offsets = [0, 32], sizes = [8, 32], strides = [1, 1]} : vector<8x64xf32> to vector<8x32xf32>
    %40 = arith.negf %39 : vector<8x32xf32>
    %41 = math.exp %40 : vector<8x32xf32>
    %cst_15 = arith.constant 1.000000e+00 : f32
    %42 = vector.broadcast %cst_15 : f32 to vector<8x32xf32>
    %43 = arith.addf %42, %41 : vector<8x32xf32>
    %44 = arith.divf %42, %43 : vector<8x32xf32>
    %45 = arith.mulf %44, %29 : vector<8x32xf32>
    %cst_16 = arith.constant 1.000000e+00 : f32
    %46 = vector.broadcast %cst_16 : f32 to vector<8x32xf32>
    %47 = arith.subf %46, %44 : vector<8x32xf32>
    %48 = arith.mulf %47, %38 : vector<8x32xf32>
    %49 = arith.addf %45, %48 : vector<8x32xf32>
    %50 = arith.truncf %49 : vector<8x32xf32> to vector<8x32xbf16>
    %c0_17 = arith.constant 0 : index
    %c0_18 = arith.constant 0 : index
    %51 = vector.load %arg7[%c0_17, %c0_18] : memref<32x32xbf16, #tpu.memory_space<vmem>>, vector<32x32xbf16>
    %cst_19 = arith.constant dense<0.000000e+00> : vector<8x32xf32>
    %52 = tpu.matmul %50, %51, %cst_19 {dimension_numbers = #tpu.dot_dimension_numbers<[1], [0], [0], [1], [0, 0, 1, 1], [], []>} : vector<8x32xbf16>, vector<32x32xbf16>, vector<8x32xf32> -> vector<8x32xf32>
    %c0_20 = arith.constant 0 : index
    %c0_21 = arith.constant 0 : index
    %53 = vector.load %arg8[%c0_20, %c0_21] : memref<1x32xf32, #tpu.memory_space<vmem>>, vector<1x32xf32>
    %54 = vector.broadcast %53 : vector<1x32xf32> to vector<8x32xf32>
    %55 = arith.addf %52, %54 : vector<8x32xf32>
    %56 = vector.shape_cast %55 : vector<8x32xf32> to vector<1x8x32xf32>
    %57 = vector.shape_cast %56 : vector<1x8x32xf32> to vector<8x32xf32>
    %58 = vector.shape_cast %57 : vector<8x32xf32> to vector<8x1x32xf32>
    %59 = vector.shape_cast %58 : vector<8x1x32xf32> to vector<8x32xf32>
    %60 = arith.truncf %59 : vector<8x32xf32> to vector<8x32xbf16>
    %c0_22 = arith.constant 0 : index
    %c0_23 = arith.constant 0 : index
    %61 = vector.load %arg9[%c0_22, %c0_23] : memref<32x256xbf16, #tpu.memory_space<vmem>>, vector<32x256xbf16>
    %cst_24 = arith.constant dense<0.000000e+00> : vector<8x256xf32>
    %62 = tpu.matmul %60, %61, %cst_24 {dimension_numbers = #tpu.dot_dimension_numbers<[1], [0], [0], [1], [0, 0, 1, 1], [], []>} : vector<8x32xbf16>, vector<32x256xbf16>, vector<8x256xf32> -> vector<8x256xf32>
    %c0_25 = arith.constant 0 : index
    %c0_26 = arith.constant 0 : index
    %63 = vector.load %arg10[%c0_25, %c0_26] : memref<1x256xf32, #tpu.memory_space<vmem>>, vector<1x256xf32>
    %64 = vector.broadcast %63 : vector<1x256xf32> to vector<8x256xf32>
    %65 = arith.addf %62, %64 : vector<8x256xf32>
    %66 = vector.shape_cast %65 : vector<8x256xf32> to vector<8x1x256xf32>
    %67 = vector.extract_strided_slice %66 {offsets = [0, 0, 0], sizes = [8, 1, 128], strides = [1, 1, 1]} : vector<8x1x256xf32> to vector<8x1x128xf32>
    %c0_27 = arith.constant 0 : index
    %c0_28 = arith.constant 0 : index
    %c0_29 = arith.constant 0 : index
    %68 = vector.load %arg15[%c0_27, %c0_28, %c0_29] : memref<8x1x128xf32, #tpu.memory_space<vmem>>, vector<8x1x128xf32>
    tpu.vector_store %arg15[%c0_27, %c0_28, %c0_29], %67 {strides = array<i32>} : memref<8x1x128xf32, #tpu.memory_space<vmem>>, vector<8x1x128xf32>,
    %69 = vector.extract_strided_slice %66 {offsets = [0, 0, 128], sizes = [8, 1, 128], strides = [1, 1, 1]} : vector<8x1x256xf32> to vector<8x1x128xf32>
    %c0_30 = arith.constant 0 : index
    %c0_31 = arith.constant 0 : index
    %c0_32 = arith.constant 0 : index
    %70 = vector.load %arg16[%c0_30, %c0_31, %c0_32] : memref<8x1x128xf32, #tpu.memory_space<vmem>>, vector<8x1x128xf32>
    tpu.vector_store %arg16[%c0_30, %c0_31, %c0_32], %69 {strides = array<i32>} : memref<8x1x128xf32, #tpu.memory_space<vmem>>, vector<8x1x128xf32>,
    %c0_33 = arith.constant 0 : index
    %c0_34 = arith.constant 0 : index
    %71 = vector.load %arg11[%c0_33, %c0_34] : memref<128x512xbf16, #tpu.memory_space<vmem>>, vector<128x512xbf16>
    %c0_35 = arith.constant 0 : index
    %c0_36 = arith.constant 0 : index
    %72 = vector.load %arg12[%c0_35, %c0_36] : memref<1x256xf32, #tpu.memory_space<vmem>>, vector<1x256xf32>
    %73 = vector.extract_strided_slice %72 {offsets = [0, 0], sizes = [1, 128], strides = [1, 1]} : vector<1x256xf32> to vector<1x128xf32>
    %74 = vector.extract_strided_slice %72 {offsets = [0, 128], sizes = [1, 128], strides = [1, 1]} : vector<1x256xf32> to vector<1x128xf32>
    %cst_37 = arith.constant 0.000000e+00 : f32
    %75 = vector.broadcast %cst_37 : f32 to vector<1x32xf32>
    %c0_i32 = arith.constant 0 : i32
    %c7_i32 = arith.constant 7 : i32
    %76 = arith.minsi %c0_i32, %c7_i32 : i32
    %c7_i32_38 = arith.constant 7 : i32
    %77 = arith.subi %c7_i32_38, %c0_i32 : i32
    %c0_i32_39 = arith.constant 0 : i32
    %78 = arith.maxsi %77, %c0_i32_39 : i32
    %c1_i32 = arith.constant 1 : i32
    %79 = arith.subi %c0_i32, %c1_i32 : i32
    %c0_i32_40 = arith.constant 0 : i32
    %80 = arith.maxsi %79, %c0_i32_40 : i32
    %c8_i32 = arith.constant 8 : i32
    %81 = arith.subi %c8_i32, %c0_i32 : i32
    %c7_i32_41 = arith.constant 7 : i32
    %82 = arith.minsi %81, %c7_i32_41 : i32
    %83 = tpu.concatenate %75, %75, %75, %75 in 1 : vector<1x32xf32>, vector<1x32xf32>, vector<1x32xf32>, vector<1x32xf32> -> vector<1x128xf32>
    %84 = arith.truncf %83 : vector<1x128xf32> to vector<1x128xbf16>
    %cst_42 = arith.constant dense<0.000000e+00> : vector<1x512xf32>
    %85 = tpu.matmul %84, %71, %cst_42 {dimension_numbers = #tpu.dot_dimension_numbers<[1], [0], [0], [1], [0, 0, 1, 1], [], []>} : vector<1x128xbf16>, vector<128x512xbf16>, vector<1x512xf32> -> vector<1x512xf32>
    %86 = vector.extract_strided_slice %85 {offsets = [0, 0], sizes = [1, 128], strides = [1, 1]} : vector<1x512xf32> to vector<1x128xf32>
    %87 = arith.index_cast %76 : i32 to index
    %c0_43 = arith.constant 0 : index
    %c0_44 = arith.constant 0 : index
    %88 = vector.load %arg15[%87, %c0_43, %c0_44] : memref<8x1x128xf32, #tpu.memory_space<vmem>>, vector<1x1x128xf32>
    %89 = vector.shape_cast %88 : vector<1x1x128xf32> to vector<1x128xf32>
    %90 = arith.addf %86, %89 : vector<1x128xf32>
    %91 = arith.negf %90 : vector<1x128xf32>
    %92 = math.exp %91 : vector<1x128xf32>
    %cst_45 = arith.constant 1.000000e+00 : f32
    %93 = vector.broadcast %cst_45 : f32 to vector<1x128xf32>
    %94 = arith.addf %93, %92 : vector<1x128xf32>
    %95 = arith.divf %93, %94 : vector<1x128xf32>
    %96 = vector.extract_strided_slice %95 {offsets = [0, 0], sizes = [1, 32], strides = [1, 1]} : vector<1x128xf32> to vector<1x32xf32>
    %97 = vector.extract_strided_slice %95 {offsets = [0, 32], sizes = [1, 32], strides = [1, 1]} : vector<1x128xf32> to vector<1x32xf32>
    %98 = vector.extract_strided_slice %95 {offsets = [0, 64], sizes = [1, 32], strides = [1, 1]} : vector<1x128xf32> to vector<1x32xf32>
    %cst_46 = arith.constant 2.000000e+00 : f32
    %99 = vector.broadcast %cst_46 : f32 to vector<1x32xf32>
    %100 = arith.mulf %99, %98 : vector<1x32xf32>
    %cst_47 = arith.constant 1.000000e+00 : f32
    %101 = vector.broadcast %cst_47 : f32 to vector<1x32xf32>
    %102 = arith.subf %100, %101 : vector<1x32xf32>
    %103 = vector.extract_strided_slice %95 {offsets = [0, 96], sizes = [1, 32], strides = [1, 1]} : vector<1x128xf32> to vector<1x32xf32>
    %104 = arith.mulf %97, %75 : vector<1x32xf32>
    %105 = arith.mulf %96, %102 : vector<1x32xf32>
    %106 = arith.addf %104, %105 : vector<1x32xf32>
    %107 = math.tanh %106 : vector<1x32xf32>
    %108 = arith.mulf %103, %107 : vector<1x32xf32>
    %109 = vector.extract_strided_slice %85 {offsets = [0, 128], sizes = [1, 128], strides = [1, 1]} : vector<1x512xf32> to vector<1x128xf32>
    %110 = arith.index_cast %78 : i32 to index
    %c0_48 = arith.constant 0 : index
    %c0_49 = arith.constant 0 : index
    %111 = vector.load %arg16[%110, %c0_48, %c0_49] : memref<8x1x128xf32, #tpu.memory_space<vmem>>, vector<1x1x128xf32>
    %112 = vector.shape_cast %111 : vector<1x1x128xf32> to vector<1x128xf32>
    %113 = arith.addf %109, %112 : vector<1x128xf32>
    %114 = arith.negf %113 : vector<1x128xf32>
    %115 = math.exp %114 : vector<1x128xf32>
    %cst_50 = arith.constant 1.000000e+00 : f32
    %116 = vector.broadcast %cst_50 : f32 to vector<1x128xf32>
    %117 = arith.addf %116, %115 : vector<1x128xf32>
    %118 = arith.divf %116, %117 : vector<1x128xf32>
    %119 = vector.extract_strided_slice %118 {offsets = [0, 0], sizes = [1, 32], strides = [1, 1]} : vector<1x128xf32> to vector<1x32xf32>
    %120 = vector.extract_strided_slice %118 {offsets = [0, 32], sizes = [1, 32], strides = [1, 1]} : vector<1x128xf32> to vector<1x32xf32>
    %121 = vector.extract_strided_slice %118 {offsets = [0, 64], sizes = [1, 32], strides = [1, 1]} : vector<1x128xf32> to vector<1x32xf32>
    %cst_51 = arith.constant 2.000000e+00 : f32
    %122 = vector.broadcast %cst_51 : f32 to vector<1x32xf32>
    %123 = arith.mulf %122, %121 : vector<1x32xf32>
    %cst_52 = arith.constant 1.000000e+00 : f32
    %124 = vector.broadcast %cst_52 : f32 to vector<1x32xf32>
    %125 = arith.subf %123, %124 : vector<1x32xf32>
    %126 = vector.extract_strided_slice %118 {offsets = [0, 96], sizes = [1, 32], strides = [1, 1]} : vector<1x128xf32> to vector<1x32xf32>
    %127 = arith.mulf %120, %75 : vector<1x32xf32>
    %128 = arith.mulf %119, %125 : vector<1x32xf32>
    %129 = arith.addf %127, %128 : vector<1x32xf32>
    %130 = math.tanh %129 : vector<1x32xf32>
    %131 = arith.mulf %126, %130 : vector<1x32xf32>
    %132 = vector.extract_strided_slice %85 {offsets = [0, 256], sizes = [1, 128], strides = [1, 1]} : vector<1x512xf32> to vector<1x128xf32>
    %133 = arith.addf %132, %73 : vector<1x128xf32>
    %134 = arith.negf %133 : vector<1x128xf32>
    %135 = math.exp %134 : vector<1x128xf32>
    %cst_53 = arith.constant 1.000000e+00 : f32
    %136 = vector.broadcast %cst_53 : f32 to vector<1x128xf32>
    %137 = arith.addf %136, %135 : vector<1x128xf32>
    %138 = arith.divf %136, %137 : vector<1x128xf32>
    %139 = vector.extract_strided_slice %138 {offsets = [0, 0], sizes = [1, 32], strides = [1, 1]} : vector<1x128xf32> to vector<1x32xf32>
    %140 = vector.extract_strided_slice %138 {offsets = [0, 32], sizes = [1, 32], strides = [1, 1]} : vector<1x128xf32> to vector<1x32xf32>
    %141 = vector.extract_strided_slice %138 {offsets = [0, 64], sizes = [1, 32], strides = [1, 1]} : vector<1x128xf32> to vector<1x32xf32>
    %cst_54 = arith.constant 2.000000e+00 : f32
    %142 = vector.broadcast %cst_54 : f32 to vector<1x32xf32>
    %143 = arith.mulf %142, %141 : vector<1x32xf32>
    %cst_55 = arith.constant 1.000000e+00 : f32
    %144 = vector.broadcast %cst_55 : f32 to vector<1x32xf32>
    %145 = arith.subf %143, %144 : vector<1x32xf32>
    %146 = vector.extract_strided_slice %138 {offsets = [0, 96], sizes = [1, 32], strides = [1, 1]} : vector<1x128xf32> to vector<1x32xf32>
    %147 = arith.mulf %140, %75 : vector<1x32xf32>
    %148 = arith.mulf %139, %145 : vector<1x32xf32>
    %149 = arith.addf %147, %148 : vector<1x32xf32>
    %150 = math.tanh %149 : vector<1x32xf32>
    %151 = arith.mulf %146, %150 : vector<1x32xf32>
    %152 = vector.extract_strided_slice %85 {offsets = [0, 384], sizes = [1, 128], strides = [1, 1]} : vector<1x512xf32> to vector<1x128xf32>
    %153 = arith.addf %152, %74 : vector<1x128xf32>
    %154 = arith.negf %153 : vector<1x128xf32>
    %155 = math.exp %154 : vector<1x128xf32>
    %cst_56 = arith.constant 1.000000e+00 : f32
    %156 = vector.broadcast %cst_56 : f32 to vector<1x128xf32>
    %157 = arith.addf %156, %155 : vector<1x128xf32>
    %158 = arith.divf %156, %157 : vector<1x128xf32>
    %159 = vector.extract_strided_slice %158 {offsets = [0, 0], sizes = [1, 32], strides = [1, 1]} : vector<1x128xf32> to vector<1x32xf32>
    %160 = vector.extract_strided_slice %158 {offsets = [0, 32], sizes = [1, 32], strides = [1, 1]} : vector<1x128xf32> to vector<1x32xf32>
    %161 = vector.extract_strided_slice %158 {offsets = [0, 64], sizes = [1, 32], strides = [1, 1]} : vector<1x128xf32> to vector<1x32xf32>
    %cst_57 = arith.constant 2.000000e+00 : f32
    %162 = vector.broadcast %cst_57 : f32 to vector<1x32xf32>
    %163 = arith.mulf %162, %161 : vector<1x32xf32>
    %cst_58 = arith.constant 1.000000e+00 : f32
    %164 = vector.broadcast %cst_58 : f32 to vector<1x32xf32>
    %165 = arith.subf %163, %164 : vector<1x32xf32>
    %166 = vector.extract_strided_slice %158 {offsets = [0, 96], sizes = [1, 32], strides = [1, 1]} : vector<1x128xf32> to vector<1x32xf32>
    %167 = arith.mulf %160, %75 : vector<1x32xf32>
    %168 = arith.mulf %159, %165 : vector<1x32xf32>
    %169 = arith.addf %167, %168 : vector<1x32xf32>
    %170 = math.tanh %169 : vector<1x32xf32>
    %171 = arith.mulf %166, %170 : vector<1x32xf32>
    %c8_i32_59 = arith.constant 8 : i32
    %172 = arith.cmpi slt, %c0_i32, %c8_i32_59 : i32
    %c1_i32_60 = arith.constant 1 : i32
    %173 = arith.cmpi sge, %c0_i32, %c1_i32_60 : i32
    %174 = arith.select %172, %108, %75 : vector<1x32xf32>
    %175 = arith.select %172, %106, %75 : vector<1x32xf32>
    %176 = arith.select %172, %131, %75 : vector<1x32xf32>
    %177 = arith.select %172, %129, %75 : vector<1x32xf32>
    %178 = arith.select %173, %151, %75 : vector<1x32xf32>
    %179 = arith.select %173, %149, %75 : vector<1x32xf32>
    %180 = arith.select %173, %171, %75 : vector<1x32xf32>
    %181 = arith.select %173, %169, %75 : vector<1x32xf32>
    %182 = arith.index_cast %76 : i32 to index
    %c0_61 = arith.constant 0 : index
    %c0_62 = arith.constant 0 : index
    %183 = vector.load %arg17[%182, %c0_61, %c0_62] : memref<8x1x32xf32, #tpu.memory_space<vmem>>, vector<1x1x32xf32>
    %184 = vector.shape_cast %183 : vector<1x1x32xf32> to vector<1x32xf32>
    %185 = vector.shape_cast %174 : vector<1x32xf32> to vector<1x1x32xf32>
    tpu.vector_store %arg17[%182, %c0_61, %c0_62], %185 {strides = array<i32>} : memref<8x1x32xf32, #tpu.memory_space<vmem>>, vector<1x1x32xf32>,
    %186 = arith.index_cast %78 : i32 to index
    %c0_63 = arith.constant 0 : index
    %c0_64 = arith.constant 0 : index
    %187 = vector.load %arg18[%186, %c0_63, %c0_64] : memref<8x1x32xf32, #tpu.memory_space<vmem>>, vector<1x1x32xf32>
    %188 = vector.shape_cast %187 : vector<1x1x32xf32> to vector<1x32xf32>
    %189 = vector.shape_cast %176 : vector<1x32xf32> to vector<1x1x32xf32>
    tpu.vector_store %arg18[%186, %c0_63, %c0_64], %189 {strides = array<i32>} : memref<8x1x32xf32, #tpu.memory_space<vmem>>, vector<1x1x32xf32>,
    %190 = arith.index_cast %80 : i32 to index
    %c0_65 = arith.constant 0 : index
    %c0_66 = arith.constant 0 : index
    %191 = vector.load %arg19[%190, %c0_65, %c0_66] : memref<8x1x32xf32, #tpu.memory_space<vmem>>, vector<1x1x32xf32>
    %192 = vector.shape_cast %191 : vector<1x1x32xf32> to vector<1x32xf32>
    %193 = vector.shape_cast %178 : vector<1x32xf32> to vector<1x1x32xf32>
    tpu.vector_store %arg19[%190, %c0_65, %c0_66], %193 {strides = array<i32>} : memref<8x1x32xf32, #tpu.memory_space<vmem>>, vector<1x1x32xf32>,
    %194 = arith.index_cast %82 : i32 to index
    %c0_67 = arith.constant 0 : index
    %c0_68 = arith.constant 0 : index
    %195 = vector.load %arg20[%194, %c0_67, %c0_68] : memref<8x1x32xf32, #tpu.memory_space<vmem>>, vector<1x1x32xf32>
    %196 = vector.shape_cast %195 : vector<1x1x32xf32> to vector<1x32xf32>
    %197 = vector.shape_cast %180 : vector<1x32xf32> to vector<1x1x32xf32>
    tpu.vector_store %arg20[%194, %c0_67, %c0_68], %197 {strides = array<i32>} : memref<8x1x32xf32, #tpu.memory_space<vmem>>, vector<1x1x32xf32>,
    %c1_i32_69 = arith.constant 1 : i32
    %c7_i32_70 = arith.constant 7 : i32
    %198 = arith.minsi %c1_i32_69, %c7_i32_70 : i32
    %c7_i32_71 = arith.constant 7 : i32
    %199 = arith.subi %c7_i32_71, %c1_i32_69 : i32
    %c0_i32_72 = arith.constant 0 : i32
    %200 = arith.maxsi %199, %c0_i32_72 : i32
    %c1_i32_73 = arith.constant 1 : i32
    %201 = arith.subi %c1_i32_69, %c1_i32_73 : i32
    %c0_i32_74 = arith.constant 0 : i32
    %202 = arith.maxsi %201, %c0_i32_74 : i32
    %c8_i32_75 = arith.constant 8 : i32
    %203 = arith.subi %c8_i32_75, %c1_i32_69 : i32
    %c7_i32_76 = arith.constant 7 : i32
    %204 = arith.minsi %203, %c7_i32_76 : i32
    %205 = tpu.concatenate %174, %176, %178, %180 in 1 : vector<1x32xf32>, vector<1x32xf32>, vector<1x32xf32>, vector<1x32xf32> -> vector<1x128xf32>
    %206 = arith.truncf %205 : vector<1x128xf32> to vector<1x128xbf16>
    %cst_77 = arith.constant dense<0.000000e+00> : vector<1x512xf32>
    %207 = tpu.matmul %206, %71, %cst_77 {dimension_numbers = #tpu.dot_dimension_numbers<[1], [0], [0], [1], [0, 0, 1, 1], [], []>} : vector<1x128xbf16>, vector<128x512xbf16>, vector<1x512xf32> -> vector<1x512xf32>
    %208 = vector.extract_strided_slice %207 {offsets = [0, 0], sizes = [1, 128], strides = [1, 1]} : vector<1x512xf32> to vector<1x128xf32>
    %209 = arith.index_cast %198 : i32 to index
    %c0_78 = arith.constant 0 : index
    %c0_79 = arith.constant 0 : index
    %210 = vector.load %arg15[%209, %c0_78, %c0_79] : memref<8x1x128xf32, #tpu.memory_space<vmem>>, vector<1x1x128xf32>
    %211 = vector.shape_cast %210 : vector<1x1x128xf32> to vector<1x128xf32>
    %212 = arith.addf %208, %211 : vector<1x128xf32>
    %213 = arith.negf %212 : vector<1x128xf32>
    %214 = math.exp %213 : vector<1x128xf32>
    %cst_80 = arith.constant 1.000000e+00 : f32
    %215 = vector.broadcast %cst_80 : f32 to vector<1x128xf32>
    %216 = arith.addf %215, %214 : vector<1x128xf32>
    %217 = arith.divf %215, %216 : vector<1x128xf32>
    %218 = vector.extract_strided_slice %217 {offsets = [0, 0], sizes = [1, 32], strides = [1, 1]} : vector<1x128xf32> to vector<1x32xf32>
    %219 = vector.extract_strided_slice %217 {offsets = [0, 32], sizes = [1, 32], strides = [1, 1]} : vector<1x128xf32> to vector<1x32xf32>
    %220 = vector.extract_strided_slice %217 {offsets = [0, 64], sizes = [1, 32], strides = [1, 1]} : vector<1x128xf32> to vector<1x32xf32>
    %cst_81 = arith.constant 2.000000e+00 : f32
    %221 = vector.broadcast %cst_81 : f32 to vector<1x32xf32>
    %222 = arith.mulf %221, %220 : vector<1x32xf32>
    %cst_82 = arith.constant 1.000000e+00 : f32
    %223 = vector.broadcast %cst_82 : f32 to vector<1x32xf32>
    %224 = arith.subf %222, %223 : vector<1x32xf32>
    %225 = vector.extract_strided_slice %217 {offsets = [0, 96], sizes = [1, 32], strides = [1, 1]} : vector<1x128xf32> to vector<1x32xf32>
    %226 = arith.mulf %219, %175 : vector<1x32xf32>
    %227 = arith.mulf %218, %224 : vector<1x32xf32>
    %228 = arith.addf %226, %227 : vector<1x32xf32>
    %229 = math.tanh %228 : vector<1x32xf32>
    %230 = arith.mulf %225, %229 : vector<1x32xf32>
    %231 = vector.extract_strided_slice %207 {offsets = [0, 128], sizes = [1, 128], strides = [1, 1]} : vector<1x512xf32> to vector<1x128xf32>
    %232 = arith.index_cast %200 : i32 to index
    %c0_83 = arith.constant 0 : index
    %c0_84 = arith.constant 0 : index
    %233 = vector.load %arg16[%232, %c0_83, %c0_84] : memref<8x1x128xf32, #tpu.memory_space<vmem>>, vector<1x1x128xf32>
    %234 = vector.shape_cast %233 : vector<1x1x128xf32> to vector<1x128xf32>
    %235 = arith.addf %231, %234 : vector<1x128xf32>
    %236 = arith.negf %235 : vector<1x128xf32>
    %237 = math.exp %236 : vector<1x128xf32>
    %cst_85 = arith.constant 1.000000e+00 : f32
    %238 = vector.broadcast %cst_85 : f32 to vector<1x128xf32>
    %239 = arith.addf %238, %237 : vector<1x128xf32>
    %240 = arith.divf %238, %239 : vector<1x128xf32>
    %241 = vector.extract_strided_slice %240 {offsets = [0, 0], sizes = [1, 32], strides = [1, 1]} : vector<1x128xf32> to vector<1x32xf32>
    %242 = vector.extract_strided_slice %240 {offsets = [0, 32], sizes = [1, 32], strides = [1, 1]} : vector<1x128xf32> to vector<1x32xf32>
    %243 = vector.extract_strided_slice %240 {offsets = [0, 64], sizes = [1, 32], strides = [1, 1]} : vector<1x128xf32> to vector<1x32xf32>
    %cst_86 = arith.constant 2.000000e+00 : f32
    %244 = vector.broadcast %cst_86 : f32 to vector<1x32xf32>
    %245 = arith.mulf %244, %243 : vector<1x32xf32>
    %cst_87 = arith.constant 1.000000e+00 : f32
    %246 = vector.broadcast %cst_87 : f32 to vector<1x32xf32>
    %247 = arith.subf %245, %246 : vector<1x32xf32>
    %248 = vector.extract_strided_slice %240 {offsets = [0, 96], sizes = [1, 32], strides = [1, 1]} : vector<1x128xf32> to vector<1x32xf32>
    %249 = arith.mulf %242, %177 : vector<1x32xf32>
    %250 = arith.mulf %241, %247 : vector<1x32xf32>
    %251 = arith.addf %249, %250 : vector<1x32xf32>
    %252 = math.tanh %251 : vector<1x32xf32>
    %253 = arith.mulf %248, %252 : vector<1x32xf32>
    %254 = vector.extract_strided_slice %207 {offsets = [0, 256], sizes = [1, 128], strides = [1, 1]} : vector<1x512xf32> to vector<1x128xf32>
    %255 = arith.addf %254, %73 : vector<1x128xf32>
    %256 = arith.negf %255 : vector<1x128xf32>
    %257 = math.exp %256 : vector<1x128xf32>
    %cst_88 = arith.constant 1.000000e+00 : f32
    %258 = vector.broadcast %cst_88 : f32 to vector<1x128xf32>
    %259 = arith.addf %258, %257 : vector<1x128xf32>
    %260 = arith.divf %258, %259 : vector<1x128xf32>
    %261 = vector.extract_strided_slice %260 {offsets = [0, 0], sizes = [1, 32], strides = [1, 1]} : vector<1x128xf32> to vector<1x32xf32>
    %262 = vector.extract_strided_slice %260 {offsets = [0, 32], sizes = [1, 32], strides = [1, 1]} : vector<1x128xf32> to vector<1x32xf32>
    %263 = vector.extract_strided_slice %260 {offsets = [0, 64], sizes = [1, 32], strides = [1, 1]} : vector<1x128xf32> to vector<1x32xf32>
    %cst_89 = arith.constant 2.000000e+00 : f32
    %264 = vector.broadcast %cst_89 : f32 to vector<1x32xf32>
    %265 = arith.mulf %264, %263 : vector<1x32xf32>
    %cst_90 = arith.constant 1.000000e+00 : f32
    %266 = vector.broadcast %cst_90 : f32 to vector<1x32xf32>
    %267 = arith.subf %265, %266 : vector<1x32xf32>
    %268 = vector.extract_strided_slice %260 {offsets = [0, 96], sizes = [1, 32], strides = [1, 1]} : vector<1x128xf32> to vector<1x32xf32>
    %269 = arith.mulf %262, %179 : vector<1x32xf32>
    %270 = arith.mulf %261, %267 : vector<1x32xf32>
    %271 = arith.addf %269, %270 : vector<1x32xf32>
    %272 = math.tanh %271 : vector<1x32xf32>
    %273 = arith.mulf %268, %272 : vector<1x32xf32>
    %274 = vector.extract_strided_slice %207 {offsets = [0, 384], sizes = [1, 128], strides = [1, 1]} : vector<1x512xf32> to vector<1x128xf32>
    %275 = arith.addf %274, %74 : vector<1x128xf32>
    %276 = arith.negf %275 : vector<1x128xf32>
    %277 = math.exp %276 : vector<1x128xf32>
    %cst_91 = arith.constant 1.000000e+00 : f32
    %278 = vector.broadcast %cst_91 : f32 to vector<1x128xf32>
    %279 = arith.addf %278, %277 : vector<1x128xf32>
    %280 = arith.divf %278, %279 : vector<1x128xf32>
    %281 = vector.extract_strided_slice %280 {offsets = [0, 0], sizes = [1, 32], strides = [1, 1]} : vector<1x128xf32> to vector<1x32xf32>
    %282 = vector.extract_strided_slice %280 {offsets = [0, 32], sizes = [1, 32], strides = [1, 1]} : vector<1x128xf32> to vector<1x32xf32>
    %283 = vector.extract_strided_slice %280 {offsets = [0, 64], sizes = [1, 32], strides = [1, 1]} : vector<1x128xf32> to vector<1x32xf32>
    %cst_92 = arith.constant 2.000000e+00 : f32
    %284 = vector.broadcast %cst_92 : f32 to vector<1x32xf32>
    %285 = arith.mulf %284, %283 : vector<1x32xf32>
    %cst_93 = arith.constant 1.000000e+00 : f32
    %286 = vector.broadcast %cst_93 : f32 to vector<1x32xf32>
    %287 = arith.subf %285, %286 : vector<1x32xf32>
    %288 = vector.extract_strided_slice %280 {offsets = [0, 96], sizes = [1, 32], strides = [1, 1]} : vector<1x128xf32> to vector<1x32xf32>
    %289 = arith.mulf %282, %181 : vector<1x32xf32>
    %290 = arith.mulf %281, %287 : vector<1x32xf32>
    %291 = arith.addf %289, %290 : vector<1x32xf32>
    %292 = math.tanh %291 : vector<1x32xf32>
    %293 = arith.mulf %288, %292 : vector<1x32xf32>
    %c8_i32_94 = arith.constant 8 : i32
    %294 = arith.cmpi slt, %c1_i32_69, %c8_i32_94 : i32
    %c1_i32_95 = arith.constant 1 : i32
    %295 = arith.cmpi sge, %c1_i32_69, %c1_i32_95 : i32
    %296 = arith.select %294, %230, %174 : vector<1x32xf32>
    %297 = arith.select %294, %228, %175 : vector<1x32xf32>
    %298 = arith.select %294, %253, %176 : vector<1x32xf32>
    %299 = arith.select %294, %251, %177 : vector<1x32xf32>
    %300 = arith.select %295, %273, %178 : vector<1x32xf32>
    %301 = arith.select %295, %271, %179 : vector<1x32xf32>
    %302 = arith.select %295, %293, %180 : vector<1x32xf32>
    %303 = arith.select %295, %291, %181 : vector<1x32xf32>
    %304 = arith.index_cast %198 : i32 to index
    %c0_96 = arith.constant 0 : index
    %c0_97 = arith.constant 0 : index
    %305 = vector.load %arg17[%304, %c0_96, %c0_97] : memref<8x1x32xf32, #tpu.memory_space<vmem>>, vector<1x1x32xf32>
    %306 = vector.shape_cast %305 : vector<1x1x32xf32> to vector<1x32xf32>
    %307 = vector.shape_cast %296 : vector<1x32xf32> to vector<1x1x32xf32>
    tpu.vector_store %arg17[%304, %c0_96, %c0_97], %307 {strides = array<i32>} : memref<8x1x32xf32, #tpu.memory_space<vmem>>, vector<1x1x32xf32>,
    %308 = arith.index_cast %200 : i32 to index
    %c0_98 = arith.constant 0 : index
    %c0_99 = arith.constant 0 : index
    %309 = vector.load %arg18[%308, %c0_98, %c0_99] : memref<8x1x32xf32, #tpu.memory_space<vmem>>, vector<1x1x32xf32>
    %310 = vector.shape_cast %309 : vector<1x1x32xf32> to vector<1x32xf32>
    %311 = vector.shape_cast %298 : vector<1x32xf32> to vector<1x1x32xf32>
    tpu.vector_store %arg18[%308, %c0_98, %c0_99], %311 {strides = array<i32>} : memref<8x1x32xf32, #tpu.memory_space<vmem>>, vector<1x1x32xf32>,
    %312 = arith.index_cast %202 : i32 to index
    %c0_100 = arith.constant 0 : index
    %c0_101 = arith.constant 0 : index
    %313 = vector.load %arg19[%312, %c0_100, %c0_101] : memref<8x1x32xf32, #tpu.memory_space<vmem>>, vector<1x1x32xf32>
    %314 = vector.shape_cast %313 : vector<1x1x32xf32> to vector<1x32xf32>
    %315 = vector.shape_cast %300 : vector<1x32xf32> to vector<1x1x32xf32>
    tpu.vector_store %arg19[%312, %c0_100, %c0_101], %315 {strides = array<i32>} : memref<8x1x32xf32, #tpu.memory_space<vmem>>, vector<1x1x32xf32>,
    %316 = arith.index_cast %204 : i32 to index
    %c0_102 = arith.constant 0 : index
    %c0_103 = arith.constant 0 : index
    %317 = vector.load %arg20[%316, %c0_102, %c0_103] : memref<8x1x32xf32, #tpu.memory_space<vmem>>, vector<1x1x32xf32>
    %318 = vector.shape_cast %317 : vector<1x1x32xf32> to vector<1x32xf32>
    %319 = vector.shape_cast %302 : vector<1x32xf32> to vector<1x1x32xf32>
    tpu.vector_store %arg20[%316, %c0_102, %c0_103], %319 {strides = array<i32>} : memref<8x1x32xf32, #tpu.memory_space<vmem>>, vector<1x1x32xf32>,
    %c2_i32 = arith.constant 2 : i32
    %c7_i32_104 = arith.constant 7 : i32
    %320 = arith.minsi %c2_i32, %c7_i32_104 : i32
    %c7_i32_105 = arith.constant 7 : i32
    %321 = arith.subi %c7_i32_105, %c2_i32 : i32
    %c0_i32_106 = arith.constant 0 : i32
    %322 = arith.maxsi %321, %c0_i32_106 : i32
    %c1_i32_107 = arith.constant 1 : i32
    %323 = arith.subi %c2_i32, %c1_i32_107 : i32
    %c0_i32_108 = arith.constant 0 : i32
    %324 = arith.maxsi %323, %c0_i32_108 : i32
    %c8_i32_109 = arith.constant 8 : i32
    %325 = arith.subi %c8_i32_109, %c2_i32 : i32
    %c7_i32_110 = arith.constant 7 : i32
    %326 = arith.minsi %325, %c7_i32_110 : i32
    %327 = tpu.concatenate %296, %298, %300, %302 in 1 : vector<1x32xf32>, vector<1x32xf32>, vector<1x32xf32>, vector<1x32xf32> -> vector<1x128xf32>
    %328 = arith.truncf %327 : vector<1x128xf32> to vector<1x128xbf16>
    %cst_111 = arith.constant dense<0.000000e+00> : vector<1x512xf32>
    %329 = tpu.matmul %328, %71, %cst_111 {dimension_numbers = #tpu.dot_dimension_numbers<[1], [0], [0], [1], [0, 0, 1, 1], [], []>} : vector<1x128xbf16>, vector<128x512xbf16>, vector<1x512xf32> -> vector<1x512xf32>
    %330 = vector.extract_strided_slice %329 {offsets = [0, 0], sizes = [1, 128], strides = [1, 1]} : vector<1x512xf32> to vector<1x128xf32>
    %331 = arith.index_cast %320 : i32 to index
    %c0_112 = arith.constant 0 : index
    %c0_113 = arith.constant 0 : index
    %332 = vector.load %arg15[%331, %c0_112, %c0_113] : memref<8x1x128xf32, #tpu.memory_space<vmem>>, vector<1x1x128xf32>
    %333 = vector.shape_cast %332 : vector<1x1x128xf32> to vector<1x128xf32>
    %334 = arith.addf %330, %333 : vector<1x128xf32>
    %335 = arith.negf %334 : vector<1x128xf32>
    %336 = math.exp %335 : vector<1x128xf32>
    %cst_114 = arith.constant 1.000000e+00 : f32
    %337 = vector.broadcast %cst_114 : f32 to vector<1x128xf32>
    %338 = arith.addf %337, %336 : vector<1x128xf32>
    %339 = arith.divf %337, %338 : vector<1x128xf32>
    %340 = vector.extract_strided_slice %339 {offsets = [0, 0], sizes = [1, 32], strides = [1, 1]} : vector<1x128xf32> to vector<1x32xf32>
    %341 = vector.extract_strided_slice %339 {offsets = [0, 32], sizes = [1, 32], strides = [1, 1]} : vector<1x128xf32> to vector<1x32xf32>
    %342 = vector.extract_strided_slice %339 {offsets = [0, 64], sizes = [1, 32], strides = [1, 1]} : vector<1x128xf32> to vector<1x32xf32>
    %cst_115 = arith.constant 2.000000e+00 : f32
    %343 = vector.broadcast %cst_115 : f32 to vector<1x32xf32>
    %344 = arith.mulf %343, %342 : vector<1x32xf32>
    %cst_116 = arith.constant 1.000000e+00 : f32
    %345 = vector.broadcast %cst_116 : f32 to vector<1x32xf32>
    %346 = arith.subf %344, %345 : vector<1x32xf32>
    %347 = vector.extract_strided_slice %339 {offsets = [0, 96], sizes = [1, 32], strides = [1, 1]} : vector<1x128xf32> to vector<1x32xf32>
    %348 = arith.mulf %341, %297 : vector<1x32xf32>
    %349 = arith.mulf %340, %346 : vector<1x32xf32>
    %350 = arith.addf %348, %349 : vector<1x32xf32>
    %351 = math.tanh %350 : vector<1x32xf32>
    %352 = arith.mulf %347, %351 : vector<1x32xf32>
    %353 = vector.extract_strided_slice %329 {offsets = [0, 128], sizes = [1, 128], strides = [1, 1]} : vector<1x512xf32> to vector<1x128xf32>
    %354 = arith.index_cast %322 : i32 to index
    %c0_117 = arith.constant 0 : index
    %c0_118 = arith.constant 0 : index
    %355 = vector.load %arg16[%354, %c0_117, %c0_118] : memref<8x1x128xf32, #tpu.memory_space<vmem>>, vector<1x1x128xf32>
    %356 = vector.shape_cast %355 : vector<1x1x128xf32> to vector<1x128xf32>
    %357 = arith.addf %353, %356 : vector<1x128xf32>
    %358 = arith.negf %357 : vector<1x128xf32>
    %359 = math.exp %358 : vector<1x128xf32>
    %cst_119 = arith.constant 1.000000e+00 : f32
    %360 = vector.broadcast %cst_119 : f32 to vector<1x128xf32>
    %361 = arith.addf %360, %359 : vector<1x128xf32>
    %362 = arith.divf %360, %361 : vector<1x128xf32>
    %363 = vector.extract_strided_slice %362 {offsets = [0, 0], sizes = [1, 32], strides = [1, 1]} : vector<1x128xf32> to vector<1x32xf32>
    %364 = vector.extract_strided_slice %362 {offsets = [0, 32], sizes = [1, 32], strides = [1, 1]} : vector<1x128xf32> to vector<1x32xf32>
    %365 = vector.extract_strided_slice %362 {offsets = [0, 64], sizes = [1, 32], strides = [1, 1]} : vector<1x128xf32> to vector<1x32xf32>
    %cst_120 = arith.constant 2.000000e+00 : f32
    %366 = vector.broadcast %cst_120 : f32 to vector<1x32xf32>
    %367 = arith.mulf %366, %365 : vector<1x32xf32>
    %cst_121 = arith.constant 1.000000e+00 : f32
    %368 = vector.broadcast %cst_121 : f32 to vector<1x32xf32>
    %369 = arith.subf %367, %368 : vector<1x32xf32>
    %370 = vector.extract_strided_slice %362 {offsets = [0, 96], sizes = [1, 32], strides = [1, 1]} : vector<1x128xf32> to vector<1x32xf32>
    %371 = arith.mulf %364, %299 : vector<1x32xf32>
    %372 = arith.mulf %363, %369 : vector<1x32xf32>
    %373 = arith.addf %371, %372 : vector<1x32xf32>
    %374 = math.tanh %373 : vector<1x32xf32>
    %375 = arith.mulf %370, %374 : vector<1x32xf32>
    %376 = vector.extract_strided_slice %329 {offsets = [0, 256], sizes = [1, 128], strides = [1, 1]} : vector<1x512xf32> to vector<1x128xf32>
    %377 = arith.addf %376, %73 : vector<1x128xf32>
    %378 = arith.negf %377 : vector<1x128xf32>
    %379 = math.exp %378 : vector<1x128xf32>
    %cst_122 = arith.constant 1.000000e+00 : f32
    %380 = vector.broadcast %cst_122 : f32 to vector<1x128xf32>
    %381 = arith.addf %380, %379 : vector<1x128xf32>
    %382 = arith.divf %380, %381 : vector<1x128xf32>
    %383 = vector.extract_strided_slice %382 {offsets = [0, 0], sizes = [1, 32], strides = [1, 1]} : vector<1x128xf32> to vector<1x32xf32>
    %384 = vector.extract_strided_slice %382 {offsets = [0, 32], sizes = [1, 32], strides = [1, 1]} : vector<1x128xf32> to vector<1x32xf32>
    %385 = vector.extract_strided_slice %382 {offsets = [0, 64], sizes = [1, 32], strides = [1, 1]} : vector<1x128xf32> to vector<1x32xf32>
    %cst_123 = arith.constant 2.000000e+00 : f32
    %386 = vector.broadcast %cst_123 : f32 to vector<1x32xf32>
    %387 = arith.mulf %386, %385 : vector<1x32xf32>
    %cst_124 = arith.constant 1.000000e+00 : f32
    %388 = vector.broadcast %cst_124 : f32 to vector<1x32xf32>
    %389 = arith.subf %387, %388 : vector<1x32xf32>
    %390 = vector.extract_strided_slice %382 {offsets = [0, 96], sizes = [1, 32], strides = [1, 1]} : vector<1x128xf32> to vector<1x32xf32>
    %391 = arith.mulf %384, %301 : vector<1x32xf32>
    %392 = arith.mulf %383, %389 : vector<1x32xf32>
    %393 = arith.addf %391, %392 : vector<1x32xf32>
    %394 = math.tanh %393 : vector<1x32xf32>
    %395 = arith.mulf %390, %394 : vector<1x32xf32>
    %396 = vector.extract_strided_slice %329 {offsets = [0, 384], sizes = [1, 128], strides = [1, 1]} : vector<1x512xf32> to vector<1x128xf32>
    %397 = arith.addf %396, %74 : vector<1x128xf32>
    %398 = arith.negf %397 : vector<1x128xf32>
    %399 = math.exp %398 : vector<1x128xf32>
    %cst_125 = arith.constant 1.000000e+00 : f32
    %400 = vector.broadcast %cst_125 : f32 to vector<1x128xf32>
    %401 = arith.addf %400, %399 : vector<1x128xf32>
    %402 = arith.divf %400, %401 : vector<1x128xf32>
    %403 = vector.extract_strided_slice %402 {offsets = [0, 0], sizes = [1, 32], strides = [1, 1]} : vector<1x128xf32> to vector<1x32xf32>
    %404 = vector.extract_strided_slice %402 {offsets = [0, 32], sizes = [1, 32], strides = [1, 1]} : vector<1x128xf32> to vector<1x32xf32>
    %405 = vector.extract_strided_slice %402 {offsets = [0, 64], sizes = [1, 32], strides = [1, 1]} : vector<1x128xf32> to vector<1x32xf32>
    %cst_126 = arith.constant 2.000000e+00 : f32
    %406 = vector.broadcast %cst_126 : f32 to vector<1x32xf32>
    %407 = arith.mulf %406, %405 : vector<1x32xf32>
    %cst_127 = arith.constant 1.000000e+00 : f32
    %408 = vector.broadcast %cst_127 : f32 to vector<1x32xf32>
    %409 = arith.subf %407, %408 : vector<1x32xf32>
    %410 = vector.extract_strided_slice %402 {offsets = [0, 96], sizes = [1, 32], strides = [1, 1]} : vector<1x128xf32> to vector<1x32xf32>
    %411 = arith.mulf %404, %303 : vector<1x32xf32>
    %412 = arith.mulf %403, %409 : vector<1x32xf32>
    %413 = arith.addf %411, %412 : vector<1x32xf32>
    %414 = math.tanh %413 : vector<1x32xf32>
    %415 = arith.mulf %410, %414 : vector<1x32xf32>
    %c8_i32_128 = arith.constant 8 : i32
    %416 = arith.cmpi slt, %c2_i32, %c8_i32_128 : i32
    %c1_i32_129 = arith.constant 1 : i32
    %417 = arith.cmpi sge, %c2_i32, %c1_i32_129 : i32
    %418 = arith.select %416, %352, %296 : vector<1x32xf32>
    %419 = arith.select %416, %350, %297 : vector<1x32xf32>
    %420 = arith.select %416, %375, %298 : vector<1x32xf32>
    %421 = arith.select %416, %373, %299 : vector<1x32xf32>
    %422 = arith.select %417, %395, %300 : vector<1x32xf32>
    %423 = arith.select %417, %393, %301 : vector<1x32xf32>
    %424 = arith.select %417, %415, %302 : vector<1x32xf32>
    %425 = arith.select %417, %413, %303 : vector<1x32xf32>
    %426 = arith.index_cast %320 : i32 to index
    %c0_130 = arith.constant 0 : index
    %c0_131 = arith.constant 0 : index
    %427 = vector.load %arg17[%426, %c0_130, %c0_131] : memref<8x1x32xf32, #tpu.memory_space<vmem>>, vector<1x1x32xf32>
    %428 = vector.shape_cast %427 : vector<1x1x32xf32> to vector<1x32xf32>
    %429 = vector.shape_cast %418 : vector<1x32xf32> to vector<1x1x32xf32>
    tpu.vector_store %arg17[%426, %c0_130, %c0_131], %429 {strides = array<i32>} : memref<8x1x32xf32, #tpu.memory_space<vmem>>, vector<1x1x32xf32>,
    %430 = arith.index_cast %322 : i32 to index
    %c0_132 = arith.constant 0 : index
    %c0_133 = arith.constant 0 : index
    %431 = vector.load %arg18[%430, %c0_132, %c0_133] : memref<8x1x32xf32, #tpu.memory_space<vmem>>, vector<1x1x32xf32>
    %432 = vector.shape_cast %431 : vector<1x1x32xf32> to vector<1x32xf32>
    %433 = vector.shape_cast %420 : vector<1x32xf32> to vector<1x1x32xf32>
    tpu.vector_store %arg18[%430, %c0_132, %c0_133], %433 {strides = array<i32>} : memref<8x1x32xf32, #tpu.memory_space<vmem>>, vector<1x1x32xf32>,
    %434 = arith.index_cast %324 : i32 to index
    %c0_134 = arith.constant 0 : index
    %c0_135 = arith.constant 0 : index
    %435 = vector.load %arg19[%434, %c0_134, %c0_135] : memref<8x1x32xf32, #tpu.memory_space<vmem>>, vector<1x1x32xf32>
    %436 = vector.shape_cast %435 : vector<1x1x32xf32> to vector<1x32xf32>
    %437 = vector.shape_cast %422 : vector<1x32xf32> to vector<1x1x32xf32>
    tpu.vector_store %arg19[%434, %c0_134, %c0_135], %437 {strides = array<i32>} : memref<8x1x32xf32, #tpu.memory_space<vmem>>, vector<1x1x32xf32>,
    %438 = arith.index_cast %326 : i32 to index
    %c0_136 = arith.constant 0 : index
    %c0_137 = arith.constant 0 : index
    %439 = vector.load %arg20[%438, %c0_136, %c0_137] : memref<8x1x32xf32, #tpu.memory_space<vmem>>, vector<1x1x32xf32>
    %440 = vector.shape_cast %439 : vector<1x1x32xf32> to vector<1x32xf32>
    %441 = vector.shape_cast %424 : vector<1x32xf32> to vector<1x1x32xf32>
    tpu.vector_store %arg20[%438, %c0_136, %c0_137], %441 {strides = array<i32>} : memref<8x1x32xf32, #tpu.memory_space<vmem>>, vector<1x1x32xf32>,
    %c3_i32 = arith.constant 3 : i32
    %c7_i32_138 = arith.constant 7 : i32
    %442 = arith.minsi %c3_i32, %c7_i32_138 : i32
    %c7_i32_139 = arith.constant 7 : i32
    %443 = arith.subi %c7_i32_139, %c3_i32 : i32
    %c0_i32_140 = arith.constant 0 : i32
    %444 = arith.maxsi %443, %c0_i32_140 : i32
    %c1_i32_141 = arith.constant 1 : i32
    %445 = arith.subi %c3_i32, %c1_i32_141 : i32
    %c0_i32_142 = arith.constant 0 : i32
    %446 = arith.maxsi %445, %c0_i32_142 : i32
    %c8_i32_143 = arith.constant 8 : i32
    %447 = arith.subi %c8_i32_143, %c3_i32 : i32
    %c7_i32_144 = arith.constant 7 : i32
    %448 = arith.minsi %447, %c7_i32_144 : i32
    %449 = tpu.concatenate %418, %420, %422, %424 in 1 : vector<1x32xf32>, vector<1x32xf32>, vector<1x32xf32>, vector<1x32xf32> -> vector<1x128xf32>
    %450 = arith.truncf %449 : vector<1x128xf32> to vector<1x128xbf16>
    %cst_145 = arith.constant dense<0.000000e+00> : vector<1x512xf32>
    %451 = tpu.matmul %450, %71, %cst_145 {dimension_numbers = #tpu.dot_dimension_numbers<[1], [0], [0], [1], [0, 0, 1, 1], [], []>} : vector<1x128xbf16>, vector<128x512xbf16>, vector<1x512xf32> -> vector<1x512xf32>
    %452 = vector.extract_strided_slice %451 {offsets = [0, 0], sizes = [1, 128], strides = [1, 1]} : vector<1x512xf32> to vector<1x128xf32>
    %453 = arith.index_cast %442 : i32 to index
    %c0_146 = arith.constant 0 : index
    %c0_147 = arith.constant 0 : index
    %454 = vector.load %arg15[%453, %c0_146, %c0_147] : memref<8x1x128xf32, #tpu.memory_space<vmem>>, vector<1x1x128xf32>
    %455 = vector.shape_cast %454 : vector<1x1x128xf32> to vector<1x128xf32>
    %456 = arith.addf %452, %455 : vector<1x128xf32>
    %457 = arith.negf %456 : vector<1x128xf32>
    %458 = math.exp %457 : vector<1x128xf32>
    %cst_148 = arith.constant 1.000000e+00 : f32
    %459 = vector.broadcast %cst_148 : f32 to vector<1x128xf32>
    %460 = arith.addf %459, %458 : vector<1x128xf32>
    %461 = arith.divf %459, %460 : vector<1x128xf32>
    %462 = vector.extract_strided_slice %461 {offsets = [0, 0], sizes = [1, 32], strides = [1, 1]} : vector<1x128xf32> to vector<1x32xf32>
    %463 = vector.extract_strided_slice %461 {offsets = [0, 32], sizes = [1, 32], strides = [1, 1]} : vector<1x128xf32> to vector<1x32xf32>
    %464 = vector.extract_strided_slice %461 {offsets = [0, 64], sizes = [1, 32], strides = [1, 1]} : vector<1x128xf32> to vector<1x32xf32>
    %cst_149 = arith.constant 2.000000e+00 : f32
    %465 = vector.broadcast %cst_149 : f32 to vector<1x32xf32>
    %466 = arith.mulf %465, %464 : vector<1x32xf32>
    %cst_150 = arith.constant 1.000000e+00 : f32
    %467 = vector.broadcast %cst_150 : f32 to vector<1x32xf32>
    %468 = arith.subf %466, %467 : vector<1x32xf32>
    %469 = vector.extract_strided_slice %461 {offsets = [0, 96], sizes = [1, 32], strides = [1, 1]} : vector<1x128xf32> to vector<1x32xf32>
    %470 = arith.mulf %463, %419 : vector<1x32xf32>
    %471 = arith.mulf %462, %468 : vector<1x32xf32>
    %472 = arith.addf %470, %471 : vector<1x32xf32>
    %473 = math.tanh %472 : vector<1x32xf32>
    %474 = arith.mulf %469, %473 : vector<1x32xf32>
    %475 = vector.extract_strided_slice %451 {offsets = [0, 128], sizes = [1, 128], strides = [1, 1]} : vector<1x512xf32> to vector<1x128xf32>
    %476 = arith.index_cast %444 : i32 to index
    %c0_151 = arith.constant 0 : index
    %c0_152 = arith.constant 0 : index
    %477 = vector.load %arg16[%476, %c0_151, %c0_152] : memref<8x1x128xf32, #tpu.memory_space<vmem>>, vector<1x1x128xf32>
    %478 = vector.shape_cast %477 : vector<1x1x128xf32> to vector<1x128xf32>
    %479 = arith.addf %475, %478 : vector<1x128xf32>
    %480 = arith.negf %479 : vector<1x128xf32>
    %481 = math.exp %480 : vector<1x128xf32>
    %cst_153 = arith.constant 1.000000e+00 : f32
    %482 = vector.broadcast %cst_153 : f32 to vector<1x128xf32>
    %483 = arith.addf %482, %481 : vector<1x128xf32>
    %484 = arith.divf %482, %483 : vector<1x128xf32>
    %485 = vector.extract_strided_slice %484 {offsets = [0, 0], sizes = [1, 32], strides = [1, 1]} : vector<1x128xf32> to vector<1x32xf32>
    %486 = vector.extract_strided_slice %484 {offsets = [0, 32], sizes = [1, 32], strides = [1, 1]} : vector<1x128xf32> to vector<1x32xf32>
    %487 = vector.extract_strided_slice %484 {offsets = [0, 64], sizes = [1, 32], strides = [1, 1]} : vector<1x128xf32> to vector<1x32xf32>
    %cst_154 = arith.constant 2.000000e+00 : f32
    %488 = vector.broadcast %cst_154 : f32 to vector<1x32xf32>
    %489 = arith.mulf %488, %487 : vector<1x32xf32>
    %cst_155 = arith.constant 1.000000e+00 : f32
    %490 = vector.broadcast %cst_155 : f32 to vector<1x32xf32>
    %491 = arith.subf %489, %490 : vector<1x32xf32>
    %492 = vector.extract_strided_slice %484 {offsets = [0, 96], sizes = [1, 32], strides = [1, 1]} : vector<1x128xf32> to vector<1x32xf32>
    %493 = arith.mulf %486, %421 : vector<1x32xf32>
    %494 = arith.mulf %485, %491 : vector<1x32xf32>
    %495 = arith.addf %493, %494 : vector<1x32xf32>
    %496 = math.tanh %495 : vector<1x32xf32>
    %497 = arith.mulf %492, %496 : vector<1x32xf32>
    %498 = vector.extract_strided_slice %451 {offsets = [0, 256], sizes = [1, 128], strides = [1, 1]} : vector<1x512xf32> to vector<1x128xf32>
    %499 = arith.addf %498, %73 : vector<1x128xf32>
    %500 = arith.negf %499 : vector<1x128xf32>
    %501 = math.exp %500 : vector<1x128xf32>
    %cst_156 = arith.constant 1.000000e+00 : f32
    %502 = vector.broadcast %cst_156 : f32 to vector<1x128xf32>
    %503 = arith.addf %502, %501 : vector<1x128xf32>
    %504 = arith.divf %502, %503 : vector<1x128xf32>
    %505 = vector.extract_strided_slice %504 {offsets = [0, 0], sizes = [1, 32], strides = [1, 1]} : vector<1x128xf32> to vector<1x32xf32>
    %506 = vector.extract_strided_slice %504 {offsets = [0, 32], sizes = [1, 32], strides = [1, 1]} : vector<1x128xf32> to vector<1x32xf32>
    %507 = vector.extract_strided_slice %504 {offsets = [0, 64], sizes = [1, 32], strides = [1, 1]} : vector<1x128xf32> to vector<1x32xf32>
    %cst_157 = arith.constant 2.000000e+00 : f32
    %508 = vector.broadcast %cst_157 : f32 to vector<1x32xf32>
    %509 = arith.mulf %508, %507 : vector<1x32xf32>
    %cst_158 = arith.constant 1.000000e+00 : f32
    %510 = vector.broadcast %cst_158 : f32 to vector<1x32xf32>
    %511 = arith.subf %509, %510 : vector<1x32xf32>
    %512 = vector.extract_strided_slice %504 {offsets = [0, 96], sizes = [1, 32], strides = [1, 1]} : vector<1x128xf32> to vector<1x32xf32>
    %513 = arith.mulf %506, %423 : vector<1x32xf32>
    %514 = arith.mulf %505, %511 : vector<1x32xf32>
    %515 = arith.addf %513, %514 : vector<1x32xf32>
    %516 = math.tanh %515 : vector<1x32xf32>
    %517 = arith.mulf %512, %516 : vector<1x32xf32>
    %518 = vector.extract_strided_slice %451 {offsets = [0, 384], sizes = [1, 128], strides = [1, 1]} : vector<1x512xf32> to vector<1x128xf32>
    %519 = arith.addf %518, %74 : vector<1x128xf32>
    %520 = arith.negf %519 : vector<1x128xf32>
    %521 = math.exp %520 : vector<1x128xf32>
    %cst_159 = arith.constant 1.000000e+00 : f32
    %522 = vector.broadcast %cst_159 : f32 to vector<1x128xf32>
    %523 = arith.addf %522, %521 : vector<1x128xf32>
    %524 = arith.divf %522, %523 : vector<1x128xf32>
    %525 = vector.extract_strided_slice %524 {offsets = [0, 0], sizes = [1, 32], strides = [1, 1]} : vector<1x128xf32> to vector<1x32xf32>
    %526 = vector.extract_strided_slice %524 {offsets = [0, 32], sizes = [1, 32], strides = [1, 1]} : vector<1x128xf32> to vector<1x32xf32>
    %527 = vector.extract_strided_slice %524 {offsets = [0, 64], sizes = [1, 32], strides = [1, 1]} : vector<1x128xf32> to vector<1x32xf32>
    %cst_160 = arith.constant 2.000000e+00 : f32
    %528 = vector.broadcast %cst_160 : f32 to vector<1x32xf32>
    %529 = arith.mulf %528, %527 : vector<1x32xf32>
    %cst_161 = arith.constant 1.000000e+00 : f32
    %530 = vector.broadcast %cst_161 : f32 to vector<1x32xf32>
    %531 = arith.subf %529, %530 : vector<1x32xf32>
    %532 = vector.extract_strided_slice %524 {offsets = [0, 96], sizes = [1, 32], strides = [1, 1]} : vector<1x128xf32> to vector<1x32xf32>
    %533 = arith.mulf %526, %425 : vector<1x32xf32>
    %534 = arith.mulf %525, %531 : vector<1x32xf32>
    %535 = arith.addf %533, %534 : vector<1x32xf32>
    %536 = math.tanh %535 : vector<1x32xf32>
    %537 = arith.mulf %532, %536 : vector<1x32xf32>
    %c8_i32_162 = arith.constant 8 : i32
    %538 = arith.cmpi slt, %c3_i32, %c8_i32_162 : i32
    %c1_i32_163 = arith.constant 1 : i32
    %539 = arith.cmpi sge, %c3_i32, %c1_i32_163 : i32
    %540 = arith.select %538, %474, %418 : vector<1x32xf32>
    %541 = arith.select %538, %472, %419 : vector<1x32xf32>
    %542 = arith.select %538, %497, %420 : vector<1x32xf32>
    %543 = arith.select %538, %495, %421 : vector<1x32xf32>
    %544 = arith.select %539, %517, %422 : vector<1x32xf32>
    %545 = arith.select %539, %515, %423 : vector<1x32xf32>
    %546 = arith.select %539, %537, %424 : vector<1x32xf32>
    %547 = arith.select %539, %535, %425 : vector<1x32xf32>
    %548 = arith.index_cast %442 : i32 to index
    %c0_164 = arith.constant 0 : index
    %c0_165 = arith.constant 0 : index
    %549 = vector.load %arg17[%548, %c0_164, %c0_165] : memref<8x1x32xf32, #tpu.memory_space<vmem>>, vector<1x1x32xf32>
    %550 = vector.shape_cast %549 : vector<1x1x32xf32> to vector<1x32xf32>
    %551 = vector.shape_cast %540 : vector<1x32xf32> to vector<1x1x32xf32>
    tpu.vector_store %arg17[%548, %c0_164, %c0_165], %551 {strides = array<i32>} : memref<8x1x32xf32, #tpu.memory_space<vmem>>, vector<1x1x32xf32>,
    %552 = arith.index_cast %444 : i32 to index
    %c0_166 = arith.constant 0 : index
    %c0_167 = arith.constant 0 : index
    %553 = vector.load %arg18[%552, %c0_166, %c0_167] : memref<8x1x32xf32, #tpu.memory_space<vmem>>, vector<1x1x32xf32>
    %554 = vector.shape_cast %553 : vector<1x1x32xf32> to vector<1x32xf32>
    %555 = vector.shape_cast %542 : vector<1x32xf32> to vector<1x1x32xf32>
    tpu.vector_store %arg18[%552, %c0_166, %c0_167], %555 {strides = array<i32>} : memref<8x1x32xf32, #tpu.memory_space<vmem>>, vector<1x1x32xf32>,
    %556 = arith.index_cast %446 : i32 to index
    %c0_168 = arith.constant 0 : index
    %c0_169 = arith.constant 0 : index
    %557 = vector.load %arg19[%556, %c0_168, %c0_169] : memref<8x1x32xf32, #tpu.memory_space<vmem>>, vector<1x1x32xf32>
    %558 = vector.shape_cast %557 : vector<1x1x32xf32> to vector<1x32xf32>
    %559 = vector.shape_cast %544 : vector<1x32xf32> to vector<1x1x32xf32>
    tpu.vector_store %arg19[%556, %c0_168, %c0_169], %559 {strides = array<i32>} : memref<8x1x32xf32, #tpu.memory_space<vmem>>, vector<1x1x32xf32>,
    %560 = arith.index_cast %448 : i32 to index
    %c0_170 = arith.constant 0 : index
    %c0_171 = arith.constant 0 : index
    %561 = vector.load %arg20[%560, %c0_170, %c0_171] : memref<8x1x32xf32, #tpu.memory_space<vmem>>, vector<1x1x32xf32>
    %562 = vector.shape_cast %561 : vector<1x1x32xf32> to vector<1x32xf32>
    %563 = vector.shape_cast %546 : vector<1x32xf32> to vector<1x1x32xf32>
    tpu.vector_store %arg20[%560, %c0_170, %c0_171], %563 {strides = array<i32>} : memref<8x1x32xf32, #tpu.memory_space<vmem>>, vector<1x1x32xf32>,
    %c4_i32 = arith.constant 4 : i32
    %c7_i32_172 = arith.constant 7 : i32
    %564 = arith.minsi %c4_i32, %c7_i32_172 : i32
    %c7_i32_173 = arith.constant 7 : i32
    %565 = arith.subi %c7_i32_173, %c4_i32 : i32
    %c0_i32_174 = arith.constant 0 : i32
    %566 = arith.maxsi %565, %c0_i32_174 : i32
    %c1_i32_175 = arith.constant 1 : i32
    %567 = arith.subi %c4_i32, %c1_i32_175 : i32
    %c0_i32_176 = arith.constant 0 : i32
    %568 = arith.maxsi %567, %c0_i32_176 : i32
    %c8_i32_177 = arith.constant 8 : i32
    %569 = arith.subi %c8_i32_177, %c4_i32 : i32
    %c7_i32_178 = arith.constant 7 : i32
    %570 = arith.minsi %569, %c7_i32_178 : i32
    %571 = tpu.concatenate %540, %542, %544, %546 in 1 : vector<1x32xf32>, vector<1x32xf32>, vector<1x32xf32>, vector<1x32xf32> -> vector<1x128xf32>
    %572 = arith.truncf %571 : vector<1x128xf32> to vector<1x128xbf16>
    %cst_179 = arith.constant dense<0.000000e+00> : vector<1x512xf32>
    %573 = tpu.matmul %572, %71, %cst_179 {dimension_numbers = #tpu.dot_dimension_numbers<[1], [0], [0], [1], [0, 0, 1, 1], [], []>} : vector<1x128xbf16>, vector<128x512xbf16>, vector<1x512xf32> -> vector<1x512xf32>
    %574 = vector.extract_strided_slice %573 {offsets = [0, 0], sizes = [1, 128], strides = [1, 1]} : vector<1x512xf32> to vector<1x128xf32>
    %575 = arith.index_cast %564 : i32 to index
    %c0_180 = arith.constant 0 : index
    %c0_181 = arith.constant 0 : index
    %576 = vector.load %arg15[%575, %c0_180, %c0_181] : memref<8x1x128xf32, #tpu.memory_space<vmem>>, vector<1x1x128xf32>
    %577 = vector.shape_cast %576 : vector<1x1x128xf32> to vector<1x128xf32>
    %578 = arith.addf %574, %577 : vector<1x128xf32>
    %579 = arith.negf %578 : vector<1x128xf32>
    %580 = math.exp %579 : vector<1x128xf32>
    %cst_182 = arith.constant 1.000000e+00 : f32
    %581 = vector.broadcast %cst_182 : f32 to vector<1x128xf32>
    %582 = arith.addf %581, %580 : vector<1x128xf32>
    %583 = arith.divf %581, %582 : vector<1x128xf32>
    %584 = vector.extract_strided_slice %583 {offsets = [0, 0], sizes = [1, 32], strides = [1, 1]} : vector<1x128xf32> to vector<1x32xf32>
    %585 = vector.extract_strided_slice %583 {offsets = [0, 32], sizes = [1, 32], strides = [1, 1]} : vector<1x128xf32> to vector<1x32xf32>
    %586 = vector.extract_strided_slice %583 {offsets = [0, 64], sizes = [1, 32], strides = [1, 1]} : vector<1x128xf32> to vector<1x32xf32>
    %cst_183 = arith.constant 2.000000e+00 : f32
    %587 = vector.broadcast %cst_183 : f32 to vector<1x32xf32>
    %588 = arith.mulf %587, %586 : vector<1x32xf32>
    %cst_184 = arith.constant 1.000000e+00 : f32
    %589 = vector.broadcast %cst_184 : f32 to vector<1x32xf32>
    %590 = arith.subf %588, %589 : vector<1x32xf32>
    %591 = vector.extract_strided_slice %583 {offsets = [0, 96], sizes = [1, 32], strides = [1, 1]} : vector<1x128xf32> to vector<1x32xf32>
    %592 = arith.mulf %585, %541 : vector<1x32xf32>
    %593 = arith.mulf %584, %590 : vector<1x32xf32>
    %594 = arith.addf %592, %593 : vector<1x32xf32>
    %595 = math.tanh %594 : vector<1x32xf32>
    %596 = arith.mulf %591, %595 : vector<1x32xf32>
    %597 = vector.extract_strided_slice %573 {offsets = [0, 128], sizes = [1, 128], strides = [1, 1]} : vector<1x512xf32> to vector<1x128xf32>
    %598 = arith.index_cast %566 : i32 to index
    %c0_185 = arith.constant 0 : index
    %c0_186 = arith.constant 0 : index
    %599 = vector.load %arg16[%598, %c0_185, %c0_186] : memref<8x1x128xf32, #tpu.memory_space<vmem>>, vector<1x1x128xf32>
    %600 = vector.shape_cast %599 : vector<1x1x128xf32> to vector<1x128xf32>
    %601 = arith.addf %597, %600 : vector<1x128xf32>
    %602 = arith.negf %601 : vector<1x128xf32>
    %603 = math.exp %602 : vector<1x128xf32>
    %cst_187 = arith.constant 1.000000e+00 : f32
    %604 = vector.broadcast %cst_187 : f32 to vector<1x128xf32>
    %605 = arith.addf %604, %603 : vector<1x128xf32>
    %606 = arith.divf %604, %605 : vector<1x128xf32>
    %607 = vector.extract_strided_slice %606 {offsets = [0, 0], sizes = [1, 32], strides = [1, 1]} : vector<1x128xf32> to vector<1x32xf32>
    %608 = vector.extract_strided_slice %606 {offsets = [0, 32], sizes = [1, 32], strides = [1, 1]} : vector<1x128xf32> to vector<1x32xf32>
    %609 = vector.extract_strided_slice %606 {offsets = [0, 64], sizes = [1, 32], strides = [1, 1]} : vector<1x128xf32> to vector<1x32xf32>
    %cst_188 = arith.constant 2.000000e+00 : f32
    %610 = vector.broadcast %cst_188 : f32 to vector<1x32xf32>
    %611 = arith.mulf %610, %609 : vector<1x32xf32>
    %cst_189 = arith.constant 1.000000e+00 : f32
    %612 = vector.broadcast %cst_189 : f32 to vector<1x32xf32>
    %613 = arith.subf %611, %612 : vector<1x32xf32>
    %614 = vector.extract_strided_slice %606 {offsets = [0, 96], sizes = [1, 32], strides = [1, 1]} : vector<1x128xf32> to vector<1x32xf32>
    %615 = arith.mulf %608, %543 : vector<1x32xf32>
    %616 = arith.mulf %607, %613 : vector<1x32xf32>
    %617 = arith.addf %615, %616 : vector<1x32xf32>
    %618 = math.tanh %617 : vector<1x32xf32>
    %619 = arith.mulf %614, %618 : vector<1x32xf32>
    %620 = vector.extract_strided_slice %573 {offsets = [0, 256], sizes = [1, 128], strides = [1, 1]} : vector<1x512xf32> to vector<1x128xf32>
    %621 = arith.addf %620, %73 : vector<1x128xf32>
    %622 = arith.negf %621 : vector<1x128xf32>
    %623 = math.exp %622 : vector<1x128xf32>
    %cst_190 = arith.constant 1.000000e+00 : f32
    %624 = vector.broadcast %cst_190 : f32 to vector<1x128xf32>
    %625 = arith.addf %624, %623 : vector<1x128xf32>
    %626 = arith.divf %624, %625 : vector<1x128xf32>
    %627 = vector.extract_strided_slice %626 {offsets = [0, 0], sizes = [1, 32], strides = [1, 1]} : vector<1x128xf32> to vector<1x32xf32>
    %628 = vector.extract_strided_slice %626 {offsets = [0, 32], sizes = [1, 32], strides = [1, 1]} : vector<1x128xf32> to vector<1x32xf32>
    %629 = vector.extract_strided_slice %626 {offsets = [0, 64], sizes = [1, 32], strides = [1, 1]} : vector<1x128xf32> to vector<1x32xf32>
    %cst_191 = arith.constant 2.000000e+00 : f32
    %630 = vector.broadcast %cst_191 : f32 to vector<1x32xf32>
    %631 = arith.mulf %630, %629 : vector<1x32xf32>
    %cst_192 = arith.constant 1.000000e+00 : f32
    %632 = vector.broadcast %cst_192 : f32 to vector<1x32xf32>
    %633 = arith.subf %631, %632 : vector<1x32xf32>
    %634 = vector.extract_strided_slice %626 {offsets = [0, 96], sizes = [1, 32], strides = [1, 1]} : vector<1x128xf32> to vector<1x32xf32>
    %635 = arith.mulf %628, %545 : vector<1x32xf32>
    %636 = arith.mulf %627, %633 : vector<1x32xf32>
    %637 = arith.addf %635, %636 : vector<1x32xf32>
    %638 = math.tanh %637 : vector<1x32xf32>
    %639 = arith.mulf %634, %638 : vector<1x32xf32>
    %640 = vector.extract_strided_slice %573 {offsets = [0, 384], sizes = [1, 128], strides = [1, 1]} : vector<1x512xf32> to vector<1x128xf32>
    %641 = arith.addf %640, %74 : vector<1x128xf32>
    %642 = arith.negf %641 : vector<1x128xf32>
    %643 = math.exp %642 : vector<1x128xf32>
    %cst_193 = arith.constant 1.000000e+00 : f32
    %644 = vector.broadcast %cst_193 : f32 to vector<1x128xf32>
    %645 = arith.addf %644, %643 : vector<1x128xf32>
    %646 = arith.divf %644, %645 : vector<1x128xf32>
    %647 = vector.extract_strided_slice %646 {offsets = [0, 0], sizes = [1, 32], strides = [1, 1]} : vector<1x128xf32> to vector<1x32xf32>
    %648 = vector.extract_strided_slice %646 {offsets = [0, 32], sizes = [1, 32], strides = [1, 1]} : vector<1x128xf32> to vector<1x32xf32>
    %649 = vector.extract_strided_slice %646 {offsets = [0, 64], sizes = [1, 32], strides = [1, 1]} : vector<1x128xf32> to vector<1x32xf32>
    %cst_194 = arith.constant 2.000000e+00 : f32
    %650 = vector.broadcast %cst_194 : f32 to vector<1x32xf32>
    %651 = arith.mulf %650, %649 : vector<1x32xf32>
    %cst_195 = arith.constant 1.000000e+00 : f32
    %652 = vector.broadcast %cst_195 : f32 to vector<1x32xf32>
    %653 = arith.subf %651, %652 : vector<1x32xf32>
    %654 = vector.extract_strided_slice %646 {offsets = [0, 96], sizes = [1, 32], strides = [1, 1]} : vector<1x128xf32> to vector<1x32xf32>
    %655 = arith.mulf %648, %547 : vector<1x32xf32>
    %656 = arith.mulf %647, %653 : vector<1x32xf32>
    %657 = arith.addf %655, %656 : vector<1x32xf32>
    %658 = math.tanh %657 : vector<1x32xf32>
    %659 = arith.mulf %654, %658 : vector<1x32xf32>
    %c8_i32_196 = arith.constant 8 : i32
    %660 = arith.cmpi slt, %c4_i32, %c8_i32_196 : i32
    %c1_i32_197 = arith.constant 1 : i32
    %661 = arith.cmpi sge, %c4_i32, %c1_i32_197 : i32
    %662 = arith.select %660, %596, %540 : vector<1x32xf32>
    %663 = arith.select %660, %594, %541 : vector<1x32xf32>
    %664 = arith.select %660, %619, %542 : vector<1x32xf32>
    %665 = arith.select %660, %617, %543 : vector<1x32xf32>
    %666 = arith.select %661, %639, %544 : vector<1x32xf32>
    %667 = arith.select %661, %637, %545 : vector<1x32xf32>
    %668 = arith.select %661, %659, %546 : vector<1x32xf32>
    %669 = arith.select %661, %657, %547 : vector<1x32xf32>
    %670 = arith.index_cast %564 : i32 to index
    %c0_198 = arith.constant 0 : index
    %c0_199 = arith.constant 0 : index
    %671 = vector.load %arg17[%670, %c0_198, %c0_199] : memref<8x1x32xf32, #tpu.memory_space<vmem>>, vector<1x1x32xf32>
    %672 = vector.shape_cast %671 : vector<1x1x32xf32> to vector<1x32xf32>
    %673 = vector.shape_cast %662 : vector<1x32xf32> to vector<1x1x32xf32>
    tpu.vector_store %arg17[%670, %c0_198, %c0_199], %673 {strides = array<i32>} : memref<8x1x32xf32, #tpu.memory_space<vmem>>, vector<1x1x32xf32>,
    %674 = arith.index_cast %566 : i32 to index
    %c0_200 = arith.constant 0 : index
    %c0_201 = arith.constant 0 : index
    %675 = vector.load %arg18[%674, %c0_200, %c0_201] : memref<8x1x32xf32, #tpu.memory_space<vmem>>, vector<1x1x32xf32>
    %676 = vector.shape_cast %675 : vector<1x1x32xf32> to vector<1x32xf32>
    %677 = vector.shape_cast %664 : vector<1x32xf32> to vector<1x1x32xf32>
    tpu.vector_store %arg18[%674, %c0_200, %c0_201], %677 {strides = array<i32>} : memref<8x1x32xf32, #tpu.memory_space<vmem>>, vector<1x1x32xf32>,
    %678 = arith.index_cast %568 : i32 to index
    %c0_202 = arith.constant 0 : index
    %c0_203 = arith.constant 0 : index
    %679 = vector.load %arg19[%678, %c0_202, %c0_203] : memref<8x1x32xf32, #tpu.memory_space<vmem>>, vector<1x1x32xf32>
    %680 = vector.shape_cast %679 : vector<1x1x32xf32> to vector<1x32xf32>
    %681 = vector.shape_cast %666 : vector<1x32xf32> to vector<1x1x32xf32>
    tpu.vector_store %arg19[%678, %c0_202, %c0_203], %681 {strides = array<i32>} : memref<8x1x32xf32, #tpu.memory_space<vmem>>, vector<1x1x32xf32>,
    %682 = arith.index_cast %570 : i32 to index
    %c0_204 = arith.constant 0 : index
    %c0_205 = arith.constant 0 : index
    %683 = vector.load %arg20[%682, %c0_204, %c0_205] : memref<8x1x32xf32, #tpu.memory_space<vmem>>, vector<1x1x32xf32>
    %684 = vector.shape_cast %683 : vector<1x1x32xf32> to vector<1x32xf32>
    %685 = vector.shape_cast %668 : vector<1x32xf32> to vector<1x1x32xf32>
    tpu.vector_store %arg20[%682, %c0_204, %c0_205], %685 {strides = array<i32>} : memref<8x1x32xf32, #tpu.memory_space<vmem>>, vector<1x1x32xf32>,
    %c5_i32 = arith.constant 5 : i32
    %c7_i32_206 = arith.constant 7 : i32
    %686 = arith.minsi %c5_i32, %c7_i32_206 : i32
    %c7_i32_207 = arith.constant 7 : i32
    %687 = arith.subi %c7_i32_207, %c5_i32 : i32
    %c0_i32_208 = arith.constant 0 : i32
    %688 = arith.maxsi %687, %c0_i32_208 : i32
    %c1_i32_209 = arith.constant 1 : i32
    %689 = arith.subi %c5_i32, %c1_i32_209 : i32
    %c0_i32_210 = arith.constant 0 : i32
    %690 = arith.maxsi %689, %c0_i32_210 : i32
    %c8_i32_211 = arith.constant 8 : i32
    %691 = arith.subi %c8_i32_211, %c5_i32 : i32
    %c7_i32_212 = arith.constant 7 : i32
    %692 = arith.minsi %691, %c7_i32_212 : i32
    %693 = tpu.concatenate %662, %664, %666, %668 in 1 : vector<1x32xf32>, vector<1x32xf32>, vector<1x32xf32>, vector<1x32xf32> -> vector<1x128xf32>
    %694 = arith.truncf %693 : vector<1x128xf32> to vector<1x128xbf16>
    %cst_213 = arith.constant dense<0.000000e+00> : vector<1x512xf32>
    %695 = tpu.matmul %694, %71, %cst_213 {dimension_numbers = #tpu.dot_dimension_numbers<[1], [0], [0], [1], [0, 0, 1, 1], [], []>} : vector<1x128xbf16>, vector<128x512xbf16>, vector<1x512xf32> -> vector<1x512xf32>
    %696 = vector.extract_strided_slice %695 {offsets = [0, 0], sizes = [1, 128], strides = [1, 1]} : vector<1x512xf32> to vector<1x128xf32>
    %697 = arith.index_cast %686 : i32 to index
    %c0_214 = arith.constant 0 : index
    %c0_215 = arith.constant 0 : index
    %698 = vector.load %arg15[%697, %c0_214, %c0_215] : memref<8x1x128xf32, #tpu.memory_space<vmem>>, vector<1x1x128xf32>
    %699 = vector.shape_cast %698 : vector<1x1x128xf32> to vector<1x128xf32>
    %700 = arith.addf %696, %699 : vector<1x128xf32>
    %701 = arith.negf %700 : vector<1x128xf32>
    %702 = math.exp %701 : vector<1x128xf32>
    %cst_216 = arith.constant 1.000000e+00 : f32
    %703 = vector.broadcast %cst_216 : f32 to vector<1x128xf32>
    %704 = arith.addf %703, %702 : vector<1x128xf32>
    %705 = arith.divf %703, %704 : vector<1x128xf32>
    %706 = vector.extract_strided_slice %705 {offsets = [0, 0], sizes = [1, 32], strides = [1, 1]} : vector<1x128xf32> to vector<1x32xf32>
    %707 = vector.extract_strided_slice %705 {offsets = [0, 32], sizes = [1, 32], strides = [1, 1]} : vector<1x128xf32> to vector<1x32xf32>
    %708 = vector.extract_strided_slice %705 {offsets = [0, 64], sizes = [1, 32], strides = [1, 1]} : vector<1x128xf32> to vector<1x32xf32>
    %cst_217 = arith.constant 2.000000e+00 : f32
    %709 = vector.broadcast %cst_217 : f32 to vector<1x32xf32>
    %710 = arith.mulf %709, %708 : vector<1x32xf32>
    %cst_218 = arith.constant 1.000000e+00 : f32
    %711 = vector.broadcast %cst_218 : f32 to vector<1x32xf32>
    %712 = arith.subf %710, %711 : vector<1x32xf32>
    %713 = vector.extract_strided_slice %705 {offsets = [0, 96], sizes = [1, 32], strides = [1, 1]} : vector<1x128xf32> to vector<1x32xf32>
    %714 = arith.mulf %707, %663 : vector<1x32xf32>
    %715 = arith.mulf %706, %712 : vector<1x32xf32>
    %716 = arith.addf %714, %715 : vector<1x32xf32>
    %717 = math.tanh %716 : vector<1x32xf32>
    %718 = arith.mulf %713, %717 : vector<1x32xf32>
    %719 = vector.extract_strided_slice %695 {offsets = [0, 128], sizes = [1, 128], strides = [1, 1]} : vector<1x512xf32> to vector<1x128xf32>
    %720 = arith.index_cast %688 : i32 to index
    %c0_219 = arith.constant 0 : index
    %c0_220 = arith.constant 0 : index
    %721 = vector.load %arg16[%720, %c0_219, %c0_220] : memref<8x1x128xf32, #tpu.memory_space<vmem>>, vector<1x1x128xf32>
    %722 = vector.shape_cast %721 : vector<1x1x128xf32> to vector<1x128xf32>
    %723 = arith.addf %719, %722 : vector<1x128xf32>
    %724 = arith.negf %723 : vector<1x128xf32>
    %725 = math.exp %724 : vector<1x128xf32>
    %cst_221 = arith.constant 1.000000e+00 : f32
    %726 = vector.broadcast %cst_221 : f32 to vector<1x128xf32>
    %727 = arith.addf %726, %725 : vector<1x128xf32>
    %728 = arith.divf %726, %727 : vector<1x128xf32>
    %729 = vector.extract_strided_slice %728 {offsets = [0, 0], sizes = [1, 32], strides = [1, 1]} : vector<1x128xf32> to vector<1x32xf32>
    %730 = vector.extract_strided_slice %728 {offsets = [0, 32], sizes = [1, 32], strides = [1, 1]} : vector<1x128xf32> to vector<1x32xf32>
    %731 = vector.extract_strided_slice %728 {offsets = [0, 64], sizes = [1, 32], strides = [1, 1]} : vector<1x128xf32> to vector<1x32xf32>
    %cst_222 = arith.constant 2.000000e+00 : f32
    %732 = vector.broadcast %cst_222 : f32 to vector<1x32xf32>
    %733 = arith.mulf %732, %731 : vector<1x32xf32>
    %cst_223 = arith.constant 1.000000e+00 : f32
    %734 = vector.broadcast %cst_223 : f32 to vector<1x32xf32>
    %735 = arith.subf %733, %734 : vector<1x32xf32>
    %736 = vector.extract_strided_slice %728 {offsets = [0, 96], sizes = [1, 32], strides = [1, 1]} : vector<1x128xf32> to vector<1x32xf32>
    %737 = arith.mulf %730, %665 : vector<1x32xf32>
    %738 = arith.mulf %729, %735 : vector<1x32xf32>
    %739 = arith.addf %737, %738 : vector<1x32xf32>
    %740 = math.tanh %739 : vector<1x32xf32>
    %741 = arith.mulf %736, %740 : vector<1x32xf32>
    %742 = vector.extract_strided_slice %695 {offsets = [0, 256], sizes = [1, 128], strides = [1, 1]} : vector<1x512xf32> to vector<1x128xf32>
    %743 = arith.addf %742, %73 : vector<1x128xf32>
    %744 = arith.negf %743 : vector<1x128xf32>
    %745 = math.exp %744 : vector<1x128xf32>
    %cst_224 = arith.constant 1.000000e+00 : f32
    %746 = vector.broadcast %cst_224 : f32 to vector<1x128xf32>
    %747 = arith.addf %746, %745 : vector<1x128xf32>
    %748 = arith.divf %746, %747 : vector<1x128xf32>
    %749 = vector.extract_strided_slice %748 {offsets = [0, 0], sizes = [1, 32], strides = [1, 1]} : vector<1x128xf32> to vector<1x32xf32>
    %750 = vector.extract_strided_slice %748 {offsets = [0, 32], sizes = [1, 32], strides = [1, 1]} : vector<1x128xf32> to vector<1x32xf32>
    %751 = vector.extract_strided_slice %748 {offsets = [0, 64], sizes = [1, 32], strides = [1, 1]} : vector<1x128xf32> to vector<1x32xf32>
    %cst_225 = arith.constant 2.000000e+00 : f32
    %752 = vector.broadcast %cst_225 : f32 to vector<1x32xf32>
    %753 = arith.mulf %752, %751 : vector<1x32xf32>
    %cst_226 = arith.constant 1.000000e+00 : f32
    %754 = vector.broadcast %cst_226 : f32 to vector<1x32xf32>
    %755 = arith.subf %753, %754 : vector<1x32xf32>
    %756 = vector.extract_strided_slice %748 {offsets = [0, 96], sizes = [1, 32], strides = [1, 1]} : vector<1x128xf32> to vector<1x32xf32>
    %757 = arith.mulf %750, %667 : vector<1x32xf32>
    %758 = arith.mulf %749, %755 : vector<1x32xf32>
    %759 = arith.addf %757, %758 : vector<1x32xf32>
    %760 = math.tanh %759 : vector<1x32xf32>
    %761 = arith.mulf %756, %760 : vector<1x32xf32>
    %762 = vector.extract_strided_slice %695 {offsets = [0, 384], sizes = [1, 128], strides = [1, 1]} : vector<1x512xf32> to vector<1x128xf32>
    %763 = arith.addf %762, %74 : vector<1x128xf32>
    %764 = arith.negf %763 : vector<1x128xf32>
    %765 = math.exp %764 : vector<1x128xf32>
    %cst_227 = arith.constant 1.000000e+00 : f32
    %766 = vector.broadcast %cst_227 : f32 to vector<1x128xf32>
    %767 = arith.addf %766, %765 : vector<1x128xf32>
    %768 = arith.divf %766, %767 : vector<1x128xf32>
    %769 = vector.extract_strided_slice %768 {offsets = [0, 0], sizes = [1, 32], strides = [1, 1]} : vector<1x128xf32> to vector<1x32xf32>
    %770 = vector.extract_strided_slice %768 {offsets = [0, 32], sizes = [1, 32], strides = [1, 1]} : vector<1x128xf32> to vector<1x32xf32>
    %771 = vector.extract_strided_slice %768 {offsets = [0, 64], sizes = [1, 32], strides = [1, 1]} : vector<1x128xf32> to vector<1x32xf32>
    %cst_228 = arith.constant 2.000000e+00 : f32
    %772 = vector.broadcast %cst_228 : f32 to vector<1x32xf32>
    %773 = arith.mulf %772, %771 : vector<1x32xf32>
    %cst_229 = arith.constant 1.000000e+00 : f32
    %774 = vector.broadcast %cst_229 : f32 to vector<1x32xf32>
    %775 = arith.subf %773, %774 : vector<1x32xf32>
    %776 = vector.extract_strided_slice %768 {offsets = [0, 96], sizes = [1, 32], strides = [1, 1]} : vector<1x128xf32> to vector<1x32xf32>
    %777 = arith.mulf %770, %669 : vector<1x32xf32>
    %778 = arith.mulf %769, %775 : vector<1x32xf32>
    %779 = arith.addf %777, %778 : vector<1x32xf32>
    %780 = math.tanh %779 : vector<1x32xf32>
    %781 = arith.mulf %776, %780 : vector<1x32xf32>
    %c8_i32_230 = arith.constant 8 : i32
    %782 = arith.cmpi slt, %c5_i32, %c8_i32_230 : i32
    %c1_i32_231 = arith.constant 1 : i32
    %783 = arith.cmpi sge, %c5_i32, %c1_i32_231 : i32
    %784 = arith.select %782, %718, %662 : vector<1x32xf32>
    %785 = arith.select %782, %716, %663 : vector<1x32xf32>
    %786 = arith.select %782, %741, %664 : vector<1x32xf32>
    %787 = arith.select %782, %739, %665 : vector<1x32xf32>
    %788 = arith.select %783, %761, %666 : vector<1x32xf32>
    %789 = arith.select %783, %759, %667 : vector<1x32xf32>
    %790 = arith.select %783, %781, %668 : vector<1x32xf32>
    %791 = arith.select %783, %779, %669 : vector<1x32xf32>
    %792 = arith.index_cast %686 : i32 to index
    %c0_232 = arith.constant 0 : index
    %c0_233 = arith.constant 0 : index
    %793 = vector.load %arg17[%792, %c0_232, %c0_233] : memref<8x1x32xf32, #tpu.memory_space<vmem>>, vector<1x1x32xf32>
    %794 = vector.shape_cast %793 : vector<1x1x32xf32> to vector<1x32xf32>
    %795 = vector.shape_cast %784 : vector<1x32xf32> to vector<1x1x32xf32>
    tpu.vector_store %arg17[%792, %c0_232, %c0_233], %795 {strides = array<i32>} : memref<8x1x32xf32, #tpu.memory_space<vmem>>, vector<1x1x32xf32>,
    %796 = arith.index_cast %688 : i32 to index
    %c0_234 = arith.constant 0 : index
    %c0_235 = arith.constant 0 : index
    %797 = vector.load %arg18[%796, %c0_234, %c0_235] : memref<8x1x32xf32, #tpu.memory_space<vmem>>, vector<1x1x32xf32>
    %798 = vector.shape_cast %797 : vector<1x1x32xf32> to vector<1x32xf32>
    %799 = vector.shape_cast %786 : vector<1x32xf32> to vector<1x1x32xf32>
    tpu.vector_store %arg18[%796, %c0_234, %c0_235], %799 {strides = array<i32>} : memref<8x1x32xf32, #tpu.memory_space<vmem>>, vector<1x1x32xf32>,
    %800 = arith.index_cast %690 : i32 to index
    %c0_236 = arith.constant 0 : index
    %c0_237 = arith.constant 0 : index
    %801 = vector.load %arg19[%800, %c0_236, %c0_237] : memref<8x1x32xf32, #tpu.memory_space<vmem>>, vector<1x1x32xf32>
    %802 = vector.shape_cast %801 : vector<1x1x32xf32> to vector<1x32xf32>
    %803 = vector.shape_cast %788 : vector<1x32xf32> to vector<1x1x32xf32>
    tpu.vector_store %arg19[%800, %c0_236, %c0_237], %803 {strides = array<i32>} : memref<8x1x32xf32, #tpu.memory_space<vmem>>, vector<1x1x32xf32>,
    %804 = arith.index_cast %692 : i32 to index
    %c0_238 = arith.constant 0 : index
    %c0_239 = arith.constant 0 : index
    %805 = vector.load %arg20[%804, %c0_238, %c0_239] : memref<8x1x32xf32, #tpu.memory_space<vmem>>, vector<1x1x32xf32>
    %806 = vector.shape_cast %805 : vector<1x1x32xf32> to vector<1x32xf32>
    %807 = vector.shape_cast %790 : vector<1x32xf32> to vector<1x1x32xf32>
    tpu.vector_store %arg20[%804, %c0_238, %c0_239], %807 {strides = array<i32>} : memref<8x1x32xf32, #tpu.memory_space<vmem>>, vector<1x1x32xf32>,
    %c6_i32 = arith.constant 6 : i32
    %c7_i32_240 = arith.constant 7 : i32
    %808 = arith.minsi %c6_i32, %c7_i32_240 : i32
    %c7_i32_241 = arith.constant 7 : i32
    %809 = arith.subi %c7_i32_241, %c6_i32 : i32
    %c0_i32_242 = arith.constant 0 : i32
    %810 = arith.maxsi %809, %c0_i32_242 : i32
    %c1_i32_243 = arith.constant 1 : i32
    %811 = arith.subi %c6_i32, %c1_i32_243 : i32
    %c0_i32_244 = arith.constant 0 : i32
    %812 = arith.maxsi %811, %c0_i32_244 : i32
    %c8_i32_245 = arith.constant 8 : i32
    %813 = arith.subi %c8_i32_245, %c6_i32 : i32
    %c7_i32_246 = arith.constant 7 : i32
    %814 = arith.minsi %813, %c7_i32_246 : i32
    %815 = tpu.concatenate %784, %786, %788, %790 in 1 : vector<1x32xf32>, vector<1x32xf32>, vector<1x32xf32>, vector<1x32xf32> -> vector<1x128xf32>
    %816 = arith.truncf %815 : vector<1x128xf32> to vector<1x128xbf16>
    %cst_247 = arith.constant dense<0.000000e+00> : vector<1x512xf32>
    %817 = tpu.matmul %816, %71, %cst_247 {dimension_numbers = #tpu.dot_dimension_numbers<[1], [0], [0], [1], [0, 0, 1, 1], [], []>} : vector<1x128xbf16>, vector<128x512xbf16>, vector<1x512xf32> -> vector<1x512xf32>
    %818 = vector.extract_strided_slice %817 {offsets = [0, 0], sizes = [1, 128], strides = [1, 1]} : vector<1x512xf32> to vector<1x128xf32>
    %819 = arith.index_cast %808 : i32 to index
    %c0_248 = arith.constant 0 : index
    %c0_249 = arith.constant 0 : index
    %820 = vector.load %arg15[%819, %c0_248, %c0_249] : memref<8x1x128xf32, #tpu.memory_space<vmem>>, vector<1x1x128xf32>
    %821 = vector.shape_cast %820 : vector<1x1x128xf32> to vector<1x128xf32>
    %822 = arith.addf %818, %821 : vector<1x128xf32>
    %823 = arith.negf %822 : vector<1x128xf32>
    %824 = math.exp %823 : vector<1x128xf32>
    %cst_250 = arith.constant 1.000000e+00 : f32
    %825 = vector.broadcast %cst_250 : f32 to vector<1x128xf32>
    %826 = arith.addf %825, %824 : vector<1x128xf32>
    %827 = arith.divf %825, %826 : vector<1x128xf32>
    %828 = vector.extract_strided_slice %827 {offsets = [0, 0], sizes = [1, 32], strides = [1, 1]} : vector<1x128xf32> to vector<1x32xf32>
    %829 = vector.extract_strided_slice %827 {offsets = [0, 32], sizes = [1, 32], strides = [1, 1]} : vector<1x128xf32> to vector<1x32xf32>
    %830 = vector.extract_strided_slice %827 {offsets = [0, 64], sizes = [1, 32], strides = [1, 1]} : vector<1x128xf32> to vector<1x32xf32>
    %cst_251 = arith.constant 2.000000e+00 : f32
    %831 = vector.broadcast %cst_251 : f32 to vector<1x32xf32>
    %832 = arith.mulf %831, %830 : vector<1x32xf32>
    %cst_252 = arith.constant 1.000000e+00 : f32
    %833 = vector.broadcast %cst_252 : f32 to vector<1x32xf32>
    %834 = arith.subf %832, %833 : vector<1x32xf32>
    %835 = vector.extract_strided_slice %827 {offsets = [0, 96], sizes = [1, 32], strides = [1, 1]} : vector<1x128xf32> to vector<1x32xf32>
    %836 = arith.mulf %829, %785 : vector<1x32xf32>
    %837 = arith.mulf %828, %834 : vector<1x32xf32>
    %838 = arith.addf %836, %837 : vector<1x32xf32>
    %839 = math.tanh %838 : vector<1x32xf32>
    %840 = arith.mulf %835, %839 : vector<1x32xf32>
    %841 = vector.extract_strided_slice %817 {offsets = [0, 128], sizes = [1, 128], strides = [1, 1]} : vector<1x512xf32> to vector<1x128xf32>
    %842 = arith.index_cast %810 : i32 to index
    %c0_253 = arith.constant 0 : index
    %c0_254 = arith.constant 0 : index
    %843 = vector.load %arg16[%842, %c0_253, %c0_254] : memref<8x1x128xf32, #tpu.memory_space<vmem>>, vector<1x1x128xf32>
    %844 = vector.shape_cast %843 : vector<1x1x128xf32> to vector<1x128xf32>
    %845 = arith.addf %841, %844 : vector<1x128xf32>
    %846 = arith.negf %845 : vector<1x128xf32>
    %847 = math.exp %846 : vector<1x128xf32>
    %cst_255 = arith.constant 1.000000e+00 : f32
    %848 = vector.broadcast %cst_255 : f32 to vector<1x128xf32>
    %849 = arith.addf %848, %847 : vector<1x128xf32>
    %850 = arith.divf %848, %849 : vector<1x128xf32>
    %851 = vector.extract_strided_slice %850 {offsets = [0, 0], sizes = [1, 32], strides = [1, 1]} : vector<1x128xf32> to vector<1x32xf32>
    %852 = vector.extract_strided_slice %850 {offsets = [0, 32], sizes = [1, 32], strides = [1, 1]} : vector<1x128xf32> to vector<1x32xf32>
    %853 = vector.extract_strided_slice %850 {offsets = [0, 64], sizes = [1, 32], strides = [1, 1]} : vector<1x128xf32> to vector<1x32xf32>
    %cst_256 = arith.constant 2.000000e+00 : f32
    %854 = vector.broadcast %cst_256 : f32 to vector<1x32xf32>
    %855 = arith.mulf %854, %853 : vector<1x32xf32>
    %cst_257 = arith.constant 1.000000e+00 : f32
    %856 = vector.broadcast %cst_257 : f32 to vector<1x32xf32>
    %857 = arith.subf %855, %856 : vector<1x32xf32>
    %858 = vector.extract_strided_slice %850 {offsets = [0, 96], sizes = [1, 32], strides = [1, 1]} : vector<1x128xf32> to vector<1x32xf32>
    %859 = arith.mulf %852, %787 : vector<1x32xf32>
    %860 = arith.mulf %851, %857 : vector<1x32xf32>
    %861 = arith.addf %859, %860 : vector<1x32xf32>
    %862 = math.tanh %861 : vector<1x32xf32>
    %863 = arith.mulf %858, %862 : vector<1x32xf32>
    %864 = vector.extract_strided_slice %817 {offsets = [0, 256], sizes = [1, 128], strides = [1, 1]} : vector<1x512xf32> to vector<1x128xf32>
    %865 = arith.addf %864, %73 : vector<1x128xf32>
    %866 = arith.negf %865 : vector<1x128xf32>
    %867 = math.exp %866 : vector<1x128xf32>
    %cst_258 = arith.constant 1.000000e+00 : f32
    %868 = vector.broadcast %cst_258 : f32 to vector<1x128xf32>
    %869 = arith.addf %868, %867 : vector<1x128xf32>
    %870 = arith.divf %868, %869 : vector<1x128xf32>
    %871 = vector.extract_strided_slice %870 {offsets = [0, 0], sizes = [1, 32], strides = [1, 1]} : vector<1x128xf32> to vector<1x32xf32>
    %872 = vector.extract_strided_slice %870 {offsets = [0, 32], sizes = [1, 32], strides = [1, 1]} : vector<1x128xf32> to vector<1x32xf32>
    %873 = vector.extract_strided_slice %870 {offsets = [0, 64], sizes = [1, 32], strides = [1, 1]} : vector<1x128xf32> to vector<1x32xf32>
    %cst_259 = arith.constant 2.000000e+00 : f32
    %874 = vector.broadcast %cst_259 : f32 to vector<1x32xf32>
    %875 = arith.mulf %874, %873 : vector<1x32xf32>
    %cst_260 = arith.constant 1.000000e+00 : f32
    %876 = vector.broadcast %cst_260 : f32 to vector<1x32xf32>
    %877 = arith.subf %875, %876 : vector<1x32xf32>
    %878 = vector.extract_strided_slice %870 {offsets = [0, 96], sizes = [1, 32], strides = [1, 1]} : vector<1x128xf32> to vector<1x32xf32>
    %879 = arith.mulf %872, %789 : vector<1x32xf32>
    %880 = arith.mulf %871, %877 : vector<1x32xf32>
    %881 = arith.addf %879, %880 : vector<1x32xf32>
    %882 = math.tanh %881 : vector<1x32xf32>
    %883 = arith.mulf %878, %882 : vector<1x32xf32>
    %884 = vector.extract_strided_slice %817 {offsets = [0, 384], sizes = [1, 128], strides = [1, 1]} : vector<1x512xf32> to vector<1x128xf32>
    %885 = arith.addf %884, %74 : vector<1x128xf32>
    %886 = arith.negf %885 : vector<1x128xf32>
    %887 = math.exp %886 : vector<1x128xf32>
    %cst_261 = arith.constant 1.000000e+00 : f32
    %888 = vector.broadcast %cst_261 : f32 to vector<1x128xf32>
    %889 = arith.addf %888, %887 : vector<1x128xf32>
    %890 = arith.divf %888, %889 : vector<1x128xf32>
    %891 = vector.extract_strided_slice %890 {offsets = [0, 0], sizes = [1, 32], strides = [1, 1]} : vector<1x128xf32> to vector<1x32xf32>
    %892 = vector.extract_strided_slice %890 {offsets = [0, 32], sizes = [1, 32], strides = [1, 1]} : vector<1x128xf32> to vector<1x32xf32>
    %893 = vector.extract_strided_slice %890 {offsets = [0, 64], sizes = [1, 32], strides = [1, 1]} : vector<1x128xf32> to vector<1x32xf32>
    %cst_262 = arith.constant 2.000000e+00 : f32
    %894 = vector.broadcast %cst_262 : f32 to vector<1x32xf32>
    %895 = arith.mulf %894, %893 : vector<1x32xf32>
    %cst_263 = arith.constant 1.000000e+00 : f32
    %896 = vector.broadcast %cst_263 : f32 to vector<1x32xf32>
    %897 = arith.subf %895, %896 : vector<1x32xf32>
    %898 = vector.extract_strided_slice %890 {offsets = [0, 96], sizes = [1, 32], strides = [1, 1]} : vector<1x128xf32> to vector<1x32xf32>
    %899 = arith.mulf %892, %791 : vector<1x32xf32>
    %900 = arith.mulf %891, %897 : vector<1x32xf32>
    %901 = arith.addf %899, %900 : vector<1x32xf32>
    %902 = math.tanh %901 : vector<1x32xf32>
    %903 = arith.mulf %898, %902 : vector<1x32xf32>
    %c8_i32_264 = arith.constant 8 : i32
    %904 = arith.cmpi slt, %c6_i32, %c8_i32_264 : i32
    %c1_i32_265 = arith.constant 1 : i32
    %905 = arith.cmpi sge, %c6_i32, %c1_i32_265 : i32
    %906 = arith.select %904, %840, %784 : vector<1x32xf32>
    %907 = arith.select %904, %838, %785 : vector<1x32xf32>
    %908 = arith.select %904, %863, %786 : vector<1x32xf32>
    %909 = arith.select %904, %861, %787 : vector<1x32xf32>
    %910 = arith.select %905, %883, %788 : vector<1x32xf32>
    %911 = arith.select %905, %881, %789 : vector<1x32xf32>
    %912 = arith.select %905, %903, %790 : vector<1x32xf32>
    %913 = arith.select %905, %901, %791 : vector<1x32xf32>
    %914 = arith.index_cast %808 : i32 to index
    %c0_266 = arith.constant 0 : index
    %c0_267 = arith.constant 0 : index
    %915 = vector.load %arg17[%914, %c0_266, %c0_267] : memref<8x1x32xf32, #tpu.memory_space<vmem>>, vector<1x1x32xf32>
    %916 = vector.shape_cast %915 : vector<1x1x32xf32> to vector<1x32xf32>
    %917 = vector.shape_cast %906 : vector<1x32xf32> to vector<1x1x32xf32>
    tpu.vector_store %arg17[%914, %c0_266, %c0_267], %917 {strides = array<i32>} : memref<8x1x32xf32, #tpu.memory_space<vmem>>, vector<1x1x32xf32>,
    %918 = arith.index_cast %810 : i32 to index
    %c0_268 = arith.constant 0 : index
    %c0_269 = arith.constant 0 : index
    %919 = vector.load %arg18[%918, %c0_268, %c0_269] : memref<8x1x32xf32, #tpu.memory_space<vmem>>, vector<1x1x32xf32>
    %920 = vector.shape_cast %919 : vector<1x1x32xf32> to vector<1x32xf32>
    %921 = vector.shape_cast %908 : vector<1x32xf32> to vector<1x1x32xf32>
    tpu.vector_store %arg18[%918, %c0_268, %c0_269], %921 {strides = array<i32>} : memref<8x1x32xf32, #tpu.memory_space<vmem>>, vector<1x1x32xf32>,
    %922 = arith.index_cast %812 : i32 to index
    %c0_270 = arith.constant 0 : index
    %c0_271 = arith.constant 0 : index
    %923 = vector.load %arg19[%922, %c0_270, %c0_271] : memref<8x1x32xf32, #tpu.memory_space<vmem>>, vector<1x1x32xf32>
    %924 = vector.shape_cast %923 : vector<1x1x32xf32> to vector<1x32xf32>
    %925 = vector.shape_cast %910 : vector<1x32xf32> to vector<1x1x32xf32>
    tpu.vector_store %arg19[%922, %c0_270, %c0_271], %925 {strides = array<i32>} : memref<8x1x32xf32, #tpu.memory_space<vmem>>, vector<1x1x32xf32>,
    %926 = arith.index_cast %814 : i32 to index
    %c0_272 = arith.constant 0 : index
    %c0_273 = arith.constant 0 : index
    %927 = vector.load %arg20[%926, %c0_272, %c0_273] : memref<8x1x32xf32, #tpu.memory_space<vmem>>, vector<1x1x32xf32>
    %928 = vector.shape_cast %927 : vector<1x1x32xf32> to vector<1x32xf32>
    %929 = vector.shape_cast %912 : vector<1x32xf32> to vector<1x1x32xf32>
    tpu.vector_store %arg20[%926, %c0_272, %c0_273], %929 {strides = array<i32>} : memref<8x1x32xf32, #tpu.memory_space<vmem>>, vector<1x1x32xf32>,
    %c7_i32_274 = arith.constant 7 : i32
    %c7_i32_275 = arith.constant 7 : i32
    %930 = arith.minsi %c7_i32_274, %c7_i32_275 : i32
    %c7_i32_276 = arith.constant 7 : i32
    %931 = arith.subi %c7_i32_276, %c7_i32_274 : i32
    %c0_i32_277 = arith.constant 0 : i32
    %932 = arith.maxsi %931, %c0_i32_277 : i32
    %c1_i32_278 = arith.constant 1 : i32
    %933 = arith.subi %c7_i32_274, %c1_i32_278 : i32
    %c0_i32_279 = arith.constant 0 : i32
    %934 = arith.maxsi %933, %c0_i32_279 : i32
    %c8_i32_280 = arith.constant 8 : i32
    %935 = arith.subi %c8_i32_280, %c7_i32_274 : i32
    %c7_i32_281 = arith.constant 7 : i32
    %936 = arith.minsi %935, %c7_i32_281 : i32
    %937 = tpu.concatenate %906, %908, %910, %912 in 1 : vector<1x32xf32>, vector<1x32xf32>, vector<1x32xf32>, vector<1x32xf32> -> vector<1x128xf32>
    %938 = arith.truncf %937 : vector<1x128xf32> to vector<1x128xbf16>
    %cst_282 = arith.constant dense<0.000000e+00> : vector<1x512xf32>
    %939 = tpu.matmul %938, %71, %cst_282 {dimension_numbers = #tpu.dot_dimension_numbers<[1], [0], [0], [1], [0, 0, 1, 1], [], []>} : vector<1x128xbf16>, vector<128x512xbf16>, vector<1x512xf32> -> vector<1x512xf32>
    %940 = vector.extract_strided_slice %939 {offsets = [0, 0], sizes = [1, 128], strides = [1, 1]} : vector<1x512xf32> to vector<1x128xf32>
    %941 = arith.index_cast %930 : i32 to index
    %c0_283 = arith.constant 0 : index
    %c0_284 = arith.constant 0 : index
    %942 = vector.load %arg15[%941, %c0_283, %c0_284] : memref<8x1x128xf32, #tpu.memory_space<vmem>>, vector<1x1x128xf32>
    %943 = vector.shape_cast %942 : vector<1x1x128xf32> to vector<1x128xf32>
    %944 = arith.addf %940, %943 : vector<1x128xf32>
    %945 = arith.negf %944 : vector<1x128xf32>
    %946 = math.exp %945 : vector<1x128xf32>
    %cst_285 = arith.constant 1.000000e+00 : f32
    %947 = vector.broadcast %cst_285 : f32 to vector<1x128xf32>
    %948 = arith.addf %947, %946 : vector<1x128xf32>
    %949 = arith.divf %947, %948 : vector<1x128xf32>
    %950 = vector.extract_strided_slice %949 {offsets = [0, 0], sizes = [1, 32], strides = [1, 1]} : vector<1x128xf32> to vector<1x32xf32>
    %951 = vector.extract_strided_slice %949 {offsets = [0, 32], sizes = [1, 32], strides = [1, 1]} : vector<1x128xf32> to vector<1x32xf32>
    %952 = vector.extract_strided_slice %949 {offsets = [0, 64], sizes = [1, 32], strides = [1, 1]} : vector<1x128xf32> to vector<1x32xf32>
    %cst_286 = arith.constant 2.000000e+00 : f32
    %953 = vector.broadcast %cst_286 : f32 to vector<1x32xf32>
    %954 = arith.mulf %953, %952 : vector<1x32xf32>
    %cst_287 = arith.constant 1.000000e+00 : f32
    %955 = vector.broadcast %cst_287 : f32 to vector<1x32xf32>
    %956 = arith.subf %954, %955 : vector<1x32xf32>
    %957 = vector.extract_strided_slice %949 {offsets = [0, 96], sizes = [1, 32], strides = [1, 1]} : vector<1x128xf32> to vector<1x32xf32>
    %958 = arith.mulf %951, %907 : vector<1x32xf32>
    %959 = arith.mulf %950, %956 : vector<1x32xf32>
    %960 = arith.addf %958, %959 : vector<1x32xf32>
    %961 = math.tanh %960 : vector<1x32xf32>
    %962 = arith.mulf %957, %961 : vector<1x32xf32>
    %963 = vector.extract_strided_slice %939 {offsets = [0, 128], sizes = [1, 128], strides = [1, 1]} : vector<1x512xf32> to vector<1x128xf32>
    %964 = arith.index_cast %932 : i32 to index
    %c0_288 = arith.constant 0 : index
    %c0_289 = arith.constant 0 : index
    %965 = vector.load %arg16[%964, %c0_288, %c0_289] : memref<8x1x128xf32, #tpu.memory_space<vmem>>, vector<1x1x128xf32>
    %966 = vector.shape_cast %965 : vector<1x1x128xf32> to vector<1x128xf32>
    %967 = arith.addf %963, %966 : vector<1x128xf32>
    %968 = arith.negf %967 : vector<1x128xf32>
    %969 = math.exp %968 : vector<1x128xf32>
    %cst_290 = arith.constant 1.000000e+00 : f32
    %970 = vector.broadcast %cst_290 : f32 to vector<1x128xf32>
    %971 = arith.addf %970, %969 : vector<1x128xf32>
    %972 = arith.divf %970, %971 : vector<1x128xf32>
    %973 = vector.extract_strided_slice %972 {offsets = [0, 0], sizes = [1, 32], strides = [1, 1]} : vector<1x128xf32> to vector<1x32xf32>
    %974 = vector.extract_strided_slice %972 {offsets = [0, 32], sizes = [1, 32], strides = [1, 1]} : vector<1x128xf32> to vector<1x32xf32>
    %975 = vector.extract_strided_slice %972 {offsets = [0, 64], sizes = [1, 32], strides = [1, 1]} : vector<1x128xf32> to vector<1x32xf32>
    %cst_291 = arith.constant 2.000000e+00 : f32
    %976 = vector.broadcast %cst_291 : f32 to vector<1x32xf32>
    %977 = arith.mulf %976, %975 : vector<1x32xf32>
    %cst_292 = arith.constant 1.000000e+00 : f32
    %978 = vector.broadcast %cst_292 : f32 to vector<1x32xf32>
    %979 = arith.subf %977, %978 : vector<1x32xf32>
    %980 = vector.extract_strided_slice %972 {offsets = [0, 96], sizes = [1, 32], strides = [1, 1]} : vector<1x128xf32> to vector<1x32xf32>
    %981 = arith.mulf %974, %909 : vector<1x32xf32>
    %982 = arith.mulf %973, %979 : vector<1x32xf32>
    %983 = arith.addf %981, %982 : vector<1x32xf32>
    %984 = math.tanh %983 : vector<1x32xf32>
    %985 = arith.mulf %980, %984 : vector<1x32xf32>
    %986 = vector.extract_strided_slice %939 {offsets = [0, 256], sizes = [1, 128], strides = [1, 1]} : vector<1x512xf32> to vector<1x128xf32>
    %987 = arith.addf %986, %73 : vector<1x128xf32>
    %988 = arith.negf %987 : vector<1x128xf32>
    %989 = math.exp %988 : vector<1x128xf32>
    %cst_293 = arith.constant 1.000000e+00 : f32
    %990 = vector.broadcast %cst_293 : f32 to vector<1x128xf32>
    %991 = arith.addf %990, %989 : vector<1x128xf32>
    %992 = arith.divf %990, %991 : vector<1x128xf32>
    %993 = vector.extract_strided_slice %992 {offsets = [0, 0], sizes = [1, 32], strides = [1, 1]} : vector<1x128xf32> to vector<1x32xf32>
    %994 = vector.extract_strided_slice %992 {offsets = [0, 32], sizes = [1, 32], strides = [1, 1]} : vector<1x128xf32> to vector<1x32xf32>
    %995 = vector.extract_strided_slice %992 {offsets = [0, 64], sizes = [1, 32], strides = [1, 1]} : vector<1x128xf32> to vector<1x32xf32>
    %cst_294 = arith.constant 2.000000e+00 : f32
    %996 = vector.broadcast %cst_294 : f32 to vector<1x32xf32>
    %997 = arith.mulf %996, %995 : vector<1x32xf32>
    %cst_295 = arith.constant 1.000000e+00 : f32
    %998 = vector.broadcast %cst_295 : f32 to vector<1x32xf32>
    %999 = arith.subf %997, %998 : vector<1x32xf32>
    %1000 = vector.extract_strided_slice %992 {offsets = [0, 96], sizes = [1, 32], strides = [1, 1]} : vector<1x128xf32> to vector<1x32xf32>
    %1001 = arith.mulf %994, %911 : vector<1x32xf32>
    %1002 = arith.mulf %993, %999 : vector<1x32xf32>
    %1003 = arith.addf %1001, %1002 : vector<1x32xf32>
    %1004 = math.tanh %1003 : vector<1x32xf32>
    %1005 = arith.mulf %1000, %1004 : vector<1x32xf32>
    %1006 = vector.extract_strided_slice %939 {offsets = [0, 384], sizes = [1, 128], strides = [1, 1]} : vector<1x512xf32> to vector<1x128xf32>
    %1007 = arith.addf %1006, %74 : vector<1x128xf32>
    %1008 = arith.negf %1007 : vector<1x128xf32>
    %1009 = math.exp %1008 : vector<1x128xf32>
    %cst_296 = arith.constant 1.000000e+00 : f32
    %1010 = vector.broadcast %cst_296 : f32 to vector<1x128xf32>
    %1011 = arith.addf %1010, %1009 : vector<1x128xf32>
    %1012 = arith.divf %1010, %1011 : vector<1x128xf32>
    %1013 = vector.extract_strided_slice %1012 {offsets = [0, 0], sizes = [1, 32], strides = [1, 1]} : vector<1x128xf32> to vector<1x32xf32>
    %1014 = vector.extract_strided_slice %1012 {offsets = [0, 32], sizes = [1, 32], strides = [1, 1]} : vector<1x128xf32> to vector<1x32xf32>
    %1015 = vector.extract_strided_slice %1012 {offsets = [0, 64], sizes = [1, 32], strides = [1, 1]} : vector<1x128xf32> to vector<1x32xf32>
    %cst_297 = arith.constant 2.000000e+00 : f32
    %1016 = vector.broadcast %cst_297 : f32 to vector<1x32xf32>
    %1017 = arith.mulf %1016, %1015 : vector<1x32xf32>
    %cst_298 = arith.constant 1.000000e+00 : f32
    %1018 = vector.broadcast %cst_298 : f32 to vector<1x32xf32>
    %1019 = arith.subf %1017, %1018 : vector<1x32xf32>
    %1020 = vector.extract_strided_slice %1012 {offsets = [0, 96], sizes = [1, 32], strides = [1, 1]} : vector<1x128xf32> to vector<1x32xf32>
    %1021 = arith.mulf %1014, %913 : vector<1x32xf32>
    %1022 = arith.mulf %1013, %1019 : vector<1x32xf32>
    %1023 = arith.addf %1021, %1022 : vector<1x32xf32>
    %1024 = math.tanh %1023 : vector<1x32xf32>
    %1025 = arith.mulf %1020, %1024 : vector<1x32xf32>
    %c8_i32_299 = arith.constant 8 : i32
    %1026 = arith.cmpi slt, %c7_i32_274, %c8_i32_299 : i32
    %c1_i32_300 = arith.constant 1 : i32
    %1027 = arith.cmpi sge, %c7_i32_274, %c1_i32_300 : i32
    %1028 = arith.select %1026, %962, %906 : vector<1x32xf32>
    %1029 = arith.select %1026, %960, %907 : vector<1x32xf32>
    %1030 = arith.select %1026, %985, %908 : vector<1x32xf32>
    %1031 = arith.select %1026, %983, %909 : vector<1x32xf32>
    %1032 = arith.select %1027, %1005, %910 : vector<1x32xf32>
    %1033 = arith.select %1027, %1003, %911 : vector<1x32xf32>
    %1034 = arith.select %1027, %1025, %912 : vector<1x32xf32>
    %1035 = arith.select %1027, %1023, %913 : vector<1x32xf32>
    %1036 = arith.index_cast %930 : i32 to index
    %c0_301 = arith.constant 0 : index
    %c0_302 = arith.constant 0 : index
    %1037 = vector.load %arg17[%1036, %c0_301, %c0_302] : memref<8x1x32xf32, #tpu.memory_space<vmem>>, vector<1x1x32xf32>
    %1038 = vector.shape_cast %1037 : vector<1x1x32xf32> to vector<1x32xf32>
    %1039 = vector.shape_cast %1028 : vector<1x32xf32> to vector<1x1x32xf32>
    tpu.vector_store %arg17[%1036, %c0_301, %c0_302], %1039 {strides = array<i32>} : memref<8x1x32xf32, #tpu.memory_space<vmem>>, vector<1x1x32xf32>,
    %1040 = arith.index_cast %932 : i32 to index
    %c0_303 = arith.constant 0 : index
    %c0_304 = arith.constant 0 : index
    %1041 = vector.load %arg18[%1040, %c0_303, %c0_304] : memref<8x1x32xf32, #tpu.memory_space<vmem>>, vector<1x1x32xf32>
    %1042 = vector.shape_cast %1041 : vector<1x1x32xf32> to vector<1x32xf32>
    %1043 = vector.shape_cast %1030 : vector<1x32xf32> to vector<1x1x32xf32>
    tpu.vector_store %arg18[%1040, %c0_303, %c0_304], %1043 {strides = array<i32>} : memref<8x1x32xf32, #tpu.memory_space<vmem>>, vector<1x1x32xf32>,
    %1044 = arith.index_cast %934 : i32 to index
    %c0_305 = arith.constant 0 : index
    %c0_306 = arith.constant 0 : index
    %1045 = vector.load %arg19[%1044, %c0_305, %c0_306] : memref<8x1x32xf32, #tpu.memory_space<vmem>>, vector<1x1x32xf32>
    %1046 = vector.shape_cast %1045 : vector<1x1x32xf32> to vector<1x32xf32>
    %1047 = vector.shape_cast %1032 : vector<1x32xf32> to vector<1x1x32xf32>
    tpu.vector_store %arg19[%1044, %c0_305, %c0_306], %1047 {strides = array<i32>} : memref<8x1x32xf32, #tpu.memory_space<vmem>>, vector<1x1x32xf32>,
    %1048 = arith.index_cast %936 : i32 to index
    %c0_307 = arith.constant 0 : index
    %c0_308 = arith.constant 0 : index
    %1049 = vector.load %arg20[%1048, %c0_307, %c0_308] : memref<8x1x32xf32, #tpu.memory_space<vmem>>, vector<1x1x32xf32>
    %1050 = vector.shape_cast %1049 : vector<1x1x32xf32> to vector<1x32xf32>
    %1051 = vector.shape_cast %1034 : vector<1x32xf32> to vector<1x1x32xf32>
    tpu.vector_store %arg20[%1048, %c0_307, %c0_308], %1051 {strides = array<i32>} : memref<8x1x32xf32, #tpu.memory_space<vmem>>, vector<1x1x32xf32>,
    %c8_i32_309 = arith.constant 8 : i32
    %c7_i32_310 = arith.constant 7 : i32
    %1052 = arith.minsi %c8_i32_309, %c7_i32_310 : i32
    %c7_i32_311 = arith.constant 7 : i32
    %1053 = arith.subi %c7_i32_311, %c8_i32_309 : i32
    %c0_i32_312 = arith.constant 0 : i32
    %1054 = arith.maxsi %1053, %c0_i32_312 : i32
    %c1_i32_313 = arith.constant 1 : i32
    %1055 = arith.subi %c8_i32_309, %c1_i32_313 : i32
    %c0_i32_314 = arith.constant 0 : i32
    %1056 = arith.maxsi %1055, %c0_i32_314 : i32
    %c8_i32_315 = arith.constant 8 : i32
    %1057 = arith.subi %c8_i32_315, %c8_i32_309 : i32
    %c7_i32_316 = arith.constant 7 : i32
    %1058 = arith.minsi %1057, %c7_i32_316 : i32
    %1059 = tpu.concatenate %1028, %1030, %1032, %1034 in 1 : vector<1x32xf32>, vector<1x32xf32>, vector<1x32xf32>, vector<1x32xf32> -> vector<1x128xf32>
    %1060 = arith.truncf %1059 : vector<1x128xf32> to vector<1x128xbf16>
    %cst_317 = arith.constant dense<0.000000e+00> : vector<1x512xf32>
    %1061 = tpu.matmul %1060, %71, %cst_317 {dimension_numbers = #tpu.dot_dimension_numbers<[1], [0], [0], [1], [0, 0, 1, 1], [], []>} : vector<1x128xbf16>, vector<128x512xbf16>, vector<1x512xf32> -> vector<1x512xf32>
    %1062 = vector.extract_strided_slice %1061 {offsets = [0, 0], sizes = [1, 128], strides = [1, 1]} : vector<1x512xf32> to vector<1x128xf32>
    %1063 = arith.index_cast %1052 : i32 to index
    %c0_318 = arith.constant 0 : index
    %c0_319 = arith.constant 0 : index
    %1064 = vector.load %arg15[%1063, %c0_318, %c0_319] : memref<8x1x128xf32, #tpu.memory_space<vmem>>, vector<1x1x128xf32>
    %1065 = vector.shape_cast %1064 : vector<1x1x128xf32> to vector<1x128xf32>
    %1066 = arith.addf %1062, %1065 : vector<1x128xf32>
    %1067 = arith.negf %1066 : vector<1x128xf32>
    %1068 = math.exp %1067 : vector<1x128xf32>
    %cst_320 = arith.constant 1.000000e+00 : f32
    %1069 = vector.broadcast %cst_320 : f32 to vector<1x128xf32>
    %1070 = arith.addf %1069, %1068 : vector<1x128xf32>
    %1071 = arith.divf %1069, %1070 : vector<1x128xf32>
    %1072 = vector.extract_strided_slice %1071 {offsets = [0, 0], sizes = [1, 32], strides = [1, 1]} : vector<1x128xf32> to vector<1x32xf32>
    %1073 = vector.extract_strided_slice %1071 {offsets = [0, 32], sizes = [1, 32], strides = [1, 1]} : vector<1x128xf32> to vector<1x32xf32>
    %1074 = vector.extract_strided_slice %1071 {offsets = [0, 64], sizes = [1, 32], strides = [1, 1]} : vector<1x128xf32> to vector<1x32xf32>
    %cst_321 = arith.constant 2.000000e+00 : f32
    %1075 = vector.broadcast %cst_321 : f32 to vector<1x32xf32>
    %1076 = arith.mulf %1075, %1074 : vector<1x32xf32>
    %cst_322 = arith.constant 1.000000e+00 : f32
    %1077 = vector.broadcast %cst_322 : f32 to vector<1x32xf32>
    %1078 = arith.subf %1076, %1077 : vector<1x32xf32>
    %1079 = vector.extract_strided_slice %1071 {offsets = [0, 96], sizes = [1, 32], strides = [1, 1]} : vector<1x128xf32> to vector<1x32xf32>
    %1080 = arith.mulf %1073, %1029 : vector<1x32xf32>
    %1081 = arith.mulf %1072, %1078 : vector<1x32xf32>
    %1082 = arith.addf %1080, %1081 : vector<1x32xf32>
    %1083 = math.tanh %1082 : vector<1x32xf32>
    %1084 = arith.mulf %1079, %1083 : vector<1x32xf32>
    %1085 = vector.extract_strided_slice %1061 {offsets = [0, 128], sizes = [1, 128], strides = [1, 1]} : vector<1x512xf32> to vector<1x128xf32>
    %1086 = arith.index_cast %1054 : i32 to index
    %c0_323 = arith.constant 0 : index
    %c0_324 = arith.constant 0 : index
    %1087 = vector.load %arg16[%1086, %c0_323, %c0_324] : memref<8x1x128xf32, #tpu.memory_space<vmem>>, vector<1x1x128xf32>
    %1088 = vector.shape_cast %1087 : vector<1x1x128xf32> to vector<1x128xf32>
    %1089 = arith.addf %1085, %1088 : vector<1x128xf32>
    %1090 = arith.negf %1089 : vector<1x128xf32>
    %1091 = math.exp %1090 : vector<1x128xf32>
    %cst_325 = arith.constant 1.000000e+00 : f32
    %1092 = vector.broadcast %cst_325 : f32 to vector<1x128xf32>
    %1093 = arith.addf %1092, %1091 : vector<1x128xf32>
    %1094 = arith.divf %1092, %1093 : vector<1x128xf32>
    %1095 = vector.extract_strided_slice %1094 {offsets = [0, 0], sizes = [1, 32], strides = [1, 1]} : vector<1x128xf32> to vector<1x32xf32>
    %1096 = vector.extract_strided_slice %1094 {offsets = [0, 32], sizes = [1, 32], strides = [1, 1]} : vector<1x128xf32> to vector<1x32xf32>
    %1097 = vector.extract_strided_slice %1094 {offsets = [0, 64], sizes = [1, 32], strides = [1, 1]} : vector<1x128xf32> to vector<1x32xf32>
    %cst_326 = arith.constant 2.000000e+00 : f32
    %1098 = vector.broadcast %cst_326 : f32 to vector<1x32xf32>
    %1099 = arith.mulf %1098, %1097 : vector<1x32xf32>
    %cst_327 = arith.constant 1.000000e+00 : f32
    %1100 = vector.broadcast %cst_327 : f32 to vector<1x32xf32>
    %1101 = arith.subf %1099, %1100 : vector<1x32xf32>
    %1102 = vector.extract_strided_slice %1094 {offsets = [0, 96], sizes = [1, 32], strides = [1, 1]} : vector<1x128xf32> to vector<1x32xf32>
    %1103 = arith.mulf %1096, %1031 : vector<1x32xf32>
    %1104 = arith.mulf %1095, %1101 : vector<1x32xf32>
    %1105 = arith.addf %1103, %1104 : vector<1x32xf32>
    %1106 = math.tanh %1105 : vector<1x32xf32>
    %1107 = arith.mulf %1102, %1106 : vector<1x32xf32>
    %1108 = vector.extract_strided_slice %1061 {offsets = [0, 256], sizes = [1, 128], strides = [1, 1]} : vector<1x512xf32> to vector<1x128xf32>
    %1109 = arith.addf %1108, %73 : vector<1x128xf32>
    %1110 = arith.negf %1109 : vector<1x128xf32>
    %1111 = math.exp %1110 : vector<1x128xf32>
    %cst_328 = arith.constant 1.000000e+00 : f32
    %1112 = vector.broadcast %cst_328 : f32 to vector<1x128xf32>
    %1113 = arith.addf %1112, %1111 : vector<1x128xf32>
    %1114 = arith.divf %1112, %1113 : vector<1x128xf32>
    %1115 = vector.extract_strided_slice %1114 {offsets = [0, 0], sizes = [1, 32], strides = [1, 1]} : vector<1x128xf32> to vector<1x32xf32>
    %1116 = vector.extract_strided_slice %1114 {offsets = [0, 32], sizes = [1, 32], strides = [1, 1]} : vector<1x128xf32> to vector<1x32xf32>
    %1117 = vector.extract_strided_slice %1114 {offsets = [0, 64], sizes = [1, 32], strides = [1, 1]} : vector<1x128xf32> to vector<1x32xf32>
    %cst_329 = arith.constant 2.000000e+00 : f32
    %1118 = vector.broadcast %cst_329 : f32 to vector<1x32xf32>
    %1119 = arith.mulf %1118, %1117 : vector<1x32xf32>
    %cst_330 = arith.constant 1.000000e+00 : f32
    %1120 = vector.broadcast %cst_330 : f32 to vector<1x32xf32>
    %1121 = arith.subf %1119, %1120 : vector<1x32xf32>
    %1122 = vector.extract_strided_slice %1114 {offsets = [0, 96], sizes = [1, 32], strides = [1, 1]} : vector<1x128xf32> to vector<1x32xf32>
    %1123 = arith.mulf %1116, %1033 : vector<1x32xf32>
    %1124 = arith.mulf %1115, %1121 : vector<1x32xf32>
    %1125 = arith.addf %1123, %1124 : vector<1x32xf32>
    %1126 = math.tanh %1125 : vector<1x32xf32>
    %1127 = arith.mulf %1122, %1126 : vector<1x32xf32>
    %1128 = vector.extract_strided_slice %1061 {offsets = [0, 384], sizes = [1, 128], strides = [1, 1]} : vector<1x512xf32> to vector<1x128xf32>
    %1129 = arith.addf %1128, %74 : vector<1x128xf32>
    %1130 = arith.negf %1129 : vector<1x128xf32>
    %1131 = math.exp %1130 : vector<1x128xf32>
    %cst_331 = arith.constant 1.000000e+00 : f32
    %1132 = vector.broadcast %cst_331 : f32 to vector<1x128xf32>
    %1133 = arith.addf %1132, %1131 : vector<1x128xf32>
    %1134 = arith.divf %1132, %1133 : vector<1x128xf32>
    %1135 = vector.extract_strided_slice %1134 {offsets = [0, 0], sizes = [1, 32], strides = [1, 1]} : vector<1x128xf32> to vector<1x32xf32>
    %1136 = vector.extract_strided_slice %1134 {offsets = [0, 32], sizes = [1, 32], strides = [1, 1]} : vector<1x128xf32> to vector<1x32xf32>
    %1137 = vector.extract_strided_slice %1134 {offsets = [0, 64], sizes = [1, 32], strides = [1, 1]} : vector<1x128xf32> to vector<1x32xf32>
    %cst_332 = arith.constant 2.000000e+00 : f32
    %1138 = vector.broadcast %cst_332 : f32 to vector<1x32xf32>
    %1139 = arith.mulf %1138, %1137 : vector<1x32xf32>
    %cst_333 = arith.constant 1.000000e+00 : f32
    %1140 = vector.broadcast %cst_333 : f32 to vector<1x32xf32>
    %1141 = arith.subf %1139, %1140 : vector<1x32xf32>
    %1142 = vector.extract_strided_slice %1134 {offsets = [0, 96], sizes = [1, 32], strides = [1, 1]} : vector<1x128xf32> to vector<1x32xf32>
    %1143 = arith.mulf %1136, %1035 : vector<1x32xf32>
    %1144 = arith.mulf %1135, %1141 : vector<1x32xf32>
    %1145 = arith.addf %1143, %1144 : vector<1x32xf32>
    %1146 = math.tanh %1145 : vector<1x32xf32>
    %1147 = arith.mulf %1142, %1146 : vector<1x32xf32>
    %c8_i32_334 = arith.constant 8 : i32
    %1148 = arith.cmpi slt, %c8_i32_309, %c8_i32_334 : i32
    %c1_i32_335 = arith.constant 1 : i32
    %1149 = arith.cmpi sge, %c8_i32_309, %c1_i32_335 : i32
    %1150 = arith.select %1148, %1084, %1028 : vector<1x32xf32>
    %1151 = arith.select %1148, %1082, %1029 : vector<1x32xf32>
    %1152 = arith.select %1148, %1107, %1030 : vector<1x32xf32>
    %1153 = arith.select %1148, %1105, %1031 : vector<1x32xf32>
    %1154 = arith.select %1149, %1127, %1032 : vector<1x32xf32>
    %1155 = arith.select %1149, %1125, %1033 : vector<1x32xf32>
    %1156 = arith.select %1149, %1147, %1034 : vector<1x32xf32>
    %1157 = arith.select %1149, %1145, %1035 : vector<1x32xf32>
    %1158 = arith.index_cast %1052 : i32 to index
    %c0_336 = arith.constant 0 : index
    %c0_337 = arith.constant 0 : index
    %1159 = vector.load %arg17[%1158, %c0_336, %c0_337] : memref<8x1x32xf32, #tpu.memory_space<vmem>>, vector<1x1x32xf32>
    %1160 = vector.shape_cast %1159 : vector<1x1x32xf32> to vector<1x32xf32>
    %1161 = vector.shape_cast %1150 : vector<1x32xf32> to vector<1x1x32xf32>
    tpu.vector_store %arg17[%1158, %c0_336, %c0_337], %1161 {strides = array<i32>} : memref<8x1x32xf32, #tpu.memory_space<vmem>>, vector<1x1x32xf32>,
    %1162 = arith.index_cast %1054 : i32 to index
    %c0_338 = arith.constant 0 : index
    %c0_339 = arith.constant 0 : index
    %1163 = vector.load %arg18[%1162, %c0_338, %c0_339] : memref<8x1x32xf32, #tpu.memory_space<vmem>>, vector<1x1x32xf32>
    %1164 = vector.shape_cast %1163 : vector<1x1x32xf32> to vector<1x32xf32>
    %1165 = vector.shape_cast %1152 : vector<1x32xf32> to vector<1x1x32xf32>
    tpu.vector_store %arg18[%1162, %c0_338, %c0_339], %1165 {strides = array<i32>} : memref<8x1x32xf32, #tpu.memory_space<vmem>>, vector<1x1x32xf32>,
    %1166 = arith.index_cast %1056 : i32 to index
    %c0_340 = arith.constant 0 : index
    %c0_341 = arith.constant 0 : index
    %1167 = vector.load %arg19[%1166, %c0_340, %c0_341] : memref<8x1x32xf32, #tpu.memory_space<vmem>>, vector<1x1x32xf32>
    %1168 = vector.shape_cast %1167 : vector<1x1x32xf32> to vector<1x32xf32>
    %1169 = vector.shape_cast %1154 : vector<1x32xf32> to vector<1x1x32xf32>
    tpu.vector_store %arg19[%1166, %c0_340, %c0_341], %1169 {strides = array<i32>} : memref<8x1x32xf32, #tpu.memory_space<vmem>>, vector<1x1x32xf32>,
    %1170 = arith.index_cast %1058 : i32 to index
    %c0_342 = arith.constant 0 : index
    %c0_343 = arith.constant 0 : index
    %1171 = vector.load %arg20[%1170, %c0_342, %c0_343] : memref<8x1x32xf32, #tpu.memory_space<vmem>>, vector<1x1x32xf32>
    %1172 = vector.shape_cast %1171 : vector<1x1x32xf32> to vector<1x32xf32>
    %1173 = vector.shape_cast %1156 : vector<1x32xf32> to vector<1x1x32xf32>
    tpu.vector_store %arg20[%1170, %c0_342, %c0_343], %1173 {strides = array<i32>} : memref<8x1x32xf32, #tpu.memory_space<vmem>>, vector<1x1x32xf32>,
    %c9_i32 = arith.constant 9 : i32
    %c0_344 = arith.constant 0 : index
    %1174 = memref.load %arg13[%c0_344] : memref<3xf32, #tpu.memory_space<smem>>
    %c1 = arith.constant 1 : index
    %1175 = memref.load %arg13[%c1] : memref<3xf32, #tpu.memory_space<smem>>
    %c2 = arith.constant 2 : index
    %1176 = memref.load %arg13[%c2] : memref<3xf32, #tpu.memory_space<smem>>
    %1177 = tpu.concatenate %58, %58 in 2 : vector<8x1x32xf32>, vector<8x1x32xf32> -> vector<8x1x64xf32>
    %c0_345 = arith.constant 0 : index
    %c0_346 = arith.constant 0 : index
    %c0_347 = arith.constant 0 : index
    %1178 = vector.load %arg17[%c0_345, %c0_346, %c0_347] : memref<8x1x32xf32, #tpu.memory_space<vmem>>, vector<8x1x32xf32>
    %c0_348 = arith.constant 0 : index
    %c0_349 = arith.constant 0 : index
    %c0_350 = arith.constant 0 : index
    %1179 = vector.load %arg18[%c0_348, %c0_349, %c0_350] : memref<8x1x32xf32, #tpu.memory_space<vmem>>, vector<8x1x32xf32>
    %1180 = tpu.concatenate %1178, %1179 in 2 : vector<8x1x32xf32>, vector<8x1x32xf32> -> vector<8x1x64xf32>
    %c0_351 = arith.constant 0 : index
    %c0_352 = arith.constant 0 : index
    %c0_353 = arith.constant 0 : index
    %1181 = vector.load %arg19[%c0_351, %c0_352, %c0_353] : memref<8x1x32xf32, #tpu.memory_space<vmem>>, vector<8x1x32xf32>
    %c0_354 = arith.constant 0 : index
    %c0_355 = arith.constant 0 : index
    %c0_356 = arith.constant 0 : index
    %1182 = vector.load %arg20[%c0_354, %c0_355, %c0_356] : memref<8x1x32xf32, #tpu.memory_space<vmem>>, vector<8x1x32xf32>
    %1183 = tpu.concatenate %1181, %1182 in 2 : vector<8x1x32xf32>, vector<8x1x32xf32> -> vector<8x1x64xf32>
    %1184 = vector.broadcast %1174 : f32 to vector<8x1x64xf32>
    %1185 = arith.mulf %1184, %1177 : vector<8x1x64xf32>
    %1186 = vector.broadcast %1175 : f32 to vector<8x1x64xf32>
    %1187 = arith.mulf %1186, %1180 : vector<8x1x64xf32>
    %1188 = arith.addf %1185, %1187 : vector<8x1x64xf32>
    %1189 = vector.broadcast %1176 : f32 to vector<8x1x64xf32>
    %1190 = arith.mulf %1189, %1183 : vector<8x1x64xf32>
    %1191 = arith.addf %1188, %1190 : vector<8x1x64xf32>
    %1192 = vector.shape_cast %1191 : vector<8x1x64xf32> to vector<8x64xf32>
    %c0_357 = arith.constant 0 : index
    %c0_358 = arith.constant 0 : index
    %c0_359 = arith.constant 0 : index
    %1193 = vector.load %arg14[%c0_357, %c0_358, %c0_359] : memref<1x8x64xf32, #tpu.memory_space<vmem>>, vector<1x8x64xf32>
    %1194 = vector.shape_cast %1193 : vector<1x8x64xf32> to vector<8x64xf32>
    %1195 = vector.shape_cast %1192 : vector<8x64xf32> to vector<1x8x64xf32>
    tpu.vector_store %arg14[%c0_357, %c0_358, %c0_359], %1195 {strides = array<i32>} : memref<1x8x64xf32, #tpu.memory_space<vmem>>, vector<1x8x64xf32>,
    return
  }
  func.func @transform_0(%arg0: i32) -> (i32, i32, i32) {
    %c0_i32 = arith.constant 0 : i32
    %c0_i32_0 = arith.constant 0 : i32
    %c0_i32_1 = arith.constant 0 : i32
    return %arg0, %c0_i32, %c0_i32_0 : i32, i32, i32
  }
  func.func @transform_1(%arg0: i32) -> (i32, i32) {
    %c0_i32 = arith.constant 0 : i32
    %c0_i32_0 = arith.constant 0 : i32
    %c0_i32_1 = arith.constant 0 : i32
    return %c0_i32, %c0_i32_0 : i32, i32
  }
  func.func @transform_2(%arg0: i32) -> (i32, i32) {
    %c0_i32 = arith.constant 0 : i32
    %c0_i32_0 = arith.constant 0 : i32
    %c0_i32_1 = arith.constant 0 : i32
    return %c0_i32, %c0_i32_0 : i32, i32
  }
  func.func @transform_3(%arg0: i32) -> (i32, i32) {
    %c0_i32 = arith.constant 0 : i32
    %c0_i32_0 = arith.constant 0 : i32
    %c0_i32_1 = arith.constant 0 : i32
    return %c0_i32, %c0_i32_0 : i32, i32
  }
  func.func @transform_4(%arg0: i32) -> (i32, i32) {
    %c0_i32 = arith.constant 0 : i32
    %c0_i32_0 = arith.constant 0 : i32
    %c0_i32_1 = arith.constant 0 : i32
    return %c0_i32, %c0_i32_0 : i32, i32
  }
  func.func @transform_5(%arg0: i32) -> (i32, i32) {
    %c0_i32 = arith.constant 0 : i32
    %c0_i32_0 = arith.constant 0 : i32
    %c0_i32_1 = arith.constant 0 : i32
    return %c0_i32, %c0_i32_0 : i32, i32
  }
  func.func @transform_6(%arg0: i32) -> (i32, i32) {
    %c0_i32 = arith.constant 0 : i32
    %c0_i32_0 = arith.constant 0 : i32
    %c0_i32_1 = arith.constant 0 : i32
    return %c0_i32, %c0_i32_0 : i32, i32
  }
  func.func @transform_7(%arg0: i32) -> (i32, i32) {
    %c0_i32 = arith.constant 0 : i32
    %c0_i32_0 = arith.constant 0 : i32
    %c0_i32_1 = arith.constant 0 : i32
    return %c0_i32, %c0_i32_0 : i32, i32
  }
  func.func @transform_8(%arg0: i32) -> (i32, i32) {
    %c0_i32 = arith.constant 0 : i32
    %c0_i32_0 = arith.constant 0 : i32
    %c0_i32_1 = arith.constant 0 : i32
    return %c0_i32, %c0_i32_0 : i32, i32
  }
  func.func @transform_9(%arg0: i32) -> (i32, i32) {
    %c0_i32 = arith.constant 0 : i32
    %c0_i32_0 = arith.constant 0 : i32
    %c0_i32_1 = arith.constant 0 : i32
    return %c0_i32, %c0_i32_0 : i32, i32
  }
  func.func @transform_10(%arg0: i32) -> (i32, i32) {
    %c0_i32 = arith.constant 0 : i32
    %c0_i32_0 = arith.constant 0 : i32
    %c0_i32_1 = arith.constant 0 : i32
    return %c0_i32, %c0_i32_0 : i32, i32
  }
  func.func @transform_11(%arg0: i32) -> (i32, i32) {
    %c0_i32 = arith.constant 0 : i32
    %c0_i32_0 = arith.constant 0 : i32
    %c0_i32_1 = arith.constant 0 : i32
    return %c0_i32, %c0_i32_0 : i32, i32
  }
  func.func @transform_12(%arg0: i32) -> i32 {
    %c0_i32 = arith.constant 0 : i32
    %c0_i32_0 = arith.constant 0 : i32
    return %c0_i32 : i32
  }
  func.func @transform_13(%arg0: i32) -> (i32, i32, i32) {
    %c0_i32 = arith.constant 0 : i32
    %c0_i32_0 = arith.constant 0 : i32
    %c0_i32_1 = arith.constant 0 : i32
    return %arg0, %c0_i32, %c0_i32_0 : i32, i32, i32
  }
}

</mosaic_0001>

<llo_original>
// kernel: elmo_forward.1
$region0: #{elmo_forward.1}
  #allocation0 [shape = 'u32[]', space=smem, size = 0x4, offset = 0x4, fixed_abs, tag = 'smem constant byte address 0x4 - core index']
  #allocation1 [shape = 'u32[144,128]{1,0:T(1,128)}', space=vmem, size = 0x12000, scoped, tag = 'internal scratch']
  #allocation2 [shape = 'f32[8,1,128]{2,1,0:T(1,128)}', space=vmem, size = 0x1000, scoped, tag = 'scratch operand']
  #allocation3 [shape = 'f32[8,1,128]{2,1,0:T(1,128)}', space=vmem, size = 0x1000, scoped, tag = 'scratch operand']
  #allocation4 [shape = 'f32[8,1,32]{2,1,0:T(1,128)}', space=vmem, size = 0x1000, scoped, tag = 'scratch operand']
  #allocation5 [shape = 'f32[8,1,32]{2,1,0:T(1,128)}', space=vmem, size = 0x1000, scoped, tag = 'scratch operand']
  #allocation6 [shape = 'f32[8,1,32]{2,1,0:T(1,128)}', space=vmem, size = 0x1000, scoped, tag = 'scratch operand']
  #allocation7 [shape = 'f32[8,1,32]{2,1,0:T(1,128)}', space=vmem, size = 0x1000, scoped, tag = 'scratch operand']
  %s0 = inlined_call_operand.vmem [shape: s32[2,8,16], index: 0, kind: input, shape index: {}]
  %s1 = inlined_call_operand.vmem [shape: bf16[192,32], index: 1, kind: input, shape index: {}]
  %s2 = inlined_call_operand.vmem [shape: f32[1,32], index: 2, kind: input, shape index: {}]
  %s3 = inlined_call_operand.vmem [shape: f32[16,32], index: 3, kind: input, shape index: {}]
  %s4 = inlined_call_operand.vmem [shape: bf16[32,64], index: 4, kind: input, shape index: {}]
  %s5 = inlined_call_operand.vmem [shape: f32[1,64], index: 5, kind: input, shape index: {}]
  %s6 = inlined_call_operand.vmem [shape: bf16[32,32], index: 6, kind: input, shape index: {}]
  %s7 = inlined_call_operand.vmem [shape: f32[1,32], index: 7, kind: input, shape index: {}]
  %s8 = inlined_call_operand.vmem [shape: bf16[32,256], index: 8, kind: input, shape index: {}]
  %s9 = inlined_call_operand.vmem [shape: f32[1,256], index: 9, kind: input, shape index: {}]
  %s10 = inlined_call_operand.hbm [shape: bf16[128,512], index: 10, kind: input, shape index: {}]
  %s11 = inlined_call_operand.vmem [shape: f32[1,256], index: 11, kind: input, shape index: {}]
  %s12 = inlined_call_operand.vmem [shape: f32[3], index: 12, kind: input, shape index: {}]
  %s13 = inlined_call_operand.hbm [shape: f32[2,8,64], index: 13, kind: output, shape index: {}]
  %s14 = sld [smem:[#allocation0]]
  $region93: #{elmo_forward.1} parent=0
    _
  %s16 = ssub.s32 1, %s14
  %s17 = scalar_select 0, %s16, %s14
  $region1: #{elmo_forward.1} parent=0
    #allocation8 [shape = 'u8[131072]{0}', space=vmem, size = 0x20000, scoped, tag = 'input window, operand 10, single buffered']
    #allocation9 [shape = 's32[2]{0}', space=sflag, size = 0x8, scoped, tag = 'scoped memory for elmo_forward.1']
    #allocation10 [shape = 's32[2]{0}', space=sflag, size = 0x8, scoped, tag = 'scoped memory for elmo_forward.1']
    #allocation11 [shape = 's32[2]{0}', space=sflag, size = 0x8, scoped, tag = 'scoped memory for elmo_forward.1']
    #allocation12 [shape = 'u8[512]{0}', space=smem, size = 0x200, scoped, tag = 'input window, operand 12, single buffered']
    #allocation13 [shape = 'u8[8192]{0}', space=vmem, size = 0x2000, scoped, tag = 'output window, operand 0']
    %18 = vsyncpa [#allocation9], 0
    %19 = vsyncpa [#allocation11], 0
    %20 = vsyncpa [#allocation10], 0
    %s21 = scalar_lea.sflag [#allocation10], 1
    %22 = vsyncpa %s21, 0
    loop: start=0, step=1, limit=4
    $region2: #{elmo_forward.1} parent=1 // loop_pre_header
      _
    $region3: #{elmo_forward.1} parent=1 // loop_header
      %s24 = sphi 0, %s28
      %p25 = scmp.ge.s32.totalorder %s24, 4
      %s34 = sphi 0, %s36
      %s37 = sphi 0, %s34
      %s38 = sphi 0, %s37
      %s54 = sphi 0, %s38
      %s58 = sphi 0, %s58
      %s60 = sphi 0, %s58
      %s61 = sphi 0, %s60
      %s75 = sphi 0, %s61
      %s79 = sphi 0, %s79
      %s81 = sphi 0, %s79
      %s82 = sphi 0, %s81
      %s96 = sphi 0, %s82
      %s100 = sphi 0, %s100
      %s102 = sphi 0, %s100
      %s103 = sphi 0, %s102
      %s117 = sphi 0, %s103
      %s121 = sphi 0, %s121
      %s123 = sphi 0, %s121
      %s124 = sphi 0, %s123
      %s138 = sphi 0, %s124
      %s142 = sphi 0, %s142
      %s144 = sphi 0, %s142
      %s145 = sphi 0, %s144
      %s159 = sphi 0, %s145
      %s163 = sphi 0, %s163
      %s165 = sphi 0, %s163
      %s166 = sphi 0, %s165
      %s180 = sphi 0, %s166
      %s184 = sphi 0, %s184
      %s186 = sphi 0, %s184
      %s187 = sphi 0, %s186
      %s201 = sphi 0, %s187
      %s205 = sphi 0, %s205
      %s207 = sphi 0, %s205
      %s208 = sphi 0, %s207
      %s222 = sphi 0, %s208
      %s226 = sphi 0, %s226
      %s228 = sphi 0, %s226
      %s229 = sphi 0, %s228
      %s243 = sphi 0, %s229
      %s247 = sphi 0, %s247
      %s249 = sphi 0, %s247
      %s250 = sphi 0, %s249
      %s264 = sphi 0, %s250
      %s268 = sphi 0, %s268
      %s270 = sphi 0, %s268
      %s271 = sphi 0, %s270
      %s285 = sphi 0, %s271
      %s289 = sphi 0, %s289
      %s291 = sphi 0, %s289
      %s292 = sphi 0, %s291
      %s306 = sphi 0, %s292
      %s312 = sphi 0, %s314
      %s315 = sphi 0, %s312
      %s316 = sphi 0, %s315
      %s332 = sphi 0, %s316
    $region4: #{elmo_forward.1} parent=1 // loop_header_branch
      %27 = sbr.rel (%p25) target = $region8
    $region5: #{elmo_forward.1} parent=1 // loop_body
      %s29 = ssub.s32 %s24, 1
      %s30 = ssub.s32 %s24, 2
      %s31 = sadd.s32 %s24, 1
      %s32 = ssub.s32 %s24, %s31
      %p33 = scmp.eq.s32.totalorder %s32, 0
      %s35 = sadd.s32 %s34, 1
      %s36 = scalar_select %p33, %s34, %s35
      %p39 = pneg %p33
      %p40 = scmp.eq.s32.totalorder %s24, 1
      %p41 = por %p39, %p40
      %p42 = scmp.ne.s32.totalorder %s34, %s37
      %p43 = scmp.eq.s32.totalorder %s24, 0
      %p44 = por %p42, %p43
      %p45 = scmp.ne.s32.totalorder %s34, %s37
      %p46 = scmp.eq.s32.totalorder %s29, 1
      %p47 = por %p45, %p46
      %p48 = scmp.ne.s32.totalorder %s37, %s38
      %p49 = scmp.eq.s32.totalorder %s29, 0
      %p50 = por %p48, %p49
      %p51 = scmp.ne.s32.totalorder %s37, %s38
      %p52 = scmp.eq.s32.totalorder %s30, 1
      %p53 = por %p51, %p52
      %p55 = scmp.ne.s32.totalorder %s38, %s54
      %p56 = scmp.eq.s32.totalorder %s30, 0
      %p57 = por %p55, %p56
      %s59 = sadd.s32 %s58, 1
      %p62 = scmp.eq.s32.totalorder %s24, 1
      %p63 = scmp.ne.s32.totalorder %s58, %s60
      %p64 = scmp.eq.s32.totalorder %s24, 0
      %p65 = por %p63, %p64
      %p66 = scmp.ne.s32.totalorder %s58, %s60
      %p67 = scmp.eq.s32.totalorder %s29, 1
      %p68 = por %p66, %p67
      %p69 = scmp.ne.s32.totalorder %s60, %s61
      %p70 = scmp.eq.s32.totalorder %s29, 0
      %p71 = por %p69, %p70
      %p72 = scmp.ne.s32.totalorder %s60, %s61
      %p73 = scmp.eq.s32.totalorder %s30, 1
      %p74 = por %p72, %p73
      %p76 = scmp.ne.s32.totalorder %s61, %s75
      %p77 = scmp.eq.s32.totalorder %s30, 0
      %p78 = por %p76, %p77
      %s80 = sadd.s32 %s79, 1
      %p83 = scmp.eq.s32.totalorder %s24, 1
      %p84 = scmp.ne.s32.totalorder %s79, %s81
      %p85 = scmp.eq.s32.totalorder %s24, 0
      %p86 = por %p84, %p85
      %p87 = scmp.ne.s32.totalorder %s79, %s81
      %p88 = scmp.eq.s32.totalorder %s29, 1
      %p89 = por %p87, %p88
      %p90 = scmp.ne.s32.totalorder %s81, %s82
      %p91 = scmp.eq.s32.totalorder %s29, 0
      %p92 = por %p90, %p91
      %p93 = scmp.ne.s32.totalorder %s81, %s82
      %p94 = scmp.eq.s32.totalorder %s30, 1
      %p95 = por %p93, %p94
      %p97 = scmp.ne.s32.totalorder %s82, %s96
      %p98 = scmp.eq.s32.totalorder %s30, 0
      %p99 = por %p97, %p98
      %s101 = sadd.s32 %s100, 1
      %p104 = scmp.eq.s32.totalorder %s24, 1
      %p105 = scmp.ne.s32.totalorder %s100, %s102
      %p106 = scmp.eq.s32.totalorder %s24, 0
      %p107 = por %p105, %p106
      %p108 = scmp.ne.s32.totalorder %s100, %s102
      %p109 = scmp.eq.s32.totalorder %s29, 1
      %p110 = por %p108, %p109
      %p111 = scmp.ne.s32.totalorder %s102, %s103
      %p112 = scmp.eq.s32.totalorder %s29, 0
      %p113 = por %p111, %p112
      %p114 = scmp.ne.s32.totalorder %s102, %s103
      %p115 = scmp.eq.s32.totalorder %s30, 1
      %p116 = por %p114, %p115
      %p118 = scmp.ne.s32.totalorder %s103, %s117
      %p119 = scmp.eq.s32.totalorder %s30, 0
      %p120 = por %p118, %p119
      %s122 = sadd.s32 %s121, 1
      %p125 = scmp.eq.s32.totalorder %s24, 1
      %p126 = scmp.ne.s32.totalorder %s121, %s123
      %p127 = scmp.eq.s32.totalorder %s24, 0
      %p128 = por %p126, %p127
      %p129 = scmp.ne.s32.totalorder %s121, %s123
      %p130 = scmp.eq.s32.totalorder %s29, 1
      %p131 = por %p129, %p130
      %p132 = scmp.ne.s32.totalorder %s123, %s124
      %p133 = scmp.eq.s32.totalorder %s29, 0
      %p134 = por %p132, %p133
      %p135 = scmp.ne.s32.totalorder %s123, %s124
      %p136 = scmp.eq.s32.totalorder %s30, 1
      %p137 = por %p135, %p136
      %p139 = scmp.ne.s32.totalorder %s124, %s138
      %p140 = scmp.eq.s32.totalorder %s30, 0
      %p141 = por %p139, %p140
      %s143 = sadd.s32 %s142, 1
      %p146 = scmp.eq.s32.totalorder %s24, 1
      %p147 = scmp.ne.s32.totalorder %s142, %s144
      %p148 = scmp.eq.s32.totalorder %s24, 0
      %p149 = por %p147, %p148
      %p150 = scmp.ne.s32.totalorder %s142, %s144
      %p151 = scmp.eq.s32.totalorder %s29, 1
      %p152 = por %p150, %p151
      %p153 = scmp.ne.s32.totalorder %s144, %s145
      %p154 = scmp.eq.s32.totalorder %s29, 0
      %p155 = por %p153, %p154
      %p156 = scmp.ne.s32.totalorder %s144, %s145
      %p157 = scmp.eq.s32.totalorder %s30, 1
      %p158 = por %p156, %p157
      %p160 = scmp.ne.s32.totalorder %s145, %s159
      %p161 = scmp.eq.s32.totalorder %s30, 0
      %p162 = por %p160, %p161
      %s164 = sadd.s32 %s163, 1
      %p167 = scmp.eq.s32.totalorder %s24, 1
      %p168 = scmp.ne.s32.totalorder %s163, %s165
      %p169 = scmp.eq.s32.totalorder %s24, 0
      %p170 = por %p168, %p169
      %p171 = scmp.ne.s32.totalorder %s163, %s165
      %p172 = scmp.eq.s32.totalorder %s29, 1
      %p173 = por %p171, %p172
      %p174 = scmp.ne.s32.totalorder %s165, %s166
      %p175 = scmp.eq.s32.totalorder %s29, 0
      %p176 = por %p174, %p175
      %p177 = scmp.ne.s32.totalorder %s165, %s166
      %p178 = scmp.eq.s32.totalorder %s30, 1
      %p179 = por %p177, %p178
      %p181 = scmp.ne.s32.totalorder %s166, %s180
      %p182 = scmp.eq.s32.totalorder %s30, 0
      %p183 = por %p181, %p182
      %s185 = sadd.s32 %s184, 1
      %p188 = scmp.eq.s32.totalorder %s24, 1
      %p189 = scmp.ne.s32.totalorder %s184, %s186
      %p190 = scmp.eq.s32.totalorder %s24, 0
      %p191 = por %p189, %p190
      %p192 = scmp.ne.s32.totalorder %s184, %s186
      %p193 = scmp.eq.s32.totalorder %s29, 1
      %p194 = por %p192, %p193
      %p195 = scmp.ne.s32.totalorder %s186, %s187
      %p196 = scmp.eq.s32.totalorder %s29, 0
      %p197 = por %p195, %p196
      %p198 = scmp.ne.s32.totalorder %s186, %s187
      %p199 = scmp.eq.s32.totalorder %s30, 1
      %p200 = por %p198, %p199
      %p202 = scmp.ne.s32.totalorder %s187, %s201
      %p203 = scmp.eq.s32.totalorder %s30, 0
      %p204 = por %p202, %p203
      %s206 = sadd.s32 %s205, 1
      %p209 = scmp.eq.s32.totalorder %s24, 1
      %p210 = scmp.ne.s32.totalorder %s205, %s207
      %p211 = scmp.eq.s32.totalorder %s24, 0
      %p212 = por %p210, %p211
      %p213 = scmp.ne.s32.totalorder %s205, %s207
      %p214 = scmp.eq.s32.totalorder %s29, 1
      %p215 = por %p213, %p214
      %p216 = scmp.ne.s32.totalorder %s207, %s208
      %p217 = scmp.eq.s32.totalorder %s29, 0
      %p218 = por %p216, %p217
      %p219 = scmp.ne.s32.totalorder %s207, %s208
      %p220 = scmp.eq.s32.totalorder %s30, 1
      %p221 = por %p219, %p220
      %p223 = scmp.ne.s32.totalorder %s208, %s222
      %p224 = scmp.eq.s32.totalorder %s30, 0
      %p225 = por %p223, %p224
      %s227 = sadd.s32 %s226, 1
      %p230 = scmp.eq.s32.totalorder %s24, 1
      %p231 = scmp.ne.s32.totalorder %s226, %s228
      %p232 = scmp.eq.s32.totalorder %s24, 0
      %p233 = por %p231, %p232
      %p234 = scmp.ne.s32.totalorder %s226, %s228
      %p235 = scmp.eq.s32.totalorder %s29, 1
      %p236 = por %p234, %p235
      %p237 = scmp.ne.s32.totalorder %s228, %s229
      %p238 = scmp.eq.s32.totalorder %s29, 0
      %p239 = por %p237, %p238
      %p240 = scmp.ne.s32.totalorder %s228, %s229
      %p241 = scmp.eq.s32.totalorder %s30, 1
      %p242 = por %p240, %p241
      %p244 = scmp.ne.s32.totalorder %s229, %s243
      %p245 = scmp.eq.s32.totalorder %s30, 0
      %p246 = por %p244, %p245
      %s248 = sadd.s32 %s247, 1
      %p251 = scmp.eq.s32.totalorder %s24, 1
      %p252 = scmp.ne.s32.totalorder %s247, %s249
      %p253 = scmp.eq.s32.totalorder %s24, 0
      %p254 = por %p252, %p253
      %p255 = scmp.ne.s32.totalorder %s247, %s249
      %p256 = scmp.eq.s32.totalorder %s29, 1
      %p257 = por %p255, %p256
      %p258 = scmp.ne.s32.totalorder %s249, %s250
      %p259 = scmp.eq.s32.totalorder %s29, 0
      %p260 = por %p258, %p259
      %p261 = scmp.ne.s32.totalorder %s249, %s250
      %p262 = scmp.eq.s32.totalorder %s30, 1
      %p263 = por %p261, %p262
      %p265 = scmp.ne.s32.totalorder %s250, %s264
      %p266 = scmp.eq.s32.totalorder %s30, 0
      %p267 = por %p265, %p266
      %s269 = sadd.s32 %s268, 1
      %p272 = scmp.eq.s32.totalorder %s24, 1
      %p273 = scmp.ne.s32.totalorder %s268, %s270
      %p274 = scmp.eq.s32.totalorder %s24, 0
      %p275 = por %p273, %p274
      %p276 = scmp.ne.s32.totalorder %s268, %s270
      %p277 = scmp.eq.s32.totalorder %s29, 1
      %p278 = por %p276, %p277
      %p279 = scmp.ne.s32.totalorder %s270, %s271
      %p280 = scmp.eq.s32.totalorder %s29, 0
      %p281 = por %p279, %p280
      %p282 = scmp.ne.s32.totalorder %s270, %s271
      %p283 = scmp.eq.s32.totalorder %s30, 1
      %p284 = por %p282, %p283
      %p286 = scmp.ne.s32.totalorder %s271, %s285
      %p287 = scmp.eq.s32.totalorder %s30, 0
      %p288 = por %p286, %p287
      %s290 = sadd.s32 %s289, 1
      %p293 = scmp.eq.s32.totalorder %s24, 1
      %p294 = scmp.ne.s32.totalorder %s289, %s291
      %p295 = scmp.eq.s32.totalorder %s24, 0
      %p296 = por %p294, %p295
      %p297 = scmp.ne.s32.totalorder %s289, %s291
      %p298 = scmp.eq.s32.totalorder %s29, 1
      %p299 = por %p297, %p298
      %p300 = scmp.ne.s32.totalorder %s291, %s292
      %p301 = scmp.eq.s32.totalorder %s29, 0
      %p302 = por %p300, %p301
      %p303 = scmp.ne.s32.totalorder %s291, %s292
      %p304 = scmp.eq.s32.totalorder %s30, 1
      %p305 = por %p303, %p304
      %p307 = scmp.ne.s32.totalorder %s292, %s306
      %p308 = scmp.eq.s32.totalorder %s30, 0
      %p309 = por %p307, %p308
      %s310 = ssub.s32 %s24, %s31
      %p311 = scmp.eq.s32.totalorder %s310, 0
      %s313 = sadd.s32 %s312, 1
      %s314 = scalar_select %p311, %s312, %s313
      %p317 = pneg %p311
      %p318 = scmp.eq.s32.totalorder %s24, 1
      %p319 = por %p317, %p318
      %p320 = scmp.ne.s32.totalorder %s312, %s315
      %p321 = scmp.eq.s32.totalorder %s24, 0
      %p322 = por %p320, %p321
      %p323 = scmp.ne.s32.totalorder %s312, %s315
      %p324 = scmp.eq.s32.totalorder %s29, 1
      %p325 = por %p323, %p324
      %p326 = scmp.ne.s32.totalorder %s315, %s316
      %p327 = scmp.eq.s32.totalorder %s29, 0
      %p328 = por %p326, %p327
      %p329 = scmp.ne.s32.totalorder %s315, %s316
      %p330 = scmp.eq.s32.totalorder %s30, 1
      %p331 = por %p329, %p330
      %p333 = scmp.ne.s32.totalorder %s316, %s332
      %p334 = scmp.eq.s32.totalorder %s30, 0
      %p335 = por %p333, %p334
      %p336 = scmp.le.s32.totalorder 1, %s24
      %p337 = scmp.lt.s32.totalorder %s24, 3
      %p338 = pnand %p336, %p337
      %p339 = pneg %p338
      // Predicated region
      $region9: #{elmo_forward.1} parent=5 // pred_check
        _
      $region10: #{elmo_forward.1} parent=5 // pred_check_branch
        %341 = sbr.rel (%p338) target = $region12
      $region11: #{elmo_forward.1} parent=5 // pred_region
        %s342 = ssub.s32 %s24, 1
        // Predicated region
        $region13: #{elmo_forward.1} parent=11 // pred_check
          %p343 = pneg %p71
        $region14: #{elmo_forward.1} parent=11 // pred_check_branch
          %345 = sbr.rel (%p343) target = $region16
        $region15: #{elmo_forward.1} parent=11 // pred_region
          _
        $region16: #{elmo_forward.1} parent=11 // pred_fallthru
          _
        // Predicated region
        $region17: #{elmo_forward.1} parent=11 // pred_check
          %p346 = pneg %p92
        $region18: #{elmo_forward.1} parent=11 // pred_check_branch
          %348 = sbr.rel (%p346) target = $region20
        $region19: #{elmo_forward.1} parent=11 // pred_region
          _
        $region20: #{elmo_forward.1} parent=11 // pred_fallthru
          _
        // Predicated region
        $region21: #{elmo_forward.1} parent=11 // pred_check
          %p349 = pneg %p113
        $region22: #{elmo_forward.1} parent=11 // pred_check_branch
          %351 = sbr.rel (%p349) target = $region24
        $region23: #{elmo_forward.1} parent=11 // pred_region
          _
        $region24: #{elmo_forward.1} parent=11 // pred_fallthru
          _
        // Predicated region
        $region25: #{elmo_forward.1} parent=11 // pred_check
          %p352 = pneg %p134
        $region26: #{elmo_forward.1} parent=11 // pred_check_branch
          %354 = sbr.rel (%p352) target = $region28
        $region27: #{elmo_forward.1} parent=11 // pred_region
          _
        $region28: #{elmo_forward.1} parent=11 // pred_fallthru
          _
        // Predicated region
        $region29: #{elmo_forward.1} parent=11 // pred_check
          %p355 = pneg %p155
        $region30: #{elmo_forward.1} parent=11 // pred_check_branch
          %357 = sbr.rel (%p355) target = $region32
        $region31: #{elmo_forward.1} parent=11 // pred_region
          _
        $region32: #{elmo_forward.1} parent=11 // pred_fallthru
          _
        // Predicated region
        $region33: #{elmo_forward.1} parent=11 // pred_check
          %p358 = pneg %p176
        $region34: #{elmo_forward.1} parent=11 // pred_check_branch
          %360 = sbr.rel (%p358) target = $region36
        $region35: #{elmo_forward.1} parent=11 // pred_region
          _
        $region36: #{elmo_forward.1} parent=11 // pred_fallthru
          _
        // Predicated region
        $region37: #{elmo_forward.1} parent=11 // pred_check
          %p361 = pneg %p197
        $region38: #{elmo_forward.1} parent=11 // pred_check_branch
          %363 = sbr.rel (%p361) target = $region40
        $region39: #{elmo_forward.1} parent=11 // pred_region
          _
        $region40: #{elmo_forward.1} parent=11 // pred_fallthru
          _
        // Predicated region
        $region41: #{elmo_forward.1} parent=11 // pred_check
          %p364 = pneg %p218
        $region42: #{elmo_forward.1} parent=11 // pred_check_branch
          %366 = sbr.rel (%p364) target = $region44
        $region43: #{elmo_forward.1} parent=11 // pred_region
          _
        $region44: #{elmo_forward.1} parent=11 // pred_fallthru
          _
        // Predicated region
        $region45: #{elmo_forward.1} parent=11 // pred_check
          %p367 = pneg %p239
        $region46: #{elmo_forward.1} parent=11 // pred_check_branch
          %369 = sbr.rel (%p367) target = $region48
        $region47: #{elmo_forward.1} parent=11 // pred_region
          _
        $region48: #{elmo_forward.1} parent=11 // pred_fallthru
          _
        // Predicated region
        $region49: #{elmo_forward.1} parent=11 // pred_check
          %p370 = pneg %p260
        $region50: #{elmo_forward.1} parent=11 // pred_check_branch
          %372 = sbr.rel (%p370) target = $region52
        $region51: #{elmo_forward.1} parent=11 // pred_region
          %s374 = ssub.s32 4096, 4096
          %375 = vsyncadd [#allocation9], %s374
          %s376 = sshll.u32 [#allocation8], 4
          %s377 = int_to_ptr.vmem [resolvable:$true] %s376
          %382 = dma.hbm_to_vmem [thread:$0]  %s10, 4096, %s377, [#allocation9], 256, 256, 16
        $region52: #{elmo_forward.1} parent=11 // pred_fallthru
          _
        // Predicated region
        $region53: #{elmo_forward.1} parent=11 // pred_check
          %p383 = pneg %p281
        $region54: #{elmo_forward.1} parent=11 // pred_check_branch
          %385 = sbr.rel (%p383) target = $region56
        $region55: #{elmo_forward.1} parent=11 // pred_region
          _
        $region56: #{elmo_forward.1} parent=11 // pred_fallthru
          _
        // Predicated region
        $region57: #{elmo_forward.1} parent=11 // pred_check
          %p386 = pneg %p302
        $region58: #{elmo_forward.1} parent=11 // pred_check_branch
          %388 = sbr.rel (%p386) target = $region60
        $region59: #{elmo_forward.1} parent=11 // pred_region
          %s390 = ssub.s32 16, 16
          %391 = vsyncadd [#allocation11], %s390
          %s393 = sshll.u32 %s12, 4
          %s394 = int_to_ptr.vmem [resolvable:$true] %s393
          %396 = dma.vmem_to_smem %s394, 16, [#allocation12], [#allocation11]
        $region60: #{elmo_forward.1} parent=11 // pred_fallthru
          _
      $region12: #{elmo_forward.1} parent=5 // pred_fallthru
        _
      %p397 = scmp.lt.s32.totalorder %s24, 2
      // Predicated region
      $region61: #{elmo_forward.1} parent=5 // pred_check
        %p398 = pneg %p397
      $region62: #{elmo_forward.1} parent=5 // pred_check_branch
        %400 = sbr.rel (%p398) target = $region64
      $region63: #{elmo_forward.1} parent=5 // pred_region
        // Predicated region
        $region65: #{elmo_forward.1} parent=63 // pred_check
          %p401 = pneg %p44
        $region66: #{elmo_forward.1} parent=63 // pred_check_branch
          %403 = sbr.rel (%p401) target = $region68
        $region67: #{elmo_forward.1} parent=63 // pred_region
          %p404 = scmp.lt.s32.totalorder %s24, 1
          %s405 = scalar_select %p404, %s24, 1
          %s406 = smul.addr %s405, 8
          %s407 = scalar_lea.vmem %s0, %s406
        $region68: #{elmo_forward.1} parent=63 // pred_fallthru
          _
      $region64: #{elmo_forward.1} parent=5 // pred_fallthru
        _
      %p408 = scmp.le.s32.totalorder 1, %s24
      %p409 = scmp.lt.s32.totalorder %s24, 3
      %p410 = pnand %p408, %p409
      %p411 = pneg %p410
      // Predicated region
      $region69: #{elmo_forward.1} parent=5 // pred_check
        _
      $region70: #{elmo_forward.1} parent=5 // pred_check_branch
        %413 = sbr.rel (%p410) target = $region72
      $region71: #{elmo_forward.1} parent=5 // pred_region
        %s414 = ssub.s32 %s24, 1
        // Predicated region
        $region73: #{elmo_forward.1} parent=71 // pred_check
          %p415 = pneg %p260
        $region74: #{elmo_forward.1} parent=71 // pred_check_branch
          %417 = sbr.rel (%p415) target = $region76
        $region75: #{elmo_forward.1} parent=71 // pred_region
          %418 = dma.done [#allocation9], 4096
        $region76: #{elmo_forward.1} parent=71 // pred_fallthru
          _
        // Predicated region
        $region77: #{elmo_forward.1} parent=71 // pred_check
          %p419 = pneg %p302
        $region78: #{elmo_forward.1} parent=71 // pred_check_branch
          %421 = sbr.rel (%p419) target = $region80
        $region79: #{elmo_forward.1} parent=71 // pred_region
          %422 = dma.done [#allocation11], 16
        $region80: #{elmo_forward.1} parent=71 // pred_fallthru
          _
        %423 = sfence
        %p424 = scmp.lt.s32.totalorder %s29, 1
        %s425 = scalar_select %p424, %s29, 1
        %s426 = smul.addr %s425, 8
        %s427 = scalar_lea.vmem %s0, %s426
        %p428 = pneg %p50
        %p429 = pneg %p47
        %p430 = pneg %p71
        %p431 = pneg %p68
        %p432 = pneg %p92
        %p433 = pneg %p89
        %p434 = pneg %p113
        %p435 = pneg %p110
        %p436 = pneg %p134
        %p437 = pneg %p131
        %p438 = pneg %p155
        %p439 = pneg %p152
        %p440 = pneg %p176
        %p441 = pneg %p173
        %p442 = pneg %p197
        %p443 = pneg %p194
        %p444 = pneg %p218
        %p445 = pneg %p215
        %p446 = pneg %p239
        %p447 = pneg %p236
        %p448 = pneg %p260
        %p449 = pneg %p257
        %p450 = pneg %p281
        %p451 = pneg %p278
        %p452 = pneg %p302
        %p453 = pneg %p299
        %p454 = pneg %p328
        %p455 = pneg %p325
        %s456 = sand.u32 %s315, 1
        %s457 = scalar_lea.sflag [#allocation10], %s456
        %s458 = sand.u32 %s315, 1
        %s459 = smul.addr %s458, 8
        %s460 = scalar_lea.vmem [#allocation13], %s459
        %p461 = scmp.lt.s32.totalorder %s29, 1
        %s462 = scalar_select %p461, %s29, 1
        %s463 = smul.addr %s462, 8
        %s464 = scalar_lea.vmem %s0, %s463
        %v466 = vld [vmem:[%s464] sm:$0xff]
        %vm467 = vcmask 130048
        %v468 = vsel %vm467, %v466, 64
        %v469 = vlaneseq
        %v470 = vand.u32 %v469, 127
        %v471 = vlaneseq
        %v472 = vshrl.u32 %v471, 7
        %v473 = vsub.s32 0, %v472
        %v474 = vrot.slane %v468, %v473
        %476 = vbcast.lane.b32.xlu0 %v474, 256
        %v477 = vpop.permute.xlu0 %476
        %s479 = sor.u32 256, 8
        %480 = vbcast.lane.b32.xlu0 %v474, %s479
        %v481 = vpop.permute.xlu0 %480
        %s483 = sor.u32 256, 16
        %484 = vbcast.lane.b32.xlu0 %v474, %s483
        %v485 = vpop.permute.xlu0 %484
        %v486 = vlaneseq
        %v487 = vshrl.u32 %v486, 7
        %v488 = vsub.s32 1, %v487
        %v489 = vrot.slane %v468, %v488
        %491 = vbcast.lane.b32.xlu0 %v489, 256
        %v492 = vpop.permute.xlu0 %491
        %s494 = sor.u32 256, 8
        %495 = vbcast.lane.b32.xlu0 %v489, %s494
        %v496 = vpop.permute.xlu0 %495
        %s498 = sor.u32 256, 16
        %499 = vbcast.lane.b32.xlu0 %v489, %s498
        %v500 = vpop.permute.xlu0 %499
        %v501 = vlaneseq
        %v502 = vshrl.u32 %v501, 7
        %v503 = vsub.s32 2, %v502
        %v504 = vrot.slane %v468, %v503
        %506 = vbcast.lane.b32.xlu0 %v504, 256
        %v507 = vpop.permute.xlu0 %506
        %s509 = sor.u32 256, 8
        %510 = vbcast.lane.b32.xlu0 %v504, %s509
        %v511 = vpop.permute.xlu0 %510
        %s513 = sor.u32 256, 16
        %514 = vbcast.lane.b32.xlu0 %v504, %s513
        %v515 = vpop.permute.xlu0 %514
        %v516 = vlaneseq
        %v517 = vshrl.u32 %v516, 7
        %v518 = vsub.s32 3, %v517
        %v519 = vrot.slane %v468, %v518
        %521 = vbcast.lane.b32.xlu0 %v519, 256
        %v522 = vpop.permute.xlu0 %521
        %s524 = sor.u32 256, 8
        %525 = vbcast.lane.b32.xlu0 %v519, %s524
        %v526 = vpop.permute.xlu0 %525
        %s528 = sor.u32 256, 16
        %529 = vbcast.lane.b32.xlu0 %v519, %s528
        %v530 = vpop.permute.xlu0 %529
        %v531 = vlaneseq
        %v532 = vshrl.u32 %v531, 7
        %v533 = vsub.s32 4, %v532
        %v534 = vrot.slane %v468, %v533
        %536 = vbcast.lane.b32.xlu0 %v534, 256
        %v537 = vpop.permute.xlu0 %536
        %s539 = sor.u32 256, 8
        %540 = vbcast.lane.b32.xlu0 %v534, %s539
        %v541 = vpop.permute.xlu0 %540
        %s543 = sor.u32 256, 16
        %544 = vbcast.lane.b32.xlu0 %v534, %s543
        %v545 = vpop.permute.xlu0 %544
        %v546 = vlaneseq
        %v547 = vshrl.u32 %v546, 7
        %v548 = vsub.s32 5, %v547
        %v549 = vrot.slane %v468, %v548
        %551 = vbcast.lane.b32.xlu0 %v549, 256
        %v552 = vpop.permute.xlu0 %551
        %s554 = sor.u32 256, 8
        %555 = vbcast.lane.b32.xlu0 %v549, %s554
        %v556 = vpop.permute.xlu0 %555
        %s558 = sor.u32 256, 16
        %559 = vbcast.lane.b32.xlu0 %v549, %s558
        %v560 = vpop.permute.xlu0 %559
        %v561 = vlaneseq
        %v562 = vshrl.u32 %v561, 7
        %v563 = vsub.s32 6, %v562
        %v564 = vrot.slane %v468, %v563
        %566 = vbcast.lane.b32.xlu0 %v564, 256
        %v567 = vpop.permute.xlu0 %566
        %s569 = sor.u32 256, 8
        %570 = vbcast.lane.b32.xlu0 %v564, %s569
        %v571 = vpop.permute.xlu0 %570
        %s573 = sor.u32 256, 16
        %574 = vbcast.lane.b32.xlu0 %v564, %s573
        %v575 = vpop.permute.xlu0 %574
        %v576 = vlaneseq
        %v577 = vshrl.u32 %v576, 7
        %v578 = vsub.s32 7, %v577
        %v579 = vrot.slane %v468, %v578
        %581 = vbcast.lane.b32.xlu0 %v579, 256
        %v582 = vpop.permute.xlu0 %581
        %s584 = sor.u32 256, 8
        %585 = vbcast.lane.b32.xlu0 %v579, %s584
        %v586 = vpop.permute.xlu0 %585
        %s588 = sor.u32 256, 16
        %589 = vbcast.lane.b32.xlu0 %v579, %s588
        %v590 = vpop.permute.xlu0 %589
        %vm591 = vcmp.eq.s32.totalorder %v477, %v470
        %vm592 = vcmp.eq.s32.totalorder %v481, %v470
        %vm593 = vcmp.eq.s32.totalorder %v485, %v470
        %vm594 = vcmp.eq.s32.totalorder %v492, %v470
        %vm595 = vcmp.eq.s32.totalorder %v496, %v470
        %vm596 = vcmp.eq.s32.totalorder %v500, %v470
        %vm597 = vcmp.eq.s32.totalorder %v507, %v470
        %vm598 = vcmp.eq.s32.totalorder %v511, %v470
        %vm599 = vcmp.eq.s32.totalorder %v515, %v470
        %vm600 = vcmp.eq.s32.totalorder %v522, %v470
        %vm601 = vcmp.eq.s32.totalorder %v526, %v470
        %vm602 = vcmp.eq.s32.totalorder %v530, %v470
        %vm603 = vcmp.eq.s32.totalorder %v537, %v470
        %vm604 = vcmp.eq.s32.totalorder %v541, %v470
        %vm605 = vcmp.eq.s32.totalorder %v545, %v470
        %vm606 = vcmp.eq.s32.totalorder %v552, %v470
        %vm607 = vcmp.eq.s32.totalorder %v556, %v470
        %vm608 = vcmp.eq.s32.totalorder %v560, %v470
        %vm609 = vcmp.eq.s32.totalorder %v567, %v470
        %vm610 = vcmp.eq.s32.totalorder %v571, %v470
        %vm611 = vcmp.eq.s32.totalorder %v575, %v470
        %vm612 = vcmp.eq.s32.totalorder %v582, %v470
        %vm613 = vcmp.eq.s32.totalorder %v586, %v470
        %vm614 = vcmp.eq.s32.totalorder %v590, %v470
        %v615 = vsel %vm591, 1, 0
        %v616 = vsel %vm592, 1, 0
        %v617 = vsel %vm593, 1, 0
        %v618 = vsel %vm594, 1, 0
        %v619 = vsel %vm595, 1, 0
        %v620 = vsel %vm596, 1, 0
        %v621 = vsel %vm597, 1, 0
        %v622 = vsel %vm598, 1, 0
        %v623 = vsel %vm599, 1, 0
        %v624 = vsel %vm600, 1, 0
        %v625 = vsel %vm601, 1, 0
        %v626 = vsel %vm602, 1, 0
        %v627 = vsel %vm603, 1, 0
        %v628 = vsel %vm604, 1, 0
        %v629 = vsel %vm605, 1, 0
        %v630 = vsel %vm606, 1, 0
        %v631 = vsel %vm607, 1, 0
        %v632 = vsel %vm608, 1, 0
        %v633 = vsel %vm609, 1, 0
        %v634 = vsel %vm610, 1, 0
        %v635 = vsel %vm611, 1, 0
        %v636 = vsel %vm612, 1, 0
        %v637 = vsel %vm613, 1, 0
        %v638 = vsel %vm614, 1, 0
        %v639 = vcvt.s32.f32 %v615
        %v640 = vcvt.s32.f32 %v616
        %v641 = vcvt.s32.f32 %v617
        %v642 = vcvt.s32.f32 %v618
        %v643 = vcvt.s32.f32 %v619
        %v644 = vcvt.s32.f32 %v620
        %v645 = vcvt.s32.f32 %v621
        %v646 = vcvt.s32.f32 %v622
        %v647 = vcvt.s32.f32 %v623
        %v648 = vcvt.s32.f32 %v624
        %v649 = vcvt.s32.f32 %v625
        %v650 = vcvt.s32.f32 %v626
        %v651 = vcvt.s32.f32 %v627
        %v652 = vcvt.s32.f32 %v628
        %v653 = vcvt.s32.f32 %v629
        %v654 = vcvt.s32.f32 %v630
        %v655 = vcvt.s32.f32 %v631
        %v656 = vcvt.s32.f32 %v632
        %v657 = vcvt.s32.f32 %v633
        %v658 = vcvt.s32.f32 %v634
        %v659 = vcvt.s32.f32 %v635
        %v660 = vcvt.s32.f32 %v636
        %v661 = vcvt.s32.f32 %v637
        %v662 = vcvt.s32.f32 %v638
        %v663 = vpack.c.bf16 %v640, %v639
        %v664 = vpack.c.bf16 %v641, %v641
        %v665 = vpack.c.bf16 %v643, %v642
        %v666 = vpack.c.bf16 %v644, %v644
        %v667 = vpack.c.bf16 %v646, %v645
        %v668 = vpack.c.bf16 %v647, %v647
        %v669 = vpack.c.bf16 %v649, %v648
        %v670 = vpack.c.bf16 %v650, %v650
        %v671 = vpack.c.bf16 %v652, %v651
        %v672 = vpack.c.bf16 %v653, %v653
        %v673 = vpack.c.bf16 %v655, %v654
        %v674 = vpack.c.bf16 %v656, %v656
        %v675 = vpack.c.bf16 %v658, %v657
        %v676 = vpack.c.bf16 %v659, %v659
        %v677 = vpack.c.bf16 %v661, %v660
        %v678 = vpack.c.bf16 %v662, %v662
        %vm679 = vsmask.f32 7424
        %v681 = vshrl.u32 %v663, 16
        %v683 = vshll.u32 %v663, 16
        %v685 = vrot.slane %v683, 1
        %v686 = vor.u32 %v681, %v685
        %v688 = vshll.u32 %v664, 16
        %v690 = vrot.slane %v688, 1
        %v691 = vsel %vm679, %v686, %v690
        %v693 = vshrl.u32 %v665, 16
        %v695 = vshll.u32 %v665, 16
        %v697 = vrot.slane %v695, 1
        %v698 = vor.u32 %v693, %v697
        %v700 = vshll.u32 %v666, 16
        %v702 = vrot.slane %v700, 1
        %v703 = vsel %vm679, %v698, %v702
        %v705 = vshrl.u32 %v667, 16
        %v707 = vshll.u32 %v667, 16
        %v709 = vrot.slane %v707, 1
        %v710 = vor.u32 %v705, %v709
        %v712 = vshll.u32 %v668, 16
        %v714 = vrot.slane %v712, 1
        %v715 = vsel %vm679, %v710, %v714
        %v717 = vshrl.u32 %v669, 16
        %v719 = vshll.u32 %v669, 16
        %v721 = vrot.slane %v719, 1
        %v722 = vor.u32 %v717, %v721
        %v724 = vshll.u32 %v670, 16
        %v726 = vrot.slane %v724, 1
        %v727 = vsel %vm679, %v722, %v726
        %v729 = vshrl.u32 %v671, 16
        %v731 = vshll.u32 %v671, 16
        %v733 = vrot.slane %v731, 1
        %v734 = vor.u32 %v729, %v733
        %v736 = vshll.u32 %v672, 16
        %v738 = vrot.slane %v736, 1
        %v739 = vsel %vm679, %v734, %v738
        %v741 = vshrl.u32 %v673, 16
        %v743 = vshll.u32 %v673, 16
        %v745 = vrot.slane %v743, 1
        %v746 = vor.u32 %v741, %v745
        %v748 = vshll.u32 %v674, 16
        %v750 = vrot.slane %v748, 1
        %v751 = vsel %vm679, %v746, %v750
        %v753 = vshrl.u32 %v675, 16
        %v755 = vshll.u32 %v675, 16
        %v757 = vrot.slane %v755, 1
        %v758 = vor.u32 %v753, %v757
        %v760 = vshll.u32 %v676, 16
        %v762 = vrot.slane %v760, 1
        %v763 = vsel %vm679, %v758, %v762
        %v765 = vshrl.u32 %v677, 16
        %v767 = vshll.u32 %v677, 16
        %v769 = vrot.slane %v767, 1
        %v770 = vor.u32 %v765, %v769
        %v772 = vshll.u32 %v678, 16
        %v774 = vrot.slane %v772, 1
        %v775 = vsel %vm679, %v770, %v774
        %776 = vrot.lane.b32.xlu0 %v691, 64
        %v777 = vpop.permute.xlu0 %776
        %778 = vrot.lane.b32.xlu0 %v703, 64
        %v779 = vpop.permute.xlu0 %778
        %780 = vrot.lane.b32.xlu0 %v715, 64
        %v781 = vpop.permute.xlu0 %780
        %782 = vrot.lane.b32.xlu0 %v727, 64
        %v783 = vpop.permute.xlu0 %782
        %784 = vrot.lane.b32.xlu0 %v739, 64
        %v785 = vpop.permute.xlu0 %784
        %786 = vrot.lane.b32.xlu0 %v751, 64
        %v787 = vpop.permute.xlu0 %786
        %788 = vrot.lane.b32.xlu0 %v763, 64
        %v789 = vpop.permute.xlu0 %788
        %790 = vrot.lane.b32.xlu0 %v775, 64
        %v791 = vpop.permute.xlu0 %790
        %vm808 = vcmask 1046528
        %v809 = vrot.slane %v663, 1
        %v810 = vrot.slane %v664, 1
        %v811 = vsel %vm808, %v809, %v810
        %v812 = vrot.slane %v665, 1
        %v813 = vrot.slane %v666, 1
        %v814 = vsel %vm808, %v812, %v813
        %v815 = vrot.slane %v667, 1
        %v816 = vrot.slane %v668, 1
        %v817 = vsel %vm808, %v815, %v816
        %v818 = vrot.slane %v669, 1
        %v819 = vrot.slane %v670, 1
        %v820 = vsel %vm808, %v818, %v819
        %v821 = vrot.slane %v671, 1
        %v822 = vrot.slane %v672, 1
        %v823 = vsel %vm808, %v821, %v822
        %v824 = vrot.slane %v673, 1
        %v825 = vrot.slane %v674, 1
        %v826 = vsel %vm808, %v824, %v825
        %v827 = vrot.slane %v675, 1
        %v828 = vrot.slane %v676, 1
        %v829 = vsel %vm808, %v827, %v828
        %v830 = vrot.slane %v677, 1
        %v831 = vrot.slane %v678, 1
        %v832 = vsel %vm808, %v830, %v831
        %vm833 = vcmask 523264
        %v835 = vsel %vm833, %v663, %v777
        %v838 = vsel %vm833, %v665, %v779
        %v841 = vsel %vm833, %v667, %v781
        %v844 = vsel %vm833, %v669, %v783
        %v847 = vsel %vm833, %v671, %v785
        %v850 = vsel %vm833, %v673, %v787
        %v853 = vsel %vm833, %v675, %v789
        %v856 = vsel %vm833, %v677, %v791
        %v858 = vld [vmem:[%s1] sm:$0xf]
        %v859 = vld [vmem:[%s1 + $0x4] sm:$0xf]
        %v860 = vld [vmem:[%s1 + $0x8] sm:$0xf]
        %v861 = vld [vmem:[%s1 + $0xc] sm:$0xf]
        %v862 = vld [vmem:[%s1 + $0x10] sm:$0xf]
        %v863 = vld [vmem:[%s1 + $0x14] sm:$0xf]
        %v864 = vld [vmem:[%s1 + $0x18] sm:$0xf]
        %v865 = vld [vmem:[%s1 + $0x1c] sm:$0xf]
        %v866 = vld [vmem:[%s1 + $0x20] sm:$0xf]
        %v867 = vld [vmem:[%s1 + $0x24] sm:$0xf]
        %v868 = vld [vmem:[%s1 + $0x28] sm:$0xf]
        %v869 = vld [vmem:[%s1 + $0x2c] sm:$0xf]
        %v870 = vld [vmem:[%s1 + $0x30] sm:$0xf]
        %v871 = vld [vmem:[%s1 + $0x34] sm:$0xf]
        %v872 = vld [vmem:[%s1 + $0x38] sm:$0xf]
        %v873 = vld [vmem:[%s1 + $0x3c] sm:$0xf]
        %v874 = vld [vmem:[%s1 + $0x40] sm:$0xf]
        %v875 = vld [vmem:[%s1 + $0x44] sm:$0xf]
        %v876 = vld [vmem:[%s1 + $0x48] sm:$0xf]
        %v877 = vld [vmem:[%s1 + $0x4c] sm:$0xf]
        %v878 = vld [vmem:[%s1 + $0x50] sm:$0xf]
        %v879 = vld [vmem:[%s1 + $0x54] sm:$0xf]
        %v880 = vld [vmem:[%s1 + $0x58] sm:$0xf]
        %v881 = vld [vmem:[%s1 + $0x5c] sm:$0xf]
        %v906 = vunpack.c.l.b16 %v858
        %v907 = vunpack.c.l.b16 %v859
        %v908 = vunpack.c.l.b16 %v860
        %v909 = vunpack.c.l.b16 %v861
        %v910 = vunpack.c.l.b16 %v862
        %v911 = vunpack.c.l.b16 %v863
        %v912 = vunpack.c.l.b16 %v864
        %v913 = vunpack.c.l.b16 %v865
        %v914 = vunpack.c.l.b16 %v866
        %v915 = vunpack.c.l.b16 %v867
        %v916 = vunpack.c.l.b16 %v868
        %v917 = vunpack.c.l.b16 %v869
        %v918 = vunpack.c.l.b16 %v870
        %v919 = vunpack.c.l.b16 %v871
        %v920 = vunpack.c.l.b16 %v872
        %v921 = vunpack.c.l.b16 %v873
        %v922 = vunpack.c.l.b16 %v874
        %v923 = vunpack.c.l.b16 %v875
        %v924 = vunpack.c.l.b16 %v876
        %v925 = vunpack.c.l.b16 %v877
        %v926 = vunpack.c.l.b16 %v878
        %v927 = vunpack.c.l.b16 %v879
        %v928 = vunpack.c.l.b16 %v880
        %v929 = vunpack.c.l.b16 %v881
        %v930 = vpack.c.b16 %v907, %v906
        %v931 = vpack.c.b16 %v909, %v908
        %v932 = vpack.c.b16 %v911, %v910
        %v933 = vpack.c.b16 %v913, %v912
        %v934 = vpack.c.b16 %v915, %v914
        %v935 = vpack.c.b16 %v917, %v916
        %v936 = vpack.c.b16 %v919, %v918
        %v937 = vpack.c.b16 %v921, %v920
        %v938 = vpack.c.b16 %v923, %v922
        %v939 = vpack.c.b16 %v925, %v924
        %v940 = vpack.c.b16 %v927, %v926
        %v941 = vpack.c.b16 %v929, %v928
        %v955 = vsel %vm833, %v811, 0
        %v958 = vsel %vm833, %v814, 0
        %v961 = vsel %vm833, %v817, 0
        %v964 = vsel %vm833, %v820, 0
        %v967 = vsel %vm833, %v823, 0
        %v970 = vsel %vm833, %v826, 0
        %v973 = vsel %vm833, %v829, 0
        %v976 = vsel %vm833, %v832, 0
        %978 = vmatprep.subr.bf16.mxu0 0
        %979 = vmatpush1.bf16.msra.mxu0 %v930
        %980 = vmatprep.subr.bf16.mxu0 0
        %981 = vmatpush1.bf16.msra.mxu0 %v931
        %982 = vmatprep.subr.bf16.mxu0 0
        %983 = vmatpush1.bf16.msra.mxu0 %v932
        %984 = vmatprep.subr.bf16.mxu0 0
        %985 = vmatpush1.bf16.msra.mxu0 %v933
        %986 = vmatprep.subr.bf16.mxu0 0
        %987 = vmatpush1.bf16.msra.mxu0 %v934
        %988 = vmatprep.subr.bf16.mxu0 0
        %989 = vmatpush1.bf16.msra.mxu0 %v935
        %990 = vmatprep.subr.bf16.mxu0 0
        %991 = vmatpush1.bf16.msra.mxu0 %v936
        %992 = vmatprep.subr.bf16.mxu0 0
        %993 = vmatpush1.bf16.msra.mxu0 %v937
        %994 = vmatprep.subr.bf16.mxu0 0
        %995 = vmatpush1.bf16.msra.mxu0 %v938
        %996 = vmatprep.subr.bf16.mxu0 0
        %997 = vmatpush1.bf16.msra.mxu0 %v939
        %998 = vmatprep.subr.bf16.mxu0 0
        %999 = vmatpush1.bf16.msra.mxu0 %v940
        %1000 = vmatprep.subr.bf16.mxu0 0
        %1001 = vmatpush1.bf16.msra.mxu0 %v941
        %1002 = vmatprep.subr.bf16.mxu0 0
        %1003 = vmatpush1.bf16.msra.mxu0 0
        %1004 = vmatprep.subr.bf16.mxu0 0
        %1005 = vmatpush1.bf16.msra.mxu0 0
        %1006 = vmatprep.subr.bf16.mxu0 0
        %1007 = vmatpush1.bf16.msra.mxu0 0
        %1008 = vmatprep.subr.bf16.mxu0 0
        %1009 = vmatpush1.bf16.msra.mxu0 0
        %1010 = vmatprep.mubr.bf16.mxu0 %v955
        %1011 = vmatmul.mubr.bf16.gmra.mrb[0].mxu0 %v835
        %v1012 = vpop.f32.mrb[0].mxu0
        %v1013 = vadd.f32 0.0, %v1012
        %v1014 = vpop.f32.mrb[0].mxu0
        %v1015 = vpop.f32.mrb[0].mxu0
        %v1016 = vadd.f32 0.0, %v1015
        %v1017 = vpop.f32.mrb[0].mxu0
        %1018 = vmatprep.mubr.bf16.mxu0 %v958
        %1019 = vmatmul.mubr.bf16.gmra.mrb[0].mxu0 %v838
        %v1020 = vpop.f32.mrb[0].mxu0
        %v1021 = vadd.f32 0.0, %v1020
        %v1022 = vpop.f32.mrb[0].mxu0
        %v1023 = vpop.f32.mrb[0].mxu0
        %v1024 = vadd.f32 0.0, %v1023
        %v1025 = vpop.f32.mrb[0].mxu0
        %1026 = vmatprep.mubr.bf16.mxu0 %v961
        %1027 = vmatmul.mubr.bf16.gmra.mrb[0].mxu0 %v841
        %v1028 = vpop.f32.mrb[0].mxu0
        %v1029 = vadd.f32 0.0, %v1028
        %v1030 = vpop.f32.mrb[0].mxu0
        %v1031 = vpop.f32.mrb[0].mxu0
        %v1032 = vadd.f32 0.0, %v1031
        %v1033 = vpop.f32.mrb[0].mxu0
        %1034 = vmatprep.mubr.bf16.mxu0 %v964
        %1035 = vmatmul.mubr.bf16.gmra.mrb[0].mxu0 %v844
        %v1036 = vpop.f32.mrb[0].mxu0
        %v1037 = vadd.f32 0.0, %v1036
        %v1038 = vpop.f32.mrb[0].mxu0
        %v1039 = vpop.f32.mrb[0].mxu0
        %v1040 = vadd.f32 0.0, %v1039
        %v1041 = vpop.f32.mrb[0].mxu0
        %1042 = vmatprep.mubr.bf16.mxu0 %v967
        %1043 = vmatmul.mubr.bf16.gmra.mrb[0].mxu0 %v847
        %v1044 = vpop.f32.mrb[0].mxu0
        %v1045 = vadd.f32 0.0, %v1044
        %v1046 = vpop.f32.mrb[0].mxu0
        %v1047 = vpop.f32.mrb[0].mxu0
        %v1048 = vadd.f32 0.0, %v1047
        %v1049 = vpop.f32.mrb[0].mxu0
        %1050 = vmatprep.mubr.bf16.mxu0 %v970
        %1051 = vmatmul.mubr.bf16.gmra.mrb[0].mxu0 %v850
        %v1052 = vpop.f32.mrb[0].mxu0
        %v1053 = vadd.f32 0.0, %v1052
        %v1054 = vpop.f32.mrb[0].mxu0
        %v1055 = vpop.f32.mrb[0].mxu0
        %v1056 = vadd.f32 0.0, %v1055
        %v1057 = vpop.f32.mrb[0].mxu0
        %1058 = vmatprep.mubr.bf16.mxu0 %v973
        %1059 = vmatmul.mubr.bf16.gmra.mrb[0].mxu0 %v853
        %v1060 = vpop.f32.mrb[0].mxu0
        %v1061 = vadd.f32 0.0, %v1060
        %v1062 = vpop.f32.mrb[0].mxu0
        %v1063 = vpop.f32.mrb[0].mxu0
        %v1064 = vadd.f32 0.0, %v1063
        %v1065 = vpop.f32.mrb[0].mxu0
        %1066 = vmatprep.mubr.bf16.mxu0 %v976
        %1067 = vmatmul.mubr.bf16.gmra.mrb[0].mxu0 %v856
        %v1068 = vpop.f32.mrb[0].mxu0
        %v1069 = vadd.f32 0.0, %v1068
        %v1070 = vpop.f32.mrb[0].mxu0
        %v1071 = vpop.f32.mrb[0].mxu0
        %v1072 = vadd.f32 0.0, %v1071
        %v1073 = vpop.f32.mrb[0].mxu0
        %1074 = vdwg.mxu0
        %v1075 = vld [vmem:[%s2] sm:$0x1]
        %v1077 = vlaneseq
        %v1078 = vshrl.u32 %v1077, 7
        %v1079 = vsub.s32 0, %v1078
        %v1080 = vrot.slane %v1075, %v1079
        %v1082 = vadd.f32 %v1013, %v1080
        %v1083 = vadd.f32 %v1016, %v1080
        %v1084 = vadd.f32 %v1021, %v1080
        %v1085 = vadd.f32 %v1024, %v1080
        %v1086 = vadd.f32 %v1029, %v1080
        %v1087 = vadd.f32 %v1032, %v1080
        %v1088 = vadd.f32 %v1037, %v1080
        %v1089 = vadd.f32 %v1040, %v1080
        %v1090 = vadd.f32 %v1045, %v1080
        %v1091 = vadd.f32 %v1048, %v1080
        %v1092 = vadd.f32 %v1053, %v1080
        %v1093 = vadd.f32 %v1056, %v1080
        %v1094 = vadd.f32 %v1061, %v1080
        %v1095 = vadd.f32 %v1064, %v1080
        %v1096 = vadd.f32 %v1069, %v1080
        %v1097 = vadd.f32 %v1072, %v1080
        %v1098 = vtanh.pop %v1082
        %v1099 = vtanh.pop %v1083
        %v1100 = vtanh.pop %v1084
        %v1101 = vtanh.pop %v1085
        %v1102 = vtanh.pop %v1086
        %v1103 = vtanh.pop %v1087
        %v1104 = vtanh.pop %v1088
        %v1105 = vtanh.pop %v1089
        %v1106 = vtanh.pop %v1090
        %v1107 = vtanh.pop %v1091
        %v1108 = vtanh.pop %v1092
        %v1109 = vtanh.pop %v1093
        %v1110 = vtanh.pop %v1094
        %v1111 = vtanh.pop %v1095
        %v1112 = vtanh.pop %v1096
        %v1113 = vtanh.pop %v1097
        %v1114 = vld [vmem:[%s3] sm:$0xff]
        %v1115 = vld [vmem:[%s3 + $0x8] sm:$0xff]
        %v1116 = vadd.f32 %v1098, %v1114
        %v1117 = vadd.f32 %v1099, %v1115
        %v1118 = vadd.f32 %v1100, %v1114
        %v1119 = vadd.f32 %v1101, %v1115
        %v1120 = vadd.f32 %v1102, %v1114
        %v1121 = vadd.f32 %v1103, %v1115
        %v1122 = vadd.f32 %v1104, %v1114
        %v1123 = vadd.f32 %v1105, %v1115
        %v1124 = vadd.f32 %v1106, %v1114
        %v1125 = vadd.f32 %v1107, %v1115
        %v1126 = vadd.f32 %v1108, %v1114
        %v1127 = vadd.f32 %v1109, %v1115
        %v1128 = vadd.f32 %v1110, %v1114
        %v1129 = vadd.f32 %v1111, %v1115
        %v1130 = vadd.f32 %v1112, %v1114
        %v1131 = vadd.f32 %v1113, %v1115
        %vm1132 = vcmask 261120
        %v1133 = vsel %vm1132, %v1116, -inf
        %v1134 = vsel %vm1132, %v1117, -inf
        %v1135 = vmax.f32 %v1133, %v1134
        %v1136 = vrot.slane %v1135, 4
        %v1137 = vmax.f32 %v1135, %v1136
        %v1138 = vrot.slane %v1137, 2
        %v1139 = vmax.f32 %v1137, %v1138
        %v1140 = vrot.slane %v1139, 1
        %v1141 = vmax.f32 %v1139, %v1140
        %v1142 = vsel %vm1132, %v1118, -inf
        %v1143 = vsel %vm1132, %v1119, -inf
        %v1144 = vmax.f32 %v1142, %v1143
        %v1145 = vrot.slane %v1144, 4
        %v1146 = vmax.f32 %v1144, %v1145
        %v1147 = vrot.slane %v1146, 2
        %v1148 = vmax.f32 %v1146, %v1147
        %v1149 = vrot.slane %v1148, 1
        %v1150 = vmax.f32 %v1148, %v1149
        %v1151 = vsel %vm1132, %v1120, -inf
        %v1152 = vsel %vm1132, %v1121, -inf
        %v1153 = vmax.f32 %v1151, %v1152
        %v1154 = vrot.slane %v1153, 4
        %v1155 = vmax.f32 %v1153, %v1154
        %v1156 = vrot.slane %v1155, 2
        %v1157 = vmax.f32 %v1155, %v1156
        %v1158 = vrot.slane %v1157, 1
        %v1159 = vmax.f32 %v1157, %v1158
        %v1160 = vsel %vm1132, %v1122, -inf
        %v1161 = vsel %vm1132, %v1123, -inf
        %v1162 = vmax.f32 %v1160, %v1161
        %v1163 = vrot.slane %v1162, 4
        %v1164 = vmax.f32 %v1162, %v1163
        %v1165 = vrot.slane %v1164, 2
        %v1166 = vmax.f32 %v1164, %v1165
        %v1167 = vrot.slane %v1166, 1
        %v1168 = vmax.f32 %v1166, %v1167
        %v1169 = vsel %vm1132, %v1124, -inf
        %v1170 = vsel %vm1132, %v1125, -inf
        %v1171 = vmax.f32 %v1169, %v1170
        %v1172 = vrot.slane %v1171, 4
        %v1173 = vmax.f32 %v1171, %v1172
        %v1174 = vrot.slane %v1173, 2
        %v1175 = vmax.f32 %v1173, %v1174
        %v1176 = vrot.slane %v1175, 1
        %v1177 = vmax.f32 %v1175, %v1176
        %v1178 = vsel %vm1132, %v1126, -inf
        %v1179 = vsel %vm1132, %v1127, -inf
        %v1180 = vmax.f32 %v1178, %v1179
        %v1181 = vrot.slane %v1180, 4
        %v1182 = vmax.f32 %v1180, %v1181
        %v1183 = vrot.slane %v1182, 2
        %v1184 = vmax.f32 %v1182, %v1183
        %v1185 = vrot.slane %v1184, 1
        %v1186 = vmax.f32 %v1184, %v1185
        %v1187 = vsel %vm1132, %v1128, -inf
        %v1188 = vsel %vm1132, %v1129, -inf
        %v1189 = vmax.f32 %v1187, %v1188
        %v1190 = vrot.slane %v1189, 4
        %v1191 = vmax.f32 %v1189, %v1190
        %v1192 = vrot.slane %v1191, 2
        %v1193 = vmax.f32 %v1191, %v1192
        %v1194 = vrot.slane %v1193, 1
        %v1195 = vmax.f32 %v1193, %v1194
        %v1196 = vsel %vm1132, %v1130, -inf
        %v1197 = vsel %vm1132, %v1131, -inf
        %v1198 = vmax.f32 %v1196, %v1197
        %v1199 = vrot.slane %v1198, 4
        %v1200 = vmax.f32 %v1198, %v1199
        %v1201 = vrot.slane %v1200, 2
        %v1202 = vmax.f32 %v1200, %v1201
        %v1203 = vrot.slane %v1202, 1
        %v1204 = vmax.f32 %v1202, %v1203
        %v1205 = vpack.c.bf16 %v1141, %v1141
        %v1206 = vpack.c.bf16 %v1150, %v1150
        %v1207 = vpack.c.bf16 %v1159, %v1159
        %v1208 = vpack.c.bf16 %v1168, %v1168
        %v1209 = vpack.c.bf16 %v1177, %v1177
        %v1210 = vpack.c.bf16 %v1186, %v1186
        %v1211 = vpack.c.bf16 %v1195, %v1195
        %v1212 = vpack.c.bf16 %v1204, %v1204
        %v1213 = vld [vmem:[%s4] sm:$0xf]
        %v1214 = vld [vmem:[%s4 + $0x4] sm:$0xf]
        %v1215 = vld [vmem:[%s4 + $0x8] sm:$0xf]
        %v1216 = vld [vmem:[%s4 + $0xc] sm:$0xf]
        %v1217 = vld [vmem:[%s5] sm:$0x1]
        %v1219 = vlaneseq
        %v1220 = vshrl.u32 %v1219, 7
        %v1221 = vsub.s32 0, %v1220
        %v1222 = vrot.slane %v1217, %v1221
        %v1232 = vunpack.c.l.b16 %v1205
        %v1233 = vunpack.c.l.b16 %v1206
        %v1234 = vunpack.c.l.b16 %v1207
        %v1235 = vunpack.c.l.b16 %v1208
        %v1236 = vunpack.c.l.b16 %v1209
        %v1237 = vunpack.c.l.b16 %v1210
        %v1238 = vunpack.c.l.b16 %v1211
        %v1239 = vunpack.c.l.b16 %v1212
        %vm1240 = vcmask 1041409
        %v1241 = vsel %vm1240, %v1233, %v1232
        %vm1242 = vcmask 1042434
        %v1243 = vsel %vm1242, %v1234, %v1241
        %vm1244 = vcmask 1043459
        %v1245 = vsel %vm1244, %v1235, %v1243
        %vm1246 = vcmask 1044484
        %v1247 = vsel %vm1246, %v1236, %v1245
        %vm1248 = vcmask 1045509
        %v1249 = vsel %vm1248, %v1237, %v1247
        %vm1250 = vcmask 1046534
        %v1251 = vsel %vm1250, %v1238, %v1249
        %vm1252 = vcmask 1047559
        %v1253 = vsel %vm1252, %v1239, %v1251
        %v1254 = vpack.c.b16 %v1253, %v1253
        %v1259 = vunpack.c.l.b16 %v1213
        %v1260 = vunpack.c.l.b16 %v1214
        %v1261 = vunpack.c.l.b16 %v1215
        %v1262 = vunpack.c.l.b16 %v1216
        %v1263 = vpack.c.b16 %v1260, %v1259
        %v1264 = vpack.c.b16 %v1262, %v1261
        %v1268 = vsel %vm1132, %v1254, 0
        %1270 = vmatprep.subr.bf16.mxu0 0
        %1271 = vmatpush1.bf16.msra.mxu0 %v1263
        %1272 = vmatprep.subr.bf16.mxu0 0
        %1273 = vmatpush1.bf16.msra.mxu0 %v1264
        %1274 = vmatprep.subr.bf16.mxu0 0
        %1275 = vmatpush1.bf16.msra.mxu0 0
        %1276 = vmatprep.subr.bf16.mxu0 0
        %1277 = vmatpush1.bf16.msra.mxu0 0
        %1278 = vmatprep.subr.bf16.mxu0 0
        %1279 = vmatpush1.bf16.msra.mxu0 0
        %1280 = vmatprep.subr.bf16.mxu0 0
        %1281 = vmatpush1.bf16.msra.mxu0 0
        %1282 = vmatprep.subr.bf16.mxu0 0
        %1283 = vmatpush1.bf16.msra.mxu0 0
        %1284 = vmatprep.subr.bf16.mxu0 0
        %1285 = vmatpush1.bf16.msra.mxu0 0
        %1286 = vmatprep.subr.bf16.mxu0 0
        %1287 = vmatpush1.bf16.msra.mxu0 0
        %1288 = vmatprep.subr.bf16.mxu0 0
        %1289 = vmatpush1.bf16.msra.mxu0 0
        %1290 = vmatprep.subr.bf16.mxu0 0
        %1291 = vmatpush1.bf16.msra.mxu0 0
        %1292 = vmatprep.subr.bf16.mxu0 0
        %1293 = vmatpush1.bf16.msra.mxu0 0
        %1294 = vmatprep.subr.bf16.mxu0 0
        %1295 = vmatpush1.bf16.msra.mxu0 0
        %1296 = vmatprep.subr.bf16.mxu0 0
        %1297 = vmatpush1.bf16.msra.mxu0 0
        %1298 = vmatprep.subr.bf16.mxu0 0
        %1299 = vmatpush1.bf16.msra.mxu0 0
        %1300 = vmatprep.subr.bf16.mxu0 0
        %1301 = vmatpush1.bf16.msra.mxu0 0
        %1302 = vmatprep.mubr.bf16.mxu0 0
        %1303 = vmatmul.mubr.bf16.gmra.mrb[0].mxu0 %v1268
        %v1304 = vpop.f32.mrb[0].mxu0
        %v1305 = vadd.f32 %v1222, %v1304
        %v1306 = vpop.f32.mrb[0].mxu0
        %v1307 = vpop.f32.mrb[0].mxu0
        %v1308 = vpop.f32.mrb[0].mxu0
        %1309 = vdwg.mxu0
        %v1310 = vmax.f32 %v1305, 0.0
        %v1311 = vxor.u32 %v1305, 2147483648
        %v1312 = vmul.f32 %v1311, 1.442695
        %v1313 = vpow.pop %v1312
        %v1314 = vadd.f32 %v1313, 1.0
        %v1315 = vrcp.pop %v1314
        %v1316 = vmul.f32 1.0, %v1315
        %v1325 = vsel %vm1240, %v1150, %v1141
        %v1326 = vsel %vm1242, %v1159, %v1325
        %v1327 = vsel %vm1244, %v1168, %v1326
        %v1328 = vsel %vm1246, %v1177, %v1327
        %v1329 = vsel %vm1248, %v1186, %v1328
        %v1330 = vsel %vm1250, %v1195, %v1329
        %v1331 = vsel %vm1252, %v1204, %v1330
        %1332 = vrot.lane.b32.xlu0 %v1331, 32
        %v1333 = vpop.permute.xlu0 %1332
        %v1335 = vmul.f32 %v1316, %v1333
        %v1336 = vsub.f32 1.0, %v1316
        %1338 = vrot.lane.b32.xlu0 %v1310, 32
        %v1339 = vpop.permute.xlu0 %1338
        %v1341 = vmul.f32 %v1336, %v1339
        %v1342 = vadd.f32 %v1335, %v1341
        %v1343 = vpack.c.bf16 %v1342, %v1342
        %v1344 = vld [vmem:[%s6] sm:$0xf]
        %v1345 = vld [vmem:[%s6 + $0x4] sm:$0xf]
        %v1346 = vld [vmem:[%s6 + $0x8] sm:$0xf]
        %v1347 = vld [vmem:[%s6 + $0xc] sm:$0xf]
        %v1348 = vld [vmem:[%s7] sm:$0x1]
        %v1350 = vlaneseq
        %v1351 = vshrl.u32 %v1350, 7
        %v1352 = vsub.s32 0, %v1351
        %v1353 = vrot.slane %v1348, %v1352
        %1356 = vrot.lane.b32.xlu0 %v1343, 96
        %v1357 = vpop.permute.xlu0 %1356
        %v1362 = vunpack.c.l.b16 %v1344
        %v1363 = vunpack.c.l.b16 %v1345
        %v1364 = vunpack.c.l.b16 %v1346
        %v1365 = vunpack.c.l.b16 %v1347
        %v1366 = vpack.c.b16 %v1363, %v1362
        %v1367 = vpack.c.b16 %v1365, %v1364
        %v1371 = vsel %vm1132, %v1357, 0
        %1373 = vmatprep.subr.bf16.mxu0 0
        %1374 = vmatpush1.bf16.msra.mxu0 %v1366
        %1375 = vmatprep.subr.bf16.mxu0 0
        %1376 = vmatpush1.bf16.msra.mxu0 %v1367
        %1377 = vmatprep.subr.bf16.mxu0 0
        %1378 = vmatpush1.bf16.msra.mxu0 0
        %1379 = vmatprep.subr.bf16.mxu0 0
        %1380 = vmatpush1.bf16.msra.mxu0 0
        %1381 = vmatprep.subr.bf16.mxu0 0
        %1382 = vmatpush1.bf16.msra.mxu0 0
        %1383 = vmatprep.subr.bf16.mxu0 0
        %1384 = vmatpush1.bf16.msra.mxu0 0
        %1385 = vmatprep.subr.bf16.mxu0 0
        %1386 = vmatpush1.bf16.msra.mxu0 0
        %1387 = vmatprep.subr.bf16.mxu0 0
        %1388 = vmatpush1.bf16.msra.mxu0 0
        %1389 = vmatprep.subr.bf16.mxu0 0
        %1390 = vmatpush1.bf16.msra.mxu0 0
        %1391 = vmatprep.subr.bf16.mxu0 0
        %1392 = vmatpush1.bf16.msra.mxu0 0
        %1393 = vmatprep.subr.bf16.mxu0 0
        %1394 = vmatpush1.bf16.msra.mxu0 0
        %1395 = vmatprep.subr.bf16.mxu0 0
        %1396 = vmatpush1.bf16.msra.mxu0 0
        %1397 = vmatprep.subr.bf16.mxu0 0
        %1398 = vmatpush1.bf16.msra.mxu0 0
        %1399 = vmatprep.subr.bf16.mxu0 0
        %1400 = vmatpush1.bf16.msra.mxu0 0
        %1401 = vmatprep.subr.bf16.mxu0 0
        %1402 = vmatpush1.bf16.msra.mxu0 0
        %1403 = vmatprep.subr.bf16.mxu0 0
        %1404 = vmatpush1.bf16.msra.mxu0 0
        %1405 = vmatprep.mubr.bf16.mxu0 0
        %1406 = vmatmul.mubr.bf16.gmra.mrb[0].mxu0 %v1371
        %v1407 = vpop.f32.mrb[0].mxu0
        %v1408 = vadd.f32 %v1353, %v1407
        %v1409 = vpop.f32.mrb[0].mxu0
        %v1410 = vpop.f32.mrb[0].mxu0
        %v1411 = vpop.f32.mrb[0].mxu0
        %1412 = vdwg.mxu0
        %v1414 = vcombine.high %v1408, %v1408
        %v1416 = vunpack.c.l.s4 1966171168
        %v1417 = vunpack.c.0.s8 %v1416
        %v1418 = vlaneseq
        %v1419 = vshrl.u32 %v1418, 7
        %v1420 = vsub.s32 %v1417, %v1419
        %v1421 = vrot.slane %v1408, %v1420
        %v1423 = vunpack.c.l.s4 1966171168
        %v1424 = vunpack.c.0.s8 %v1423
        %v1425 = vlaneseq
        %v1426 = vshrl.u32 %v1425, 7
        %v1427 = vsub.s32 %v1424, %v1426
        %v1428 = vrot.slane %v1414, %v1427
        %v1429 = vcombine.high %v1421, %v1421
        %v1430 = vcombine.high %v1428, %v1428
        %v1432 = vunpack.c.l.s4 1966171168
        %v1433 = vunpack.c.0.s8 %v1432
        %v1434 = vlaneseq
        %v1435 = vshrl.u32 %v1434, 7
        %v1436 = vsub.s32 %v1433, %v1435
        %v1437 = vrot.slane %v1421, %v1436
        %v1439 = vunpack.c.l.s4 1966171168
        %v1440 = vunpack.c.0.s8 %v1439
        %v1441 = vlaneseq
        %v1442 = vshrl.u32 %v1441, 7
        %v1443 = vsub.s32 %v1440, %v1442
        %v1444 = vrot.slane %v1428, %v1443
        %v1446 = vunpack.c.l.s4 1966171168
        %v1447 = vunpack.c.0.s8 %v1446
        %v1448 = vlaneseq
        %v1449 = vshrl.u32 %v1448, 7
        %v1450 = vsub.s32 %v1447, %v1449
        %v1451 = vrot.slane %v1429, %v1450
        %v1453 = vunpack.c.l.s4 1966171168
        %v1454 = vunpack.c.0.s8 %v1453
        %v1455 = vlaneseq
        %v1456 = vshrl.u32 %v1455, 7
        %v1457 = vsub.s32 %v1454, %v1456
        %v1458 = vrot.slane %v1430, %v1457
        %v1459 = vcombine.high %v1437, %v1437
        %v1460 = vcombine.high %v1444, %v1444
        %v1461 = vcombine.high %v1451, %v1451
        %v1462 = vcombine.high %v1458, %v1458
        %v1471 = vpack.c.bf16 %v1408, %v1408
        %v1472 = vld [vmem:[%s8] sm:$0xff]
        %v1473 = vld [vmem:[%s8 + $0x8] sm:$0xff]
        %v1474 = vld [vmem:[%s8 + $0x10] sm:$0xff]
        %v1475 = vld [vmem:[%s8 + $0x18] sm:$0xff]
        %v1476 = vld [vmem:[%s9] sm:$0x3]
        %v1478 = vlaneseq
        %v1479 = vshrl.u32 %v1478, 7
        %v1480 = vsub.s32 0, %v1479
        %v1481 = vrot.slane %v1476, %v1480
        %v1482 = vlaneseq
        %v1483 = vshrl.u32 %v1482, 7
        %v1484 = vsub.s32 1, %v1483
        %v1485 = vrot.slane %v1476, %v1484
        %v1492 = vunpack.c.l.b16 %v1472
        %v1493 = vunpack.c.h.b16 %v1472
        %v1494 = vunpack.c.l.b16 %v1473
        %v1495 = vunpack.c.h.b16 %v1473
        %v1496 = vunpack.c.l.b16 %v1474
        %v1497 = vunpack.c.h.b16 %v1474
        %v1498 = vunpack.c.l.b16 %v1475
        %v1499 = vunpack.c.h.b16 %v1475
        %v1500 = vpack.c.b16 %v1494, %v1492
        %v1501 = vpack.c.b16 %v1495, %v1493
        %v1502 = vpack.c.b16 %v1498, %v1496
        %v1503 = vpack.c.b16 %v1499, %v1497
        %v1509 = vsel %vm1132, %v1471, 0
        %1511 = vmatprep.subr.bf16.mxu0 %v1501
        %1512 = vmatpush1.bf16.msra.mxu0 %v1500
        %1513 = vmatprep.subr.bf16.mxu0 %v1503
        %1514 = vmatpush1.bf16.msra.mxu0 %v1502
        %1515 = vmatprep.subr.bf16.mxu0 0
        %1516 = vmatpush1.bf16.msra.mxu0 0
        %1517 = vmatprep.subr.bf16.mxu0 0
        %1518 = vmatpush1.bf16.msra.mxu0 0
        %1519 = vmatprep.subr.bf16.mxu0 0
        %1520 = vmatpush1.bf16.msra.mxu0 0
        %1521 = vmatprep.subr.bf16.mxu0 0
        %1522 = vmatpush1.bf16.msra.mxu0 0
        %1523 = vmatprep.subr.bf16.mxu0 0
        %1524 = vmatpush1.bf16.msra.mxu0 0
        %1525 = vmatprep.subr.bf16.mxu0 0
        %1526 = vmatpush1.bf16.msra.mxu0 0
        %1527 = vmatprep.subr.bf16.mxu0 0
        %1528 = vmatpush1.bf16.msra.mxu0 0
        %1529 = vmatprep.subr.bf16.mxu0 0
        %1530 = vmatpush1.bf16.msra.mxu0 0
        %1531 = vmatprep.subr.bf16.mxu0 0
        %1532 = vmatpush1.bf16.msra.mxu0 0
        %1533 = vmatprep.subr.bf16.mxu0 0
        %1534 = vmatpush1.bf16.msra.mxu0 0
        %1535 = vmatprep.subr.bf16.mxu0 0
        %1536 = vmatpush1.bf16.msra.mxu0 0
        %1537 = vmatprep.subr.bf16.mxu0 0
        %1538 = vmatpush1.bf16.msra.mxu0 0
        %1539 = vmatprep.subr.bf16.mxu0 0
        %1540 = vmatpush1.bf16.msra.mxu0 0
        %1541 = vmatprep.subr.bf16.mxu0 0
        %1542 = vmatpush1.bf16.msra.mxu0 0
        %1543 = vmatprep.mubr.bf16.mxu0 0
        %1544 = vmatmul.mubr.bf16.gmra.mrb[0].mxu0 %v1509
        %v1545 = vpop.f32.mrb[0].mxu0
        %v1546 = vadd.f32 %v1481, %v1545
        %v1547 = vpop.f32.mrb[0].mxu0
        %v1548 = vadd.f32 %v1485, %v1547
        %v1549 = vpop.f32.mrb[0].mxu0
        %v1550 = vpop.f32.mrb[0].mxu0
        %1551 = vdwg.mxu0
        %v1554 = vcombine.low %v1546, %v1548
        %v1555 = vcombine.high %v1546, %v1548
        %v1557 = vunpack.c.l.s4 1966171168
        %v1558 = vunpack.c.0.s8 %v1557
        %v1559 = vlaneseq
        %v1560 = vshrl.u32 %v1559, 7
        %v1561 = vsub.s32 %v1558, %v1560
        %v1562 = vrot.slane %v1554, %v1561
        %v1564 = vunpack.c.l.s4 1966171168
        %v1565 = vunpack.c.0.s8 %v1564
        %v1566 = vlaneseq
        %v1567 = vshrl.u32 %v1566, 7
        %v1568 = vsub.s32 %v1565, %v1567
        %v1569 = vrot.slane %v1555, %v1568
        %v1570 = vcombine.high %v1562, %v1562
        %v1571 = vcombine.high %v1569, %v1569
        %v1573 = vunpack.c.l.s4 1966171168
        %v1574 = vunpack.c.0.s8 %v1573
        %v1575 = vlaneseq
        %v1576 = vshrl.u32 %v1575, 7
        %v1577 = vsub.s32 %v1574, %v1576
        %v1578 = vrot.slane %v1562, %v1577
        %v1580 = vunpack.c.l.s4 1966171168
        %v1581 = vunpack.c.0.s8 %v1580
        %v1582 = vlaneseq
        %v1583 = vshrl.u32 %v1582, 7
        %v1584 = vsub.s32 %v1581, %v1583
        %v1585 = vrot.slane %v1569, %v1584
        %v1587 = vunpack.c.l.s4 1966171168
        %v1588 = vunpack.c.0.s8 %v1587
        %v1589 = vlaneseq
        %v1590 = vshrl.u32 %v1589, 7
        %v1591 = vsub.s32 %v1588, %v1590
        %v1592 = vrot.slane %v1570, %v1591
        %v1594 = vunpack.c.l.s4 1966171168
        %v1595 = vunpack.c.0.s8 %v1594
        %v1596 = vlaneseq
        %v1597 = vshrl.u32 %v1596, 7
        %v1598 = vsub.s32 %v1595, %v1597
        %v1599 = vrot.slane %v1571, %v1598
        %v1600 = vcombine.high %v1578, %v1578
        %v1601 = vcombine.high %v1585, %v1585
        %v1602 = vcombine.high %v1592, %v1592
        %v1603 = vcombine.high %v1599, %v1599
        %1612 = vst [vmem:[#allocation2] sm:$0x1] %v1578
        %1613 = vst [vmem:[#allocation2 + $0x1] sm:$0x1] %v1592
        %1614 = vst [vmem:[#allocation2 + $0x2] sm:$0x1] %v1600
        %1615 = vst [vmem:[#allocation2 + $0x3] sm:$0x1] %v1602
        %1616 = vst [vmem:[#allocation2 + $0x4] sm:$0x1] %v1585
        %1617 = vst [vmem:[#allocation2 + $0x5] sm:$0x1] %v1599
        %1618 = vst [vmem:[#allocation2 + $0x6] sm:$0x1] %v1601
        %1619 = vst [vmem:[#allocation2 + $0x7] sm:$0x1] %v1603
        %v1620 = vlaneseq
        %v1621 = vshrl.u32 %v1620, 7
        %v1622 = vsub.s32 1, %v1621
        %v1623 = vrot.slane %v1578, %v1622
        %v1624 = vlaneseq
        %v1625 = vshrl.u32 %v1624, 7
        %v1626 = vsub.s32 1, %v1625
        %v1627 = vrot.slane %v1592, %v1626
        %v1628 = vlaneseq
        %v1629 = vshrl.u32 %v1628, 7
        %v1630 = vsub.s32 1, %v1629
        %v1631 = vrot.slane %v1600, %v1630
        %v1632 = vlaneseq
        %v1633 = vshrl.u32 %v1632, 7
        %v1634 = vsub.s32 1, %v1633
        %v1635 = vrot.slane %v1602, %v1634
        %v1636 = vlaneseq
        %v1637 = vshrl.u32 %v1636, 7
        %v1638 = vsub.s32 1, %v1637
        %v1639 = vrot.slane %v1585, %v1638
        %v1640 = vlaneseq
        %v1641 = vshrl.u32 %v1640, 7
        %v1642 = vsub.s32 1, %v1641
        %v1643 = vrot.slane %v1599, %v1642
        %v1644 = vlaneseq
        %v1645 = vshrl.u32 %v1644, 7
        %v1646 = vsub.s32 1, %v1645
        %v1647 = vrot.slane %v1601, %v1646
        %v1648 = vlaneseq
        %v1649 = vshrl.u32 %v1648, 7
        %v1650 = vsub.s32 1, %v1649
        %v1651 = vrot.slane %v1603, %v1650
        %1660 = vst [vmem:[#allocation3] sm:$0x1] %v1623
        %1661 = vst [vmem:[#allocation3 + $0x1] sm:$0x1] %v1627
        %1662 = vst [vmem:[#allocation3 + $0x2] sm:$0x1] %v1631
        %1663 = vst [vmem:[#allocation3 + $0x3] sm:$0x1] %v1635
        %1664 = vst [vmem:[#allocation3 + $0x4] sm:$0x1] %v1639
        %1665 = vst [vmem:[#allocation3 + $0x5] sm:$0x1] %v1643
        %1666 = vst [vmem:[#allocation3 + $0x6] sm:$0x1] %v1647
        %1667 = vst [vmem:[#allocation3 + $0x7] sm:$0x1] %v1651
        %v1668 = vld [vmem:[#allocation8] sm:$0xff]
        %v1669 = vld [vmem:[#allocation8 + $0x8] sm:$0xff]
        %v1670 = vld [vmem:[#allocation8 + $0x10] sm:$0xff]
        %v1671 = vld [vmem:[#allocation8 + $0x18] sm:$0xff]
        %v1672 = vld [vmem:[#allocation8 + $0x20] sm:$0xff]
        %v1673 = vld [vmem:[#allocation8 + $0x28] sm:$0xff]
        %v1674 = vld [vmem:[#allocation8 + $0x30] sm:$0xff]
        %v1675 = vld [vmem:[#allocation8 + $0x38] sm:$0xff]
        %v1676 = vld [vmem:[#allocation8 + $0x40] sm:$0xff]
        %v1677 = vld [vmem:[#allocation8 + $0x48] sm:$0xff]
        %v1678 = vld [vmem:[#allocation8 + $0x50] sm:$0xff]
        %v1679 = vld [vmem:[#allocation8 + $0x58] sm:$0xff]
        %v1680 = vld [vmem:[#allocation8 + $0x60] sm:$0xff]
        %v1681 = vld [vmem:[#allocation8 + $0x68] sm:$0xff]
        %v1682 = vld [vmem:[#allocation8 + $0x70] sm:$0xff]
        %v1683 = vld [vmem:[#allocation8 + $0x78] sm:$0xff]
        %v1684 = vld [vmem:[#allocation8 + $0x80] sm:$0xff]
        %v1685 = vld [vmem:[#allocation8 + $0x88] sm:$0xff]
        %v1686 = vld [vmem:[#allocation8 + $0x90] sm:$0xff]
        %v1687 = vld [vmem:[#allocation8 + $0x98] sm:$0xff]
        %v1688 = vld [vmem:[#allocation8 + $0xa0] sm:$0xff]
        %v1689 = vld [vmem:[#allocation8 + $0xa8] sm:$0xff]
        %v1690 = vld [vmem:[#allocation8 + $0xb0] sm:$0xff]
        %v1691 = vld [vmem:[#allocation8 + $0xb8] sm:$0xff]
        %v1692 = vld [vmem:[#allocation8 + $0xc0] sm:$0xff]
        %v1693 = vld [vmem:[#allocation8 + $0xc8] sm:$0xff]
        %v1694 = vld [vmem:[#allocation8 + $0xd0] sm:$0xff]
        %v1695 = vld [vmem:[#allocation8 + $0xd8] sm:$0xff]
        %v1696 = vld [vmem:[#allocation8 + $0xe0] sm:$0xff]
        %v1697 = vld [vmem:[#allocation8 + $0xe8] sm:$0xff]
        %v1698 = vld [vmem:[#allocation8 + $0xf0] sm:$0xff]
        %v1699 = vld [vmem:[#allocation8 + $0xf8] sm:$0xff]
        %v1700 = vld [vmem:[%s11] sm:$0x3]
        %v1701 = vpack.c.bf16 0.0, 0.0
        %v1718 = vunpack.c.l.b16 %v1668
        %v1719 = vunpack.c.h.b16 %v1668
        %v1720 = vunpack.c.l.b16 %v1670
        %v1721 = vunpack.c.h.b16 %v1670
        %v1722 = vunpack.c.l.b16 %v1672
        %v1723 = vunpack.c.h.b16 %v1672
        %v1724 = vunpack.c.l.b16 %v1674
        %v1725 = vunpack.c.h.b16 %v1674
        %v1726 = vunpack.c.l.b16 %v1676
        %v1727 = vunpack.c.h.b16 %v1676
        %v1728 = vunpack.c.l.b16 %v1678
        %v1729 = vunpack.c.h.b16 %v1678
        %v1730 = vunpack.c.l.b16 %v1680
        %v1731 = vunpack.c.h.b16 %v1680
        %v1732 = vunpack.c.l.b16 %v1682
        %v1733 = vunpack.c.h.b16 %v1682
        %v1734 = vunpack.c.l.b16 %v1684
        %v1735 = vunpack.c.h.b16 %v1684
        %v1736 = vunpack.c.l.b16 %v1686
        %v1737 = vunpack.c.h.b16 %v1686
        %v1738 = vunpack.c.l.b16 %v1688
        %v1739 = vunpack.c.h.b16 %v1688
        %v1740 = vunpack.c.l.b16 %v1690
        %v1741 = vunpack.c.h.b16 %v1690
        %v1742 = vunpack.c.l.b16 %v1692
        %v1743 = vunpack.c.h.b16 %v1692
        %v1744 = vunpack.c.l.b16 %v1694
        %v1745 = vunpack.c.h.b16 %v1694
        %v1746 = vunpack.c.l.b16 %v1696
        %v1747 = vunpack.c.h.b16 %v1696
        %v1748 = vunpack.c.l.b16 %v1698
        %v1749 = vunpack.c.h.b16 %v1698
        %v1750 = vpack.c.b16 %v1720, %v1718
        %v1751 = vpack.c.b16 %v1721, %v1719
        %v1752 = vpack.c.b16 %v1724, %v1722
        %v1753 = vpack.c.b16 %v1725, %v1723
        %v1754 = vpack.c.b16 %v1728, %v1726
        %v1755 = vpack.c.b16 %v1729, %v1727
        %v1756 = vpack.c.b16 %v1732, %v1730
        %v1757 = vpack.c.b16 %v1733, %v1731
        %v1758 = vpack.c.b16 %v1736, %v1734
        %v1759 = vpack.c.b16 %v1737, %v1735
        %v1760 = vpack.c.b16 %v1740, %v1738
        %v1761 = vpack.c.b16 %v1741, %v1739
        %v1762 = vpack.c.b16 %v1744, %v1742
        %v1763 = vpack.c.b16 %v1745, %v1743
        %v1764 = vpack.c.b16 %v1748, %v1746
        %v1765 = vpack.c.b16 %v1749, %v1747
        %1782 = vmatprep.subr.bf16.mxu0 %v1751
        %1783 = vmatpush1.bf16.msra.mxu0 %v1750
        %1784 = vmatprep.subr.bf16.mxu0 %v1753
        %1785 = vmatpush1.bf16.msra.mxu0 %v1752
        %1786 = vmatprep.subr.bf16.mxu0 %v1755
        %1787 = vmatpush1.bf16.msra.mxu0 %v1754
        %1788 = vmatprep.subr.bf16.mxu0 %v1757
        %1789 = vmatpush1.bf16.msra.mxu0 %v1756
        %1790 = vmatprep.subr.bf16.mxu0 %v1759
        %1791 = vmatpush1.bf16.msra.mxu0 %v1758
        %1792 = vmatprep.subr.bf16.mxu0 %v1761
        %1793 = vmatpush1.bf16.msra.mxu0 %v1760
        %1794 = vmatprep.subr.bf16.mxu0 %v1763
        %1795 = vmatpush1.bf16.msra.mxu0 %v1762
        %1796 = vmatprep.subr.bf16.mxu0 %v1765
        %1797 = vmatpush1.bf16.msra.mxu0 %v1764
        %1798 = vmatprep.subr.bf16.mxu0 0
        %1799 = vmatpush1.bf16.msra.mxu0 0
        %1800 = vmatprep.subr.bf16.mxu0 0
        %1801 = vmatpush1.bf16.msra.mxu0 0
        %1802 = vmatprep.subr.bf16.mxu0 0
        %1803 = vmatpush1.bf16.msra.mxu0 0
        %1804 = vmatprep.subr.bf16.mxu0 0
        %1805 = vmatpush1.bf16.msra.mxu0 0
        %1806 = vmatprep.subr.bf16.mxu0 0
        %1807 = vmatpush1.bf16.msra.mxu0 0
        %1808 = vmatprep.subr.bf16.mxu0 0
        %1809 = vmatpush1.bf16.msra.mxu0 0
        %1810 = vmatprep.subr.bf16.mxu0 0
        %1811 = vmatpush1.bf16.msra.mxu0 0
        %1812 = vmatprep.subr.bf16.mxu0 0
        %1813 = vmatpush1.bf16.msra.mxu0 0
        %1814 = vmatprep.mubr.bf16.mxu0 0
        %1815 = vmatmul.mubr.bf16.gmra.mrb[0].mxu0 %v1701
        %v1816 = vpop.f32.mrb[0].mxu0
        %v1817 = vadd.f32 0.0, %v1816
        %v1818 = vpop.f32.mrb[0].mxu0
        %v1819 = vadd.f32 0.0, %v1818
        %v1820 = vpop.f32.mrb[0].mxu0
        %v1821 = vpop.f32.mrb[0].mxu0
        %1822 = vdwg.mxu0
        %v1823 = vld [vmem:[#allocation2] sm:$0x1]
        %v1824 = vadd.f32 %v1817, %v1823
        %v1825 = vxor.u32 %v1824, 2147483648
        %v1826 = vmul.f32 %v1825, 1.442695
        %v1827 = vpow.pop %v1826
        %v1828 = vadd.f32 %v1827, 1.0
        %v1829 = vrcp.pop %v1828
        %v1830 = vmul.f32 1.0, %v1829
        %v1831 = vmul.f32 %v1830, 2.0
        %v1832 = vsub.f32 %v1831, 1.0
        %v1833 = vmul.f32 %v1830, 0.0
        %1835 = vrot.lane.b32.xlu0 %v1832, 64
        %v1836 = vpop.permute.xlu0 %1835
        %v1838 = vmul.f32 %v1830, %v1836
        %1840 = vrot.lane.b32.xlu0 %v1838, 32
        %v1841 = vpop.permute.xlu0 %1840
        %v1843 = vadd.f32 %v1833, %v1841
        %v1844 = vtanh.pop %v1843
        %1846 = vrot.lane.b32.xlu0 %v1844, 64
        %v1847 = vpop.permute.xlu0 %1846
        %v1849 = vmul.f32 %v1830, %v1847
        %s1850 = scalar_lea.vmem [#allocation3], 7
        %v1851 = vld [vmem:[%s1850] sm:$0x1]
        %v1852 = vadd.f32 %v1819, %v1851
        %v1853 = vxor.u32 %v1852, 2147483648
        %v1854 = vmul.f32 %v1853, 1.442695
        %v1855 = vpow.pop %v1854
        %v1856 = vadd.f32 %v1855, 1.0
        %v1857 = vrcp.pop %v1856
        %v1858 = vmul.f32 1.0, %v1857
        %v1859 = vmul.f32 %v1858, 2.0
        %v1860 = vsub.f32 %v1859, 1.0
        %v1861 = vmul.f32 %v1858, 0.0
        %1863 = vrot.lane.b32.xlu0 %v1860, 64
        %v1864 = vpop.permute.xlu0 %1863
        %v1866 = vmul.f32 %v1858, %v1864
        %1868 = vrot.lane.b32.xlu0 %v1866, 32
        %v1869 = vpop.permute.xlu0 %1868
        %v1871 = vadd.f32 %v1861, %v1869
        %v1872 = vtanh.pop %v1871
        %1874 = vrot.lane.b32.xlu0 %v1872, 64
        %v1875 = vpop.permute.xlu0 %1874
        %v1877 = vmul.f32 %v1858, %v1875
        %1879 = vrot.lane.b32.xlu0 %v1849, 32
        %v1880 = vpop.permute.xlu0 %1879
        %vm1882 = vcmask 253952
        %1883 = vst.msk [vmem:[#allocation4] sm:$0x1] %vm1882, %v1880
        %1885 = vrot.lane.b32.xlu0 %v1877, 32
        %v1886 = vpop.permute.xlu0 %1885
        %s1888 = scalar_lea.vmem [#allocation5], 7
        %1889 = vst.msk [vmem:[%s1888] sm:$0x1] %vm1882, %v1886
        %1890 = vst.msk [vmem:[#allocation6] sm:$0x1] %vm1882, 0.0
        %s1891 = scalar_lea.vmem [#allocation7], 7
        %1892 = vst.msk [vmem:[%s1891] sm:$0x1] %vm1882, 0.0
        %1893 = vrot.lane.b32.xlu0 %v1877, 64
        %v1894 = vpop.permute.xlu0 %1893
        %v1896 = vsel %vm1132, %v1880, %v1894
        %v1897 = vsel %vm833, %v1896, 0.0
        %vm1898 = vcmask 785408
        %v1899 = vsel %vm1898, %v1897, 0.0
        %v1900 = vpack.c.bf16 %v1899, %v1899
        %v1917 = vunpack.c.l.b16 %v1669
        %v1918 = vunpack.c.h.b16 %v1669
        %v1919 = vunpack.c.l.b16 %v1671
        %v1920 = vunpack.c.h.b16 %v1671
        %v1921 = vunpack.c.l.b16 %v1673
        %v1922 = vunpack.c.h.b16 %v1673
        %v1923 = vunpack.c.l.b16 %v1675
        %v1924 = vunpack.c.h.b16 %v1675
        %v1925 = vunpack.c.l.b16 %v1677
        %v1926 = vunpack.c.h.b16 %v1677
        %v1927 = vunpack.c.l.b16 %v1679
        %v1928 = vunpack.c.h.b16 %v1679
        %v1929 = vunpack.c.l.b16 %v1681
        %v1930 = vunpack.c.h.b16 %v1681
        %v1931 = vunpack.c.l.b16 %v1683
        %v1932 = vunpack.c.h.b16 %v1683
        %v1933 = vunpack.c.l.b16 %v1685
        %v1934 = vunpack.c.h.b16 %v1685
        %v1935 = vunpack.c.l.b16 %v1687
        %v1936 = vunpack.c.h.b16 %v1687
        %v1937 = vunpack.c.l.b16 %v1689
        %v1938 = vunpack.c.h.b16 %v1689
        %v1939 = vunpack.c.l.b16 %v1691
        %v1940 = vunpack.c.h.b16 %v1691
        %v1941 = vunpack.c.l.b16 %v1693
        %v1942 = vunpack.c.h.b16 %v1693
        %v1943 = vunpack.c.l.b16 %v1695
        %v1944 = vunpack.c.h.b16 %v1695
        %v1945 = vunpack.c.l.b16 %v1697
        %v1946 = vunpack.c.h.b16 %v1697
        %v1947 = vunpack.c.l.b16 %v1699
        %v1948 = vunpack.c.h.b16 %v1699
        %v1949 = vpack.c.b16 %v1919, %v1917
        %v1950 = vpack.c.b16 %v1920, %v1918
        %v1951 = vpack.c.b16 %v1923, %v1921
        %v1952 = vpack.c.b16 %v1924, %v1922
        %v1953 = vpack.c.b16 %v1927, %v1925
        %v1954 = vpack.c.b16 %v1928, %v1926
        %v1955 = vpack.c.b16 %v1931, %v1929
        %v1956 = vpack.c.b16 %v1932, %v1930
        %v1957 = vpack.c.b16 %v1935, %v1933
        %v1958 = vpack.c.b16 %v1936, %v1934
        %v1959 = vpack.c.b16 %v1939, %v1937
        %v1960 = vpack.c.b16 %v1940, %v1938
        %v1961 = vpack.c.b16 %v1943, %v1941
        %v1962 = vpack.c.b16 %v1944, %v1942
        %v1963 = vpack.c.b16 %v1947, %v1945
        %v1964 = vpack.c.b16 %v1948, %v1946
        %1981 = vmatprep.subr.bf16.mxu0 %v1751
        %1982 = vmatpush1.bf16.msra.mxu0 %v1750
        %1983 = vmatprep.subr.bf16.mxu0 %v1753
        %1984 = vmatpush1.bf16.msra.mxu0 %v1752
        %1985 = vmatprep.subr.bf16.mxu0 %v1755
        %1986 = vmatpush1.bf16.msra.mxu0 %v1754
        %1987 = vmatprep.subr.bf16.mxu0 %v1757
        %1988 = vmatpush1.bf16.msra.mxu0 %v1756
        %1989 = vmatprep.subr.bf16.mxu0 %v1759
        %1990 = vmatpush1.bf16.msra.mxu0 %v1758
        %1991 = vmatprep.subr.bf16.mxu0 %v1761
        %1992 = vmatpush1.bf16.msra.mxu0 %v1760
        %1993 = vmatprep.subr.bf16.mxu0 %v1763
        %1994 = vmatpush1.bf16.msra.mxu0 %v1762
        %1995 = vmatprep.subr.bf16.mxu0 %v1765
        %1996 = vmatpush1.bf16.msra.mxu0 %v1764
        %1997 = vmatprep.subr.bf16.mxu0 0
        %1998 = vmatpush1.bf16.msra.mxu0 0
        %1999 = vmatprep.subr.bf16.mxu0 0
        %2000 = vmatpush1.bf16.msra.mxu0 0
        %2001 = vmatprep.subr.bf16.mxu0 0
        %2002 = vmatpush1.bf16.msra.mxu0 0
        %2003 = vmatprep.subr.bf16.mxu0 0
        %2004 = vmatpush1.bf16.msra.mxu0 0
        %2005 = vmatprep.subr.bf16.mxu0 0
        %2006 = vmatpush1.bf16.msra.mxu0 0
        %2007 = vmatprep.subr.bf16.mxu0 0
        %2008 = vmatpush1.bf16.msra.mxu0 0
        %2009 = vmatprep.subr.bf16.mxu0 0
        %2010 = vmatpush1.bf16.msra.mxu0 0
        %2011 = vmatprep.subr.bf16.mxu0 0
        %2012 = vmatpush1.bf16.msra.mxu0 0
        %2013 = vmatprep.mubr.bf16.mxu0 0
        %2014 = vmatmul.mubr.bf16.gmra.mrb[0].mxu0 %v1900
        %v2015 = vpop.f32.mrb[0].mxu0
        %v2016 = vadd.f32 0.0, %v2015
        %v2017 = vpop.f32.mrb[0].mxu0
        %v2018 = vadd.f32 0.0, %v2017
        %v2019 = vpop.f32.mrb[0].mxu0
        %v2020 = vpop.f32.mrb[0].mxu0
        %2021 = vdwg.mxu0
        %2022 = vmatprep.subr.bf16.mxu0 %v1950
        %2023 = vmatpush1.bf16.msra.mxu0 %v1949
        %2024 = vmatprep.subr.bf16.mxu0 %v1952
        %2025 = vmatpush1.bf16.msra.mxu0 %v1951
        %2026 = vmatprep.subr.bf16.mxu0 %v1954
        %2027 = vmatpush1.bf16.msra.mxu0 %v1953
        %2028 = vmatprep.subr.bf16.mxu0 %v1956
        %2029 = vmatpush1.bf16.msra.mxu0 %v1955
        %2030 = vmatprep.subr.bf16.mxu0 %v1958
        %2031 = vmatpush1.bf16.msra.mxu0 %v1957
        %2032 = vmatprep.subr.bf16.mxu0 %v1960
        %2033 = vmatpush1.bf16.msra.mxu0 %v1959
        %2034 = vmatprep.subr.bf16.mxu0 %v1962
        %2035 = vmatpush1.bf16.msra.mxu0 %v1961
        %2036 = vmatprep.subr.bf16.mxu0 %v1964
        %2037 = vmatpush1.bf16.msra.mxu0 %v1963
        %2038 = vmatprep.subr.bf16.mxu0 0
        %2039 = vmatpush1.bf16.msra.mxu0 0
        %2040 = vmatprep.subr.bf16.mxu0 0
        %2041 = vmatpush1.bf16.msra.mxu0 0
        %2042 = vmatprep.subr.bf16.mxu0 0
        %2043 = vmatpush1.bf16.msra.mxu0 0
        %2044 = vmatprep.subr.bf16.mxu0 0
        %2045 = vmatpush1.bf16.msra.mxu0 0
        %2046 = vmatprep.subr.bf16.mxu0 0
        %2047 = vmatpush1.bf16.msra.mxu0 0
        %2048 = vmatprep.subr.bf16.mxu0 0
        %2049 = vmatpush1.bf16.msra.mxu0 0
        %2050 = vmatprep.subr.bf16.mxu0 0
        %2051 = vmatpush1.bf16.msra.mxu0 0
        %2052 = vmatprep.subr.bf16.mxu0 0
        %2053 = vmatpush1.bf16.msra.mxu0 0
        %2054 = vmatprep.mubr.bf16.mxu0 0
        %2055 = vmatmul.mubr.bf16.gmra.mrb[0].mxu0 %v1900
        %v2056 = vpop.f32.mrb[0].mxu0
        %v2057 = vadd.f32 0.0, %v2056
        %v2058 = vpop.f32.mrb[0].mxu0
        %v2059 = vadd.f32 0.0, %v2058
        %v2060 = vpop.f32.mrb[0].mxu0
        %v2061 = vpop.f32.mrb[0].mxu0
        %2062 = vdwg.mxu0
        %s2063 = scalar_lea.vmem [#allocation2], 1
        %v2064 = vld [vmem:[%s2063] sm:$0x1]
        %v2065 = vadd.f32 %v2016, %v2064
        %v2066 = vxor.u32 %v2065, 2147483648
        %v2067 = vmul.f32 %v2066, 1.442695
        %v2068 = vpow.pop %v2067
        %v2069 = vadd.f32 %v2068, 1.0
        %v2070 = vrcp.pop %v2069
        %v2071 = vmul.f32 1.0, %v2070
        %v2072 = vmul.f32 %v2071, 2.0
        %v2073 = vsub.f32 %v2072, 1.0
        %v2074 = vmul.f32 %v2071, %v1843
        %2076 = vrot.lane.b32.xlu0 %v2073, 64
        %v2077 = vpop.permute.xlu0 %2076
        %v2079 = vmul.f32 %v2071, %v2077
        %2081 = vrot.lane.b32.xlu0 %v2079, 32
        %v2082 = vpop.permute.xlu0 %2081
        %v2084 = vadd.f32 %v2074, %v2082
        %v2085 = vtanh.pop %v2084
        %2087 = vrot.lane.b32.xlu0 %v2085, 64
        %v2088 = vpop.permute.xlu0 %2087
        %v2090 = vmul.f32 %v2071, %v2088
        %s2091 = scalar_lea.vmem [#allocation3], 6
        %v2092 = vld [vmem:[%s2091] sm:$0x1]
        %v2093 = vadd.f32 %v2018, %v2092
        %v2094 = vxor.u32 %v2093, 2147483648
        %v2095 = vmul.f32 %v2094, 1.442695
        %v2096 = vpow.pop %v2095
        %v2097 = vadd.f32 %v2096, 1.0
        %v2098 = vrcp.pop %v2097
        %v2099 = vmul.f32 1.0, %v2098
        %v2100 = vmul.f32 %v2099, 2.0
        %v2101 = vsub.f32 %v2100, 1.0
        %v2102 = vmul.f32 %v2099, %v1871
        %2104 = vrot.lane.b32.xlu0 %v2101, 64
        %v2105 = vpop.permute.xlu0 %2104
        %v2107 = vmul.f32 %v2099, %v2105
        %2109 = vrot.lane.b32.xlu0 %v2107, 32
        %v2110 = vpop.permute.xlu0 %2109
        %v2112 = vadd.f32 %v2102, %v2110
        %v2113 = vtanh.pop %v2112
        %2115 = vrot.lane.b32.xlu0 %v2113, 64
        %v2116 = vpop.permute.xlu0 %2115
        %v2118 = vmul.f32 %v2099, %v2116
        %v2119 = vadd.f32 %v2057, %v1700
        %v2120 = vxor.u32 %v2119, 2147483648
        %v2121 = vmul.f32 %v2120, 1.442695
        %v2122 = vpow.pop %v2121
        %v2123 = vadd.f32 %v2122, 1.0
        %v2124 = vrcp.pop %v2123
        %v2125 = vmul.f32 1.0, %v2124
        %v2126 = vmul.f32 %v2125, 2.0
        %v2127 = vsub.f32 %v2126, 1.0
        %v2128 = vmul.f32 %v2125, 0.0
        %2130 = vrot.lane.b32.xlu0 %v2127, 64
        %v2131 = vpop.permute.xlu0 %2130
        %v2133 = vmul.f32 %v2125, %v2131
        %2135 = vrot.lane.b32.xlu0 %v2133, 32
        %v2136 = vpop.permute.xlu0 %2135
        %v2138 = vadd.f32 %v2128, %v2136
        %v2139 = vtanh.pop %v2138
        %2141 = vrot.lane.b32.xlu0 %v2139, 64
        %v2142 = vpop.permute.xlu0 %2141
        %v2144 = vmul.f32 %v2125, %v2142
        %v2146 = vlaneseq
        %v2147 = vshrl.u32 %v2146, 7
        %v2148 = vsub.s32 1, %v2147
        %v2149 = vrot.slane %v1700, %v2148
        %v2151 = vadd.f32 %v2059, %v2149
        %v2152 = vxor.u32 %v2151, 2147483648
        %v2153 = vmul.f32 %v2152, 1.442695
        %v2154 = vpow.pop %v2153
        %v2155 = vadd.f32 %v2154, 1.0
        %v2156 = vrcp.pop %v2155
        %v2157 = vmul.f32 1.0, %v2156
        %v2158 = vmul.f32 %v2157, 2.0
        %v2159 = vsub.f32 %v2158, 1.0
        %v2160 = vmul.f32 %v2157, 0.0
        %2162 = vrot.lane.b32.xlu0 %v2159, 64
        %v2163 = vpop.permute.xlu0 %2162
        %v2165 = vmul.f32 %v2157, %v2163
        %2167 = vrot.lane.b32.xlu0 %v2165, 32
        %v2168 = vpop.permute.xlu0 %2167
        %v2170 = vadd.f32 %v2160, %v2168
        %v2171 = vtanh.pop %v2170
        %2173 = vrot.lane.b32.xlu0 %v2171, 64
        %v2174 = vpop.permute.xlu0 %2173
        %v2176 = vmul.f32 %v2157, %v2174
        %2178 = vrot.lane.b32.xlu0 %v2090, 32
        %v2179 = vpop.permute.xlu0 %2178
        %s2181 = scalar_lea.vmem [#allocation4], 1
        %2182 = vst.msk [vmem:[%s2181] sm:$0x1] %vm1882, %v2179
        %2184 = vrot.lane.b32.xlu0 %v2118, 32
        %v2185 = vpop.permute.xlu0 %2184
        %s2187 = scalar_lea.vmem [#allocation5], 6
        %2188 = vst.msk [vmem:[%s2187] sm:$0x1] %vm1882, %v2185
        %2190 = vrot.lane.b32.xlu0 %v2144, 32
        %v2191 = vpop.permute.xlu0 %2190
        %2193 = vst.msk [vmem:[#allocation6] sm:$0x1] %vm1882, %v2191
        %2195 = vrot.lane.b32.xlu0 %v2176, 32
        %v2196 = vpop.permute.xlu0 %2195
        %2198 = vst.msk [vmem:[%s1891] sm:$0x1] %vm1882, %v2196
        %2199 = vrot.lane.b32.xlu0 %v2118, 64
        %v2200 = vpop.permute.xlu0 %2199
        %2202 = vrot.lane.b32.xlu0 %v2144, 96
        %v2203 = vpop.permute.xlu0 %2202
        %v2205 = vsel %vm1132, %v2179, %v2200
        %v2206 = vsel %vm833, %v2205, %v2203
        %v2207 = vsel %vm1898, %v2206, %v2176
        %v2208 = vpack.c.bf16 %v2207, %v2207
        %2209 = vmatprep.subr.bf16.mxu0 %v1751
        %2210 = vmatpush1.bf16.msra.mxu0 %v1750
        %2211 = vmatprep.subr.bf16.mxu0 %v1753
        %2212 = vmatpush1.bf16.msra.mxu0 %v1752
        %2213 = vmatprep.subr.bf16.mxu0 %v1755
        %2214 = vmatpush1.bf16.msra.mxu0 %v1754
        %2215 = vmatprep.subr.bf16.mxu0 %v1757
        %2216 = vmatpush1.bf16.msra.mxu0 %v1756
        %2217 = vmatprep.subr.bf16.mxu0 %v1759
        %2218 = vmatpush1.bf16.msra.mxu0 %v1758
        %2219 = vmatprep.subr.bf16.mxu0 %v1761
        %2220 = vmatpush1.bf16.msra.mxu0 %v1760
        %2221 = vmatprep.subr.bf16.mxu0 %v1763
        %2222 = vmatpush1.bf16.msra.mxu0 %v1762
        %2223 = vmatprep.subr.bf16.mxu0 %v1765
        %2224 = vmatpush1.bf16.msra.mxu0 %v1764
        %2225 = vmatprep.subr.bf16.mxu0 0
        %2226 = vmatpush1.bf16.msra.mxu0 0
        %2227 = vmatprep.subr.bf16.mxu0 0
        %2228 = vmatpush1.bf16.msra.mxu0 0
        %2229 = vmatprep.subr.bf16.mxu0 0
        %2230 = vmatpush1.bf16.msra.mxu0 0
        %2231 = vmatprep.subr.bf16.mxu0 0
        %2232 = vmatpush1.bf16.msra.mxu0 0
        %2233 = vmatprep.subr.bf16.mxu0 0
        %2234 = vmatpush1.bf16.msra.mxu0 0
        %2235 = vmatprep.subr.bf16.mxu0 0
        %2236 = vmatpush1.bf16.msra.mxu0 0
        %2237 = vmatprep.subr.bf16.mxu0 0
        %2238 = vmatpush1.bf16.msra.mxu0 0
        %2239 = vmatprep.subr.bf16.mxu0 0
        %2240 = vmatpush1.bf16.msra.mxu0 0
        %2241 = vmatprep.mubr.bf16.mxu0 0
        %2242 = vmatmul.mubr.bf16.gmra.mrb[0].mxu0 %v2208
        %v2243 = vpop.f32.mrb[0].mxu0
        %v2244 = vadd.f32 0.0, %v2243
        %v2245 = vpop.f32.mrb[0].mxu0
        %v2246 = vadd.f32 0.0, %v2245
        %v2247 = vpop.f32.mrb[0].mxu0
        %v2248 = vpop.f32.mrb[0].mxu0
        %2249 = vdwg.mxu0
        %2250 = vmatprep.subr.bf16.mxu0 %v1950
        %2251 = vmatpush1.bf16.msra.mxu0 %v1949
        %2252 = vmatprep.subr.bf16.mxu0 %v1952
        %2253 = vmatpush1.bf16.msra.mxu0 %v1951
        %2254 = vmatprep.subr.bf16.mxu0 %v1954
        %2255 = vmatpush1.bf16.msra.mxu0 %v1953
        %2256 = vmatprep.subr.bf16.mxu0 %v1956
        %2257 = vmatpush1.bf16.msra.mxu0 %v1955
        %2258 = vmatprep.subr.bf16.mxu0 %v1958
        %2259 = vmatpush1.bf16.msra.mxu0 %v1957
        %2260 = vmatprep.subr.bf16.mxu0 %v1960
        %2261 = vmatpush1.bf16.msra.mxu0 %v1959
        %2262 = vmatprep.subr.bf16.mxu0 %v1962
        %2263 = vmatpush1.bf16.msra.mxu0 %v1961
        %2264 = vmatprep.subr.bf16.mxu0 %v1964
        %2265 = vmatpush1.bf16.msra.mxu0 %v1963
        %2266 = vmatprep.subr.bf16.mxu0 0
        %2267 = vmatpush1.bf16.msra.mxu0 0
        %2268 = vmatprep.subr.bf16.mxu0 0
        %2269 = vmatpush1.bf16.msra.mxu0 0
        %2270 = vmatprep.subr.bf16.mxu0 0
        %2271 = vmatpush1.bf16.msra.mxu0 0
        %2272 = vmatprep.subr.bf16.mxu0 0
        %2273 = vmatpush1.bf16.msra.mxu0 0
        %2274 = vmatprep.subr.bf16.mxu0 0
        %2275 = vmatpush1.bf16.msra.mxu0 0
        %2276 = vmatprep.subr.bf16.mxu0 0
        %2277 = vmatpush1.bf16.msra.mxu0 0
        %2278 = vmatprep.subr.bf16.mxu0 0
        %2279 = vmatpush1.bf16.msra.mxu0 0
        %2280 = vmatprep.subr.bf16.mxu0 0
        %2281 = vmatpush1.bf16.msra.mxu0 0
        %2282 = vmatprep.mubr.bf16.mxu0 0
        %2283 = vmatmul.mubr.bf16.gmra.mrb[0].mxu0 %v2208
        %v2284 = vpop.f32.mrb[0].mxu0
        %v2285 = vadd.f32 0.0, %v2284
        %v2286 = vpop.f32.mrb[0].mxu0
        %v2287 = vadd.f32 0.0, %v2286
        %v2288 = vpop.f32.mrb[0].mxu0
        %v2289 = vpop.f32.mrb[0].mxu0
        %2290 = vdwg.mxu0
        %s2291 = scalar_lea.vmem [#allocation2], 2
        %v2292 = vld [vmem:[%s2291] sm:$0x1]
        %v2293 = vadd.f32 %v2244, %v2292
        %v2294 = vxor.u32 %v2293, 2147483648
        %v2295 = vmul.f32 %v2294, 1.442695
        %v2296 = vpow.pop %v2295
        %v2297 = vadd.f32 %v2296, 1.0
        %v2298 = vrcp.pop %v2297
        %v2299 = vmul.f32 1.0, %v2298
        %v2300 = vmul.f32 %v2299, 2.0
        %v2301 = vsub.f32 %v2300, 1.0
        %v2302 = vmul.f32 %v2299, %v2084
        %2304 = vrot.lane.b32.xlu0 %v2301, 64
        %v2305 = vpop.permute.xlu0 %2304
        %v2307 = vmul.f32 %v2299, %v2305
        %2309 = vrot.lane.b32.xlu0 %v2307, 32
        %v2310 = vpop.permute.xlu0 %2309
        %v2312 = vadd.f32 %v2302, %v2310
        %v2313 = vtanh.pop %v2312
        %2315 = vrot.lane.b32.xlu0 %v2313, 64
        %v2316 = vpop.permute.xlu0 %2315
        %v2318 = vmul.f32 %v2299, %v2316
        %s2319 = scalar_lea.vmem [#allocation3], 5
        %v2320 = vld [vmem:[%s2319] sm:$0x1]
        %v2321 = vadd.f32 %v2246, %v2320
        %v2322 = vxor.u32 %v2321, 2147483648
        %v2323 = vmul.f32 %v2322, 1.442695
        %v2324 = vpow.pop %v2323
        %v2325 = vadd.f32 %v2324, 1.0
        %v2326 = vrcp.pop %v2325
        %v2327 = vmul.f32 1.0, %v2326
        %v2328 = vmul.f32 %v2327, 2.0
        %v2329 = vsub.f32 %v2328, 1.0
        %v2330 = vmul.f32 %v2327, %v2112
        %2332 = vrot.lane.b32.xlu0 %v2329, 64
        %v2333 = vpop.permute.xlu0 %2332
        %v2335 = vmul.f32 %v2327, %v2333
        %2337 = vrot.lane.b32.xlu0 %v2335, 32
        %v2338 = vpop.permute.xlu0 %2337
        %v2340 = vadd.f32 %v2330, %v2338
        %v2341 = vtanh.pop %v2340
        %2343 = vrot.lane.b32.xlu0 %v2341, 64
        %v2344 = vpop.permute.xlu0 %2343
        %v2346 = vmul.f32 %v2327, %v2344
        %v2347 = vadd.f32 %v2285, %v1700
        %v2348 = vxor.u32 %v2347, 2147483648
        %v2349 = vmul.f32 %v2348, 1.442695
        %v2350 = vpow.pop %v2349
        %v2351 = vadd.f32 %v2350, 1.0
        %v2352 = vrcp.pop %v2351
        %v2353 = vmul.f32 1.0, %v2352
        %v2354 = vmul.f32 %v2353, 2.0
        %v2355 = vsub.f32 %v2354, 1.0
        %v2356 = vmul.f32 %v2353, %v2138
        %2358 = vrot.lane.b32.xlu0 %v2355, 64
        %v2359 = vpop.permute.xlu0 %2358
        %v2361 = vmul.f32 %v2353, %v2359
        %2363 = vrot.lane.b32.xlu0 %v2361, 32
        %v2364 = vpop.permute.xlu0 %2363
        %v2366 = vadd.f32 %v2356, %v2364
        %v2367 = vtanh.pop %v2366
        %2369 = vrot.lane.b32.xlu0 %v2367, 64
        %v2370 = vpop.permute.xlu0 %2369
        %v2372 = vmul.f32 %v2353, %v2370
        %v2373 = vadd.f32 %v2287, %v2149
        %v2374 = vxor.u32 %v2373, 2147483648
        %v2375 = vmul.f32 %v2374, 1.442695
        %v2376 = vpow.pop %v2375
        %v2377 = vadd.f32 %v2376, 1.0
        %v2378 = vrcp.pop %v2377
        %v2379 = vmul.f32 1.0, %v2378
        %v2380 = vmul.f32 %v2379, 2.0
        %v2381 = vsub.f32 %v2380, 1.0
        %v2382 = vmul.f32 %v2379, %v2170
        %2384 = vrot.lane.b32.xlu0 %v2381, 64
        %v2385 = vpop.permute.xlu0 %2384
        %v2387 = vmul.f32 %v2379, %v2385
        %2389 = vrot.lane.b32.xlu0 %v2387, 32
        %v2390 = vpop.permute.xlu0 %2389
        %v2392 = vadd.f32 %v2382, %v2390
        %v2393 = vtanh.pop %v2392
        %2395 = vrot.lane.b32.xlu0 %v2393, 64
        %v2396 = vpop.permute.xlu0 %2395
        %v2398 = vmul.f32 %v2379, %v2396
        %2400 = vrot.lane.b32.xlu0 %v2318, 32
        %v2401 = vpop.permute.xlu0 %2400
        %s2403 = scalar_lea.vmem [#allocation4], 2
        %2404 = vst.msk [vmem:[%s2403] sm:$0x1] %vm1882, %v2401
        %2406 = vrot.lane.b32.xlu0 %v2346, 32
        %v2407 = vpop.permute.xlu0 %2406
        %s2409 = scalar_lea.vmem [#allocation5], 5
        %2410 = vst.msk [vmem:[%s2409] sm:$0x1] %vm1882, %v2407
        %2412 = vrot.lane.b32.xlu0 %v2372, 32
        %v2413 = vpop.permute.xlu0 %2412
        %s2415 = scalar_lea.vmem [#allocation6], 1
        %2416 = vst.msk [vmem:[%s2415] sm:$0x1] %vm1882, %v2413
        %2418 = vrot.lane.b32.xlu0 %v2398, 32
        %v2419 = vpop.permute.xlu0 %2418
        %s2421 = scalar_lea.vmem [#allocation7], 6
        %2422 = vst.msk [vmem:[%s2421] sm:$0x1] %vm1882, %v2419
        %2423 = vrot.lane.b32.xlu0 %v2346, 64
        %v2424 = vpop.permute.xlu0 %2423
        %2426 = vrot.lane.b32.xlu0 %v2372, 96
        %v2427 = vpop.permute.xlu0 %2426
        %v2429 = vsel %vm1132, %v2401, %v2424
        %v2430 = vsel %vm833, %v2429, %v2427
        %v2431 = vsel %vm1898, %v2430, %v2398
        %v2432 = vpack.c.bf16 %v2431, %v2431
        %2433 = vmatprep.subr.bf16.mxu0 %v1751
        %2434 = vmatpush1.bf16.msra.mxu0 %v1750
        %2435 = vmatprep.subr.bf16.mxu0 %v1753
        %2436 = vmatpush1.bf16.msra.mxu0 %v1752
        %2437 = vmatprep.subr.bf16.mxu0 %v1755
        %2438 = vmatpush1.bf16.msra.mxu0 %v1754
        %2439 = vmatprep.subr.bf16.mxu0 %v1757
        %2440 = vmatpush1.bf16.msra.mxu0 %v1756
        %2441 = vmatprep.subr.bf16.mxu0 %v1759
        %2442 = vmatpush1.bf16.msra.mxu0 %v1758
        %2443 = vmatprep.subr.bf16.mxu0 %v1761
        %2444 = vmatpush1.bf16.msra.mxu0 %v1760
        %2445 = vmatprep.subr.bf16.mxu0 %v1763
        %2446 = vmatpush1.bf16.msra.mxu0 %v1762
        %2447 = vmatprep.subr.bf16.mxu0 %v1765
        %2448 = vmatpush1.bf16.msra.mxu0 %v1764
        %2449 = vmatprep.subr.bf16.mxu0 0
        %2450 = vmatpush1.bf16.msra.mxu0 0
        %2451 = vmatprep.subr.bf16.mxu0 0
        %2452 = vmatpush1.bf16.msra.mxu0 0
        %2453 = vmatprep.subr.bf16.mxu0 0
        %2454 = vmatpush1.bf16.msra.mxu0 0
        %2455 = vmatprep.subr.bf16.mxu0 0
        %2456 = vmatpush1.bf16.msra.mxu0 0
        %2457 = vmatprep.subr.bf16.mxu0 0
        %2458 = vmatpush1.bf16.msra.mxu0 0
        %2459 = vmatprep.subr.bf16.mxu0 0
        %2460 = vmatpush1.bf16.msra.mxu0 0
        %2461 = vmatprep.subr.bf16.mxu0 0
        %2462 = vmatpush1.bf16.msra.mxu0 0
        %2463 = vmatprep.subr.bf16.mxu0 0
        %2464 = vmatpush1.bf16.msra.mxu0 0
        %2465 = vmatprep.mubr.bf16.mxu0 0
        %2466 = vmatmul.mubr.bf16.gmra.mrb[0].mxu0 %v2432
        %v2467 = vpop.f32.mrb[0].mxu0
        %v2468 = vadd.f32 0.0, %v2467
        %v2469 = vpop.f32.mrb[0].mxu0
        %v2470 = vadd.f32 0.0, %v2469
        %v2471 = vpop.f32.mrb[0].mxu0
        %v2472 = vpop.f32.mrb[0].mxu0
        %2473 = vdwg.mxu0
        %2474 = vmatprep.subr.bf16.mxu0 %v1950
        %2475 = vmatpush1.bf16.msra.mxu0 %v1949
        %2476 = vmatprep.subr.bf16.mxu0 %v1952
        %2477 = vmatpush1.bf16.msra.mxu0 %v1951
        %2478 = vmatprep.subr.bf16.mxu0 %v1954
        %2479 = vmatpush1.bf16.msra.mxu0 %v1953
        %2480 = vmatprep.subr.bf16.mxu0 %v1956
        %2481 = vmatpush1.bf16.msra.mxu0 %v1955
        %2482 = vmatprep.subr.bf16.mxu0 %v1958
        %2483 = vmatpush1.bf16.msra.mxu0 %v1957
        %2484 = vmatprep.subr.bf16.mxu0 %v1960
        %2485 = vmatpush1.bf16.msra.mxu0 %v1959
        %2486 = vmatprep.subr.bf16.mxu0 %v1962
        %2487 = vmatpush1.bf16.msra.mxu0 %v1961
        %2488 = vmatprep.subr.bf16.mxu0 %v1964
        %2489 = vmatpush1.bf16.msra.mxu0 %v1963
        %2490 = vmatprep.subr.bf16.mxu0 0
        %2491 = vmatpush1.bf16.msra.mxu0 0
        %2492 = vmatprep.subr.bf16.mxu0 0
        %2493 = vmatpush1.bf16.msra.mxu0 0
        %2494 = vmatprep.subr.bf16.mxu0 0
        %2495 = vmatpush1.bf16.msra.mxu0 0
        %2496 = vmatprep.subr.bf16.mxu0 0
        %2497 = vmatpush1.bf16.msra.mxu0 0
        %2498 = vmatprep.subr.bf16.mxu0 0
        %2499 = vmatpush1.bf16.msra.mxu0 0
        %2500 = vmatprep.subr.bf16.mxu0 0
        %2501 = vmatpush1.bf16.msra.mxu0 0
        %2502 = vmatprep.subr.bf16.mxu0 0
        %2503 = vmatpush1.bf16.msra.mxu0 0
        %2504 = vmatprep.subr.bf16.mxu0 0
        %2505 = vmatpush1.bf16.msra.mxu0 0
        %2506 = vmatprep.mubr.bf16.mxu0 0
        %2507 = vmatmul.mubr.bf16.gmra.mrb[0].mxu0 %v2432
        %v2508 = vpop.f32.mrb[0].mxu0
        %v2509 = vadd.f32 0.0, %v2508
        %v2510 = vpop.f32.mrb[0].mxu0
        %v2511 = vadd.f32 0.0, %v2510
        %v2512 = vpop.f32.mrb[0].mxu0
        %v2513 = vpop.f32.mrb[0].mxu0
        %2514 = vdwg.mxu0
        %s2515 = scalar_lea.vmem [#allocation2], 3
        %v2516 = vld [vmem:[%s2515] sm:$0x1]
        %v2517 = vadd.f32 %v2468, %v2516
        %v2518 = vxor.u32 %v2517, 2147483648
        %v2519 = vmul.f32 %v2518, 1.442695
        %v2520 = vpow.pop %v2519
        %v2521 = vadd.f32 %v2520, 1.0
        %v2522 = vrcp.pop %v2521
        %v2523 = vmul.f32 1.0, %v2522
        %v2524 = vmul.f32 %v2523, 2.0
        %v2525 = vsub.f32 %v2524, 1.0
        %v2526 = vmul.f32 %v2523, %v2312
        %2528 = vrot.lane.b32.xlu0 %v2525, 64
        %v2529 = vpop.permute.xlu0 %2528
        %v2531 = vmul.f32 %v2523, %v2529
        %2533 = vrot.lane.b32.xlu0 %v2531, 32
        %v2534 = vpop.permute.xlu0 %2533
        %v2536 = vadd.f32 %v2526, %v2534
        %v2537 = vtanh.pop %v2536
        %2539 = vrot.lane.b32.xlu0 %v2537, 64
        %v2540 = vpop.permute.xlu0 %2539
        %v2542 = vmul.f32 %v2523, %v2540
        %s2543 = scalar_lea.vmem [#allocation3], 4
        %v2544 = vld [vmem:[%s2543] sm:$0x1]
        %v2545 = vadd.f32 %v2470, %v2544
        %v2546 = vxor.u32 %v2545, 2147483648
        %v2547 = vmul.f32 %v2546, 1.442695
        %v2548 = vpow.pop %v2547
        %v2549 = vadd.f32 %v2548, 1.0
        %v2550 = vrcp.pop %v2549
        %v2551 = vmul.f32 1.0, %v2550
        %v2552 = vmul.f32 %v2551, 2.0
        %v2553 = vsub.f32 %v2552, 1.0
        %v2554 = vmul.f32 %v2551, %v2340
        %2556 = vrot.lane.b32.xlu0 %v2553, 64
        %v2557 = vpop.permute.xlu0 %2556
        %v2559 = vmul.f32 %v2551, %v2557
        %2561 = vrot.lane.b32.xlu0 %v2559, 32
        %v2562 = vpop.permute.xlu0 %2561
        %v2564 = vadd.f32 %v2554, %v2562
        %v2565 = vtanh.pop %v2564
        %2567 = vrot.lane.b32.xlu0 %v2565, 64
        %v2568 = vpop.permute.xlu0 %2567
        %v2570 = vmul.f32 %v2551, %v2568
        %v2571 = vadd.f32 %v2509, %v1700
        %v2572 = vxor.u32 %v2571, 2147483648
        %v2573 = vmul.f32 %v2572, 1.442695
        %v2574 = vpow.pop %v2573
        %v2575 = vadd.f32 %v2574, 1.0
        %v2576 = vrcp.pop %v2575
        %v2577 = vmul.f32 1.0, %v2576
        %v2578 = vmul.f32 %v2577, 2.0
        %v2579 = vsub.f32 %v2578, 1.0
        %v2580 = vmul.f32 %v2577, %v2366
        %2582 = vrot.lane.b32.xlu0 %v2579, 64
        %v2583 = vpop.permute.xlu0 %2582
        %v2585 = vmul.f32 %v2577, %v2583
        %2587 = vrot.lane.b32.xlu0 %v2585, 32
        %v2588 = vpop.permute.xlu0 %2587
        %v2590 = vadd.f32 %v2580, %v2588
        %v2591 = vtanh.pop %v2590
        %2593 = vrot.lane.b32.xlu0 %v2591, 64
        %v2594 = vpop.permute.xlu0 %2593
        %v2596 = vmul.f32 %v2577, %v2594
        %v2597 = vadd.f32 %v2511, %v2149
        %v2598 = vxor.u32 %v2597, 2147483648
        %v2599 = vmul.f32 %v2598, 1.442695
        %v2600 = vpow.pop %v2599
        %v2601 = vadd.f32 %v2600, 1.0
        %v2602 = vrcp.pop %v2601
        %v2603 = vmul.f32 1.0, %v2602
        %v2604 = vmul.f32 %v2603, 2.0
        %v2605 = vsub.f32 %v2604, 1.0
        %v2606 = vmul.f32 %v2603, %v2392
        %2608 = vrot.lane.b32.xlu0 %v2605, 64
        %v2609 = vpop.permute.xlu0 %2608
        %v2611 = vmul.f32 %v2603, %v2609
        %2613 = vrot.lane.b32.xlu0 %v2611, 32
        %v2614 = vpop.permute.xlu0 %2613
        %v2616 = vadd.f32 %v2606, %v2614
        %v2617 = vtanh.pop %v2616
        %2619 = vrot.lane.b32.xlu0 %v2617, 64
        %v2620 = vpop.permute.xlu0 %2619
        %v2622 = vmul.f32 %v2603, %v2620
        %2624 = vrot.lane.b32.xlu0 %v2542, 32
        %v2625 = vpop.permute.xlu0 %2624
        %s2627 = scalar_lea.vmem [#allocation4], 3
        %2628 = vst.msk [vmem:[%s2627] sm:$0x1] %vm1882, %v2625
        %2630 = vrot.lane.b32.xlu0 %v2570, 32
        %v2631 = vpop.permute.xlu0 %2630
        %s2633 = scalar_lea.vmem [#allocation5], 4
        %2634 = vst.msk [vmem:[%s2633] sm:$0x1] %vm1882, %v2631
        %2636 = vrot.lane.b32.xlu0 %v2596, 32
        %v2637 = vpop.permute.xlu0 %2636
        %s2639 = scalar_lea.vmem [#allocation6], 2
        %2640 = vst.msk [vmem:[%s2639] sm:$0x1] %vm1882, %v2637
        %2642 = vrot.lane.b32.xlu0 %v2622, 32
        %v2643 = vpop.permute.xlu0 %2642
        %s2645 = scalar_lea.vmem [#allocation7], 5
        %2646 = vst.msk [vmem:[%s2645] sm:$0x1] %vm1882, %v2643
        %2647 = vrot.lane.b32.xlu0 %v2570, 64
        %v2648 = vpop.permute.xlu0 %2647
        %2650 = vrot.lane.b32.xlu0 %v2596, 96
        %v2651 = vpop.permute.xlu0 %2650
        %v2653 = vsel %vm1132, %v2625, %v2648
        %v2654 = vsel %vm833, %v2653, %v2651
        %v2655 = vsel %vm1898, %v2654, %v2622
        %v2656 = vpack.c.bf16 %v2655, %v2655
        %2657 = vmatprep.subr.bf16.mxu0 %v1751
        %2658 = vmatpush1.bf16.msra.mxu0 %v1750
        %2659 = vmatprep.subr.bf16.mxu0 %v1753
        %2660 = vmatpush1.bf16.msra.mxu0 %v1752
        %2661 = vmatprep.subr.bf16.mxu0 %v1755
        %2662 = vmatpush1.bf16.msra.mxu0 %v1754
        %2663 = vmatprep.subr.bf16.mxu0 %v1757
        %2664 = vmatpush1.bf16.msra.mxu0 %v1756
        %2665 = vmatprep.subr.bf16.mxu0 %v1759
        %2666 = vmatpush1.bf16.msra.mxu0 %v1758
        %2667 = vmatprep.subr.bf16.mxu0 %v1761
        %2668 = vmatpush1.bf16.msra.mxu0 %v1760
        %2669 = vmatprep.subr.bf16.mxu0 %v1763
        %2670 = vmatpush1.bf16.msra.mxu0 %v1762
        %2671 = vmatprep.subr.bf16.mxu0 %v1765
        %2672 = vmatpush1.bf16.msra.mxu0 %v1764
        %2673 = vmatprep.subr.bf16.mxu0 0
        %2674 = vmatpush1.bf16.msra.mxu0 0
        %2675 = vmatprep.subr.bf16.mxu0 0
        %2676 = vmatpush1.bf16.msra.mxu0 0
        %2677 = vmatprep.subr.bf16.mxu0 0
        %2678 = vmatpush1.bf16.msra.mxu0 0
        %2679 = vmatprep.subr.bf16.mxu0 0
        %2680 = vmatpush1.bf16.msra.mxu0 0
        %2681 = vmatprep.subr.bf16.mxu0 0
        %2682 = vmatpush1.bf16.msra.mxu0 0
        %2683 = vmatprep.subr.bf16.mxu0 0
        %2684 = vmatpush1.bf16.msra.mxu0 0
        %2685 = vmatprep.subr.bf16.mxu0 0
        %2686 = vmatpush1.bf16.msra.mxu0 0
        %2687 = vmatprep.subr.bf16.mxu0 0
        %2688 = vmatpush1.bf16.msra.mxu0 0
        %2689 = vmatprep.mubr.bf16.mxu0 0
        %2690 = vmatmul.mubr.bf16.gmra.mrb[0].mxu0 %v2656
        %v2691 = vpop.f32.mrb[0].mxu0
        %v2692 = vadd.f32 0.0, %v2691
        %v2693 = vpop.f32.mrb[0].mxu0
        %v2694 = vadd.f32 0.0, %v2693
        %v2695 = vpop.f32.mrb[0].mxu0
        %v2696 = vpop.f32.mrb[0].mxu0
        %2697 = vdwg.mxu0
        %2698 = vmatprep.subr.bf16.mxu0 %v1950
        %2699 = vmatpush1.bf16.msra.mxu0 %v1949
        %2700 = vmatprep.subr.bf16.mxu0 %v1952
        %2701 = vmatpush1.bf16.msra.mxu0 %v1951
        %2702 = vmatprep.subr.bf16.mxu0 %v1954
        %2703 = vmatpush1.bf16.msra.mxu0 %v1953
        %2704 = vmatprep.subr.bf16.mxu0 %v1956
        %2705 = vmatpush1.bf16.msra.mxu0 %v1955
        %2706 = vmatprep.subr.bf16.mxu0 %v1958
        %2707 = vmatpush1.bf16.msra.mxu0 %v1957
        %2708 = vmatprep.subr.bf16.mxu0 %v1960
        %2709 = vmatpush1.bf16.msra.mxu0 %v1959
        %2710 = vmatprep.subr.bf16.mxu0 %v1962
        %2711 = vmatpush1.bf16.msra.mxu0 %v1961
        %2712 = vmatprep.subr.bf16.mxu0 %v1964
        %2713 = vmatpush1.bf16.msra.mxu0 %v1963
        %2714 = vmatprep.subr.bf16.mxu0 0
        %2715 = vmatpush1.bf16.msra.mxu0 0
        %2716 = vmatprep.subr.bf16.mxu0 0
        %2717 = vmatpush1.bf16.msra.mxu0 0
        %2718 = vmatprep.subr.bf16.mxu0 0
        %2719 = vmatpush1.bf16.msra.mxu0 0
        %2720 = vmatprep.subr.bf16.mxu0 0
        %2721 = vmatpush1.bf16.msra.mxu0 0
        %2722 = vmatprep.subr.bf16.mxu0 0
        %2723 = vmatpush1.bf16.msra.mxu0 0
        %2724 = vmatprep.subr.bf16.mxu0 0
        %2725 = vmatpush1.bf16.msra.mxu0 0
        %2726 = vmatprep.subr.bf16.mxu0 0
        %2727 = vmatpush1.bf16.msra.mxu0 0
        %2728 = vmatprep.subr.bf16.mxu0 0
        %2729 = vmatpush1.bf16.msra.mxu0 0
        %2730 = vmatprep.mubr.bf16.mxu0 0
        %2731 = vmatmul.mubr.bf16.gmra.mrb[0].mxu0 %v2656
        %v2732 = vpop.f32.mrb[0].mxu0
        %v2733 = vadd.f32 0.0, %v2732
        %v2734 = vpop.f32.mrb[0].mxu0
        %v2735 = vadd.f32 0.0, %v2734
        %v2736 = vpop.f32.mrb[0].mxu0
        %v2737 = vpop.f32.mrb[0].mxu0
        %2738 = vdwg.mxu0
        %s2739 = scalar_lea.vmem [#allocation2], 4
        %v2740 = vld [vmem:[%s2739] sm:$0x1]
        %v2741 = vadd.f32 %v2692, %v2740
        %v2742 = vxor.u32 %v2741, 2147483648
        %v2743 = vmul.f32 %v2742, 1.442695
        %v2744 = vpow.pop %v2743
        %v2745 = vadd.f32 %v2744, 1.0
        %v2746 = vrcp.pop %v2745
        %v2747 = vmul.f32 1.0, %v2746
        %v2748 = vmul.f32 %v2747, 2.0
        %v2749 = vsub.f32 %v2748, 1.0
        %v2750 = vmul.f32 %v2747, %v2536
        %2752 = vrot.lane.b32.xlu0 %v2749, 64
        %v2753 = vpop.permute.xlu0 %2752
        %v2755 = vmul.f32 %v2747, %v2753
        %2757 = vrot.lane.b32.xlu0 %v2755, 32
        %v2758 = vpop.permute.xlu0 %2757
        %v2760 = vadd.f32 %v2750, %v2758
        %v2761 = vtanh.pop %v2760
        %2763 = vrot.lane.b32.xlu0 %v2761, 64
        %v2764 = vpop.permute.xlu0 %2763
        %v2766 = vmul.f32 %v2747, %v2764
        %s2767 = scalar_lea.vmem [#allocation3], 3
        %v2768 = vld [vmem:[%s2767] sm:$0x1]
        %v2769 = vadd.f32 %v2694, %v2768
        %v2770 = vxor.u32 %v2769, 2147483648
        %v2771 = vmul.f32 %v2770, 1.442695
        %v2772 = vpow.pop %v2771
        %v2773 = vadd.f32 %v2772, 1.0
        %v2774 = vrcp.pop %v2773
        %v2775 = vmul.f32 1.0, %v2774
        %v2776 = vmul.f32 %v2775, 2.0
        %v2777 = vsub.f32 %v2776, 1.0
        %v2778 = vmul.f32 %v2775, %v2564
        %2780 = vrot.lane.b32.xlu0 %v2777, 64
        %v2781 = vpop.permute.xlu0 %2780
        %v2783 = vmul.f32 %v2775, %v2781
        %2785 = vrot.lane.b32.xlu0 %v2783, 32
        %v2786 = vpop.permute.xlu0 %2785
        %v2788 = vadd.f32 %v2778, %v2786
        %v2789 = vtanh.pop %v2788
        %2791 = vrot.lane.b32.xlu0 %v2789, 64
        %v2792 = vpop.permute.xlu0 %2791
        %v2794 = vmul.f32 %v2775, %v2792
        %v2795 = vadd.f32 %v2733, %v1700
        %v2796 = vxor.u32 %v2795, 2147483648
        %v2797 = vmul.f32 %v2796, 1.442695
        %v2798 = vpow.pop %v2797
        %v2799 = vadd.f32 %v2798, 1.0
        %v2800 = vrcp.pop %v2799
        %v2801 = vmul.f32 1.0, %v2800
        %v2802 = vmul.f32 %v2801, 2.0
        %v2803 = vsub.f32 %v2802, 1.0
        %v2804 = vmul.f32 %v2801, %v2590
        %2806 = vrot.lane.b32.xlu0 %v2803, 64
        %v2807 = vpop.permute.xlu0 %2806
        %v2809 = vmul.f32 %v2801, %v2807
        %2811 = vrot.lane.b32.xlu0 %v2809, 32
        %v2812 = vpop.permute.xlu0 %2811
        %v2814 = vadd.f32 %v2804, %v2812
        %v2815 = vtanh.pop %v2814
        %2817 = vrot.lane.b32.xlu0 %v2815, 64
        %v2818 = vpop.permute.xlu0 %2817
        %v2820 = vmul.f32 %v2801, %v2818
        %v2821 = vadd.f32 %v2735, %v2149
        %v2822 = vxor.u32 %v2821, 2147483648
        %v2823 = vmul.f32 %v2822, 1.442695
        %v2824 = vpow.pop %v2823
        %v2825 = vadd.f32 %v2824, 1.0
        %v2826 = vrcp.pop %v2825
        %v2827 = vmul.f32 1.0, %v2826
        %v2828 = vmul.f32 %v2827, 2.0
        %v2829 = vsub.f32 %v2828, 1.0
        %v2830 = vmul.f32 %v2827, %v2616
        %2832 = vrot.lane.b32.xlu0 %v2829, 64
        %v2833 = vpop.permute.xlu0 %2832
        %v2835 = vmul.f32 %v2827, %v2833
        %2837 = vrot.lane.b32.xlu0 %v2835, 32
        %v2838 = vpop.permute.xlu0 %2837
        %v2840 = vadd.f32 %v2830, %v2838
        %v2841 = vtanh.pop %v2840
        %2843 = vrot.lane.b32.xlu0 %v2841, 64
        %v2844 = vpop.permute.xlu0 %2843
        %v2846 = vmul.f32 %v2827, %v2844
        %2848 = vrot.lane.b32.xlu0 %v2766, 32
        %v2849 = vpop.permute.xlu0 %2848
        %s2851 = scalar_lea.vmem [#allocation4], 4
        %2852 = vst.msk [vmem:[%s2851] sm:$0x1] %vm1882, %v2849
        %2854 = vrot.lane.b32.xlu0 %v2794, 32
        %v2855 = vpop.permute.xlu0 %2854
        %s2857 = scalar_lea.vmem [#allocation5], 3
        %2858 = vst.msk [vmem:[%s2857] sm:$0x1] %vm1882, %v2855
        %2860 = vrot.lane.b32.xlu0 %v2820, 32
        %v2861 = vpop.permute.xlu0 %2860
        %s2863 = scalar_lea.vmem [#allocation6], 3
        %2864 = vst.msk [vmem:[%s2863] sm:$0x1] %vm1882, %v2861
        %2866 = vrot.lane.b32.xlu0 %v2846, 32
        %v2867 = vpop.permute.xlu0 %2866
        %s2869 = scalar_lea.vmem [#allocation7], 4
        %2870 = vst.msk [vmem:[%s2869] sm:$0x1] %vm1882, %v2867
        %2871 = vrot.lane.b32.xlu0 %v2794, 64
        %v2872 = vpop.permute.xlu0 %2871
        %2874 = vrot.lane.b32.xlu0 %v2820, 96
        %v2875 = vpop.permute.xlu0 %2874
        %v2877 = vsel %vm1132, %v2849, %v2872
        %v2878 = vsel %vm833, %v2877, %v2875
        %v2879 = vsel %vm1898, %v2878, %v2846
        %v2880 = vpack.c.bf16 %v2879, %v2879
        %2881 = vmatprep.subr.bf16.mxu0 %v1751
        %2882 = vmatpush1.bf16.msra.mxu0 %v1750
        %2883 = vmatprep.subr.bf16.mxu0 %v1753
        %2884 = vmatpush1.bf16.msra.mxu0 %v1752
        %2885 = vmatprep.subr.bf16.mxu0 %v1755
        %2886 = vmatpush1.bf16.msra.mxu0 %v1754
        %2887 = vmatprep.subr.bf16.mxu0 %v1757
        %2888 = vmatpush1.bf16.msra.mxu0 %v1756
        %2889 = vmatprep.subr.bf16.mxu0 %v1759
        %2890 = vmatpush1.bf16.msra.mxu0 %v1758
        %2891 = vmatprep.subr.bf16.mxu0 %v1761
        %2892 = vmatpush1.bf16.msra.mxu0 %v1760
        %2893 = vmatprep.subr.bf16.mxu0 %v1763
        %2894 = vmatpush1.bf16.msra.mxu0 %v1762
        %2895 = vmatprep.subr.bf16.mxu0 %v1765
        %2896 = vmatpush1.bf16.msra.mxu0 %v1764
        %2897 = vmatprep.subr.bf16.mxu0 0
        %2898 = vmatpush1.bf16.msra.mxu0 0
        %2899 = vmatprep.subr.bf16.mxu0 0
        %2900 = vmatpush1.bf16.msra.mxu0 0
        %2901 = vmatprep.subr.bf16.mxu0 0
        %2902 = vmatpush1.bf16.msra.mxu0 0
        %2903 = vmatprep.subr.bf16.mxu0 0
        %2904 = vmatpush1.bf16.msra.mxu0 0
        %2905 = vmatprep.subr.bf16.mxu0 0
        %2906 = vmatpush1.bf16.msra.mxu0 0
        %2907 = vmatprep.subr.bf16.mxu0 0
        %2908 = vmatpush1.bf16.msra.mxu0 0
        %2909 = vmatprep.subr.bf16.mxu0 0
        %2910 = vmatpush1.bf16.msra.mxu0 0
        %2911 = vmatprep.subr.bf16.mxu0 0
        %2912 = vmatpush1.bf16.msra.mxu0 0
        %2913 = vmatprep.mubr.bf16.mxu0 0
        %2914 = vmatmul.mubr.bf16.gmra.mrb[0].mxu0 %v2880
        %v2915 = vpop.f32.mrb[0].mxu0
        %v2916 = vadd.f32 0.0, %v2915
        %v2917 = vpop.f32.mrb[0].mxu0
        %v2918 = vadd.f32 0.0, %v2917
        %v2919 = vpop.f32.mrb[0].mxu0
        %v2920 = vpop.f32.mrb[0].mxu0
        %2921 = vdwg.mxu0
        %2922 = vmatprep.subr.bf16.mxu0 %v1950
        %2923 = vmatpush1.bf16.msra.mxu0 %v1949
        %2924 = vmatprep.subr.bf16.mxu0 %v1952
        %2925 = vmatpush1.bf16.msra.mxu0 %v1951
        %2926 = vmatprep.subr.bf16.mxu0 %v1954
        %2927 = vmatpush1.bf16.msra.mxu0 %v1953
        %2928 = vmatprep.subr.bf16.mxu0 %v1956
        %2929 = vmatpush1.bf16.msra.mxu0 %v1955
        %2930 = vmatprep.subr.bf16.mxu0 %v1958
        %2931 = vmatpush1.bf16.msra.mxu0 %v1957
        %2932 = vmatprep.subr.bf16.mxu0 %v1960
        %2933 = vmatpush1.bf16.msra.mxu0 %v1959
        %2934 = vmatprep.subr.bf16.mxu0 %v1962
        %2935 = vmatpush1.bf16.msra.mxu0 %v1961
        %2936 = vmatprep.subr.bf16.mxu0 %v1964
        %2937 = vmatpush1.bf16.msra.mxu0 %v1963
        %2938 = vmatprep.subr.bf16.mxu0 0
        %2939 = vmatpush1.bf16.msra.mxu0 0
        %2940 = vmatprep.subr.bf16.mxu0 0
        %2941 = vmatpush1.bf16.msra.mxu0 0
        %2942 = vmatprep.subr.bf16.mxu0 0
        %2943 = vmatpush1.bf16.msra.mxu0 0
        %2944 = vmatprep.subr.bf16.mxu0 0
        %2945 = vmatpush1.bf16.msra.mxu0 0
        %2946 = vmatprep.subr.bf16.mxu0 0
        %2947 = vmatpush1.bf16.msra.mxu0 0
        %2948 = vmatprep.subr.bf16.mxu0 0
        %2949 = vmatpush1.bf16.msra.mxu0 0
        %2950 = vmatprep.subr.bf16.mxu0 0
        %2951 = vmatpush1.bf16.msra.mxu0 0
        %2952 = vmatprep.subr.bf16.mxu0 0
        %2953 = vmatpush1.bf16.msra.mxu0 0
        %2954 = vmatprep.mubr.bf16.mxu0 0
        %2955 = vmatmul.mubr.bf16.gmra.mrb[0].mxu0 %v2880
        %v2956 = vpop.f32.mrb[0].mxu0
        %v2957 = vadd.f32 0.0, %v2956
        %v2958 = vpop.f32.mrb[0].mxu0
        %v2959 = vadd.f32 0.0, %v2958
        %v2960 = vpop.f32.mrb[0].mxu0
        %v2961 = vpop.f32.mrb[0].mxu0
        %2962 = vdwg.mxu0
        %s2963 = scalar_lea.vmem [#allocation2], 5
        %v2964 = vld [vmem:[%s2963] sm:$0x1]
        %v2965 = vadd.f32 %v2916, %v2964
        %v2966 = vxor.u32 %v2965, 2147483648
        %v2967 = vmul.f32 %v2966, 1.442695
        %v2968 = vpow.pop %v2967
        %v2969 = vadd.f32 %v2968, 1.0
        %v2970 = vrcp.pop %v2969
        %v2971 = vmul.f32 1.0, %v2970
        %v2972 = vmul.f32 %v2971, 2.0
        %v2973 = vsub.f32 %v2972, 1.0
        %v2974 = vmul.f32 %v2971, %v2760
        %2976 = vrot.lane.b32.xlu0 %v2973, 64
        %v2977 = vpop.permute.xlu0 %2976
        %v2979 = vmul.f32 %v2971, %v2977
        %2981 = vrot.lane.b32.xlu0 %v2979, 32
        %v2982 = vpop.permute.xlu0 %2981
        %v2984 = vadd.f32 %v2974, %v2982
        %v2985 = vtanh.pop %v2984
        %2987 = vrot.lane.b32.xlu0 %v2985, 64
        %v2988 = vpop.permute.xlu0 %2987
        %v2990 = vmul.f32 %v2971, %v2988
        %s2991 = scalar_lea.vmem [#allocation3], 2
        %v2992 = vld [vmem:[%s2991] sm:$0x1]
        %v2993 = vadd.f32 %v2918, %v2992
        %v2994 = vxor.u32 %v2993, 2147483648
        %v2995 = vmul.f32 %v2994, 1.442695
        %v2996 = vpow.pop %v2995
        %v2997 = vadd.f32 %v2996, 1.0
        %v2998 = vrcp.pop %v2997
        %v2999 = vmul.f32 1.0, %v2998
        %v3000 = vmul.f32 %v2999, 2.0
        %v3001 = vsub.f32 %v3000, 1.0
        %v3002 = vmul.f32 %v2999, %v2788
        %3004 = vrot.lane.b32.xlu0 %v3001, 64
        %v3005 = vpop.permute.xlu0 %3004
        %v3007 = vmul.f32 %v2999, %v3005
        %3009 = vrot.lane.b32.xlu0 %v3007, 32
        %v3010 = vpop.permute.xlu0 %3009
        %v3012 = vadd.f32 %v3002, %v3010
        %v3013 = vtanh.pop %v3012
        %3015 = vrot.lane.b32.xlu0 %v3013, 64
        %v3016 = vpop.permute.xlu0 %3015
        %v3018 = vmul.f32 %v2999, %v3016
        %v3019 = vadd.f32 %v2957, %v1700
        %v3020 = vxor.u32 %v3019, 2147483648
        %v3021 = vmul.f32 %v3020, 1.442695
        %v3022 = vpow.pop %v3021
        %v3023 = vadd.f32 %v3022, 1.0
        %v3024 = vrcp.pop %v3023
        %v3025 = vmul.f32 1.0, %v3024
        %v3026 = vmul.f32 %v3025, 2.0
        %v3027 = vsub.f32 %v3026, 1.0
        %v3028 = vmul.f32 %v3025, %v2814
        %3030 = vrot.lane.b32.xlu0 %v3027, 64
        %v3031 = vpop.permute.xlu0 %3030
        %v3033 = vmul.f32 %v3025, %v3031
        %3035 = vrot.lane.b32.xlu0 %v3033, 32
        %v3036 = vpop.permute.xlu0 %3035
        %v3038 = vadd.f32 %v3028, %v3036
        %v3039 = vtanh.pop %v3038
        %3041 = vrot.lane.b32.xlu0 %v3039, 64
        %v3042 = vpop.permute.xlu0 %3041
        %v3044 = vmul.f32 %v3025, %v3042
        %v3045 = vadd.f32 %v2959, %v2149
        %v3046 = vxor.u32 %v3045, 2147483648
        %v3047 = vmul.f32 %v3046, 1.442695
        %v3048 = vpow.pop %v3047
        %v3049 = vadd.f32 %v3048, 1.0
        %v3050 = vrcp.pop %v3049
        %v3051 = vmul.f32 1.0, %v3050
        %v3052 = vmul.f32 %v3051, 2.0
        %v3053 = vsub.f32 %v3052, 1.0
        %v3054 = vmul.f32 %v3051, %v2840
        %3056 = vrot.lane.b32.xlu0 %v3053, 64
        %v3057 = vpop.permute.xlu0 %3056
        %v3059 = vmul.f32 %v3051, %v3057
        %3061 = vrot.lane.b32.xlu0 %v3059, 32
        %v3062 = vpop.permute.xlu0 %3061
        %v3064 = vadd.f32 %v3054, %v3062
        %v3065 = vtanh.pop %v3064
        %3067 = vrot.lane.b32.xlu0 %v3065, 64
        %v3068 = vpop.permute.xlu0 %3067
        %v3070 = vmul.f32 %v3051, %v3068
        %3072 = vrot.lane.b32.xlu0 %v2990, 32
        %v3073 = vpop.permute.xlu0 %3072
        %s3075 = scalar_lea.vmem [#allocation4], 5
        %3076 = vst.msk [vmem:[%s3075] sm:$0x1] %vm1882, %v3073
        %3078 = vrot.lane.b32.xlu0 %v3018, 32
        %v3079 = vpop.permute.xlu0 %3078
        %s3081 = scalar_lea.vmem [#allocation5], 2
        %3082 = vst.msk [vmem:[%s3081] sm:$0x1] %vm1882, %v3079
        %3084 = vrot.lane.b32.xlu0 %v3044, 32
        %v3085 = vpop.permute.xlu0 %3084
        %s3087 = scalar_lea.vmem [#allocation6], 4
        %3088 = vst.msk [vmem:[%s3087] sm:$0x1] %vm1882, %v3085
        %3090 = vrot.lane.b32.xlu0 %v3070, 32
        %v3091 = vpop.permute.xlu0 %3090
        %s3093 = scalar_lea.vmem [#allocation7], 3
        %3094 = vst.msk [vmem:[%s3093] sm:$0x1] %vm1882, %v3091
        %3095 = vrot.lane.b32.xlu0 %v3018, 64
        %v3096 = vpop.permute.xlu0 %3095
        %3098 = vrot.lane.b32.xlu0 %v3044, 96
        %v3099 = vpop.permute.xlu0 %3098
        %v3101 = vsel %vm1132, %v3073, %v3096
        %v3102 = vsel %vm833, %v3101, %v3099
        %v3103 = vsel %vm1898, %v3102, %v3070
        %v3104 = vpack.c.bf16 %v3103, %v3103
        %3105 = vmatprep.subr.bf16.mxu0 %v1751
        %3106 = vmatpush1.bf16.msra.mxu0 %v1750
        %3107 = vmatprep.subr.bf16.mxu0 %v1753
        %3108 = vmatpush1.bf16.msra.mxu0 %v1752
        %3109 = vmatprep.subr.bf16.mxu0 %v1755
        %3110 = vmatpush1.bf16.msra.mxu0 %v1754
        %3111 = vmatprep.subr.bf16.mxu0 %v1757
        %3112 = vmatpush1.bf16.msra.mxu0 %v1756
        %3113 = vmatprep.subr.bf16.mxu0 %v1759
        %3114 = vmatpush1.bf16.msra.mxu0 %v1758
        %3115 = vmatprep.subr.bf16.mxu0 %v1761
        %3116 = vmatpush1.bf16.msra.mxu0 %v1760
        %3117 = vmatprep.subr.bf16.mxu0 %v1763
        %3118 = vmatpush1.bf16.msra.mxu0 %v1762
        %3119 = vmatprep.subr.bf16.mxu0 %v1765
        %3120 = vmatpush1.bf16.msra.mxu0 %v1764
        %3121 = vmatprep.subr.bf16.mxu0 0
        %3122 = vmatpush1.bf16.msra.mxu0 0
        %3123 = vmatprep.subr.bf16.mxu0 0
        %3124 = vmatpush1.bf16.msra.mxu0 0
        %3125 = vmatprep.subr.bf16.mxu0 0
        %3126 = vmatpush1.bf16.msra.mxu0 0
        %3127 = vmatprep.subr.bf16.mxu0 0
        %3128 = vmatpush1.bf16.msra.mxu0 0
        %3129 = vmatprep.subr.bf16.mxu0 0
        %3130 = vmatpush1.bf16.msra.mxu0 0
        %3131 = vmatprep.subr.bf16.mxu0 0
        %3132 = vmatpush1.bf16.msra.mxu0 0
        %3133 = vmatprep.subr.bf16.mxu0 0
        %3134 = vmatpush1.bf16.msra.mxu0 0
        %3135 = vmatprep.subr.bf16.mxu0 0
        %3136 = vmatpush1.bf16.msra.mxu0 0
        %3137 = vmatprep.mubr.bf16.mxu0 0
        %3138 = vmatmul.mubr.bf16.gmra.mrb[0].mxu0 %v3104
        %v3139 = vpop.f32.mrb[0].mxu0
        %v3140 = vadd.f32 0.0, %v3139
        %v3141 = vpop.f32.mrb[0].mxu0
        %v3142 = vadd.f32 0.0, %v3141
        %v3143 = vpop.f32.mrb[0].mxu0
        %v3144 = vpop.f32.mrb[0].mxu0
        %3145 = vdwg.mxu0
        %3146 = vmatprep.subr.bf16.mxu0 %v1950
        %3147 = vmatpush1.bf16.msra.mxu0 %v1949
        %3148 = vmatprep.subr.bf16.mxu0 %v1952
        %3149 = vmatpush1.bf16.msra.mxu0 %v1951
        %3150 = vmatprep.subr.bf16.mxu0 %v1954
        %3151 = vmatpush1.bf16.msra.mxu0 %v1953
        %3152 = vmatprep.subr.bf16.mxu0 %v1956
        %3153 = vmatpush1.bf16.msra.mxu0 %v1955
        %3154 = vmatprep.subr.bf16.mxu0 %v1958
        %3155 = vmatpush1.bf16.msra.mxu0 %v1957
        %3156 = vmatprep.subr.bf16.mxu0 %v1960
        %3157 = vmatpush1.bf16.msra.mxu0 %v1959
        %3158 = vmatprep.subr.bf16.mxu0 %v1962
        %3159 = vmatpush1.bf16.msra.mxu0 %v1961
        %3160 = vmatprep.subr.bf16.mxu0 %v1964
        %3161 = vmatpush1.bf16.msra.mxu0 %v1963
        %3162 = vmatprep.subr.bf16.mxu0 0
        %3163 = vmatpush1.bf16.msra.mxu0 0
        %3164 = vmatprep.subr.bf16.mxu0 0
        %3165 = vmatpush1.bf16.msra.mxu0 0
        %3166 = vmatprep.subr.bf16.mxu0 0
        %3167 = vmatpush1.bf16.msra.mxu0 0
        %3168 = vmatprep.subr.bf16.mxu0 0
        %3169 = vmatpush1.bf16.msra.mxu0 0
        %3170 = vmatprep.subr.bf16.mxu0 0
        %3171 = vmatpush1.bf16.msra.mxu0 0
        %3172 = vmatprep.subr.bf16.mxu0 0
        %3173 = vmatpush1.bf16.msra.mxu0 0
        %3174 = vmatprep.subr.bf16.mxu0 0
        %3175 = vmatpush1.bf16.msra.mxu0 0
        %3176 = vmatprep.subr.bf16.mxu0 0
        %3177 = vmatpush1.bf16.msra.mxu0 0
        %3178 = vmatprep.mubr.bf16.mxu0 0
        %3179 = vmatmul.mubr.bf16.gmra.mrb[0].mxu0 %v3104
        %v3180 = vpop.f32.mrb[0].mxu0
        %v3181 = vadd.f32 0.0, %v3180
        %v3182 = vpop.f32.mrb[0].mxu0
        %v3183 = vadd.f32 0.0, %v3182
        %v3184 = vpop.f32.mrb[0].mxu0
        %v3185 = vpop.f32.mrb[0].mxu0
        %3186 = vdwg.mxu0
        %s3187 = scalar_lea.vmem [#allocation2], 6
        %v3188 = vld [vmem:[%s3187] sm:$0x1]
        %v3189 = vadd.f32 %v3140, %v3188
        %v3190 = vxor.u32 %v3189, 2147483648
        %v3191 = vmul.f32 %v3190, 1.442695
        %v3192 = vpow.pop %v3191
        %v3193 = vadd.f32 %v3192, 1.0
        %v3194 = vrcp.pop %v3193
        %v3195 = vmul.f32 1.0, %v3194
        %v3196 = vmul.f32 %v3195, 2.0
        %v3197 = vsub.f32 %v3196, 1.0
        %v3198 = vmul.f32 %v3195, %v2984
        %3200 = vrot.lane.b32.xlu0 %v3197, 64
        %v3201 = vpop.permute.xlu0 %3200
        %v3203 = vmul.f32 %v3195, %v3201
        %3205 = vrot.lane.b32.xlu0 %v3203, 32
        %v3206 = vpop.permute.xlu0 %3205
        %v3208 = vadd.f32 %v3198, %v3206
        %v3209 = vtanh.pop %v3208
        %3211 = vrot.lane.b32.xlu0 %v3209, 64
        %v3212 = vpop.permute.xlu0 %3211
        %v3214 = vmul.f32 %v3195, %v3212
        %s3215 = scalar_lea.vmem [#allocation3], 1
        %v3216 = vld [vmem:[%s3215] sm:$0x1]
        %v3217 = vadd.f32 %v3142, %v3216
        %v3218 = vxor.u32 %v3217, 2147483648
        %v3219 = vmul.f32 %v3218, 1.442695
        %v3220 = vpow.pop %v3219
        %v3221 = vadd.f32 %v3220, 1.0
        %v3222 = vrcp.pop %v3221
        %v3223 = vmul.f32 1.0, %v3222
        %v3224 = vmul.f32 %v3223, 2.0
        %v3225 = vsub.f32 %v3224, 1.0
        %v3226 = vmul.f32 %v3223, %v3012
        %3228 = vrot.lane.b32.xlu0 %v3225, 64
        %v3229 = vpop.permute.xlu0 %3228
        %v3231 = vmul.f32 %v3223, %v3229
        %3233 = vrot.lane.b32.xlu0 %v3231, 32
        %v3234 = vpop.permute.xlu0 %3233
        %v3236 = vadd.f32 %v3226, %v3234
        %v3237 = vtanh.pop %v3236
        %3239 = vrot.lane.b32.xlu0 %v3237, 64
        %v3240 = vpop.permute.xlu0 %3239
        %v3242 = vmul.f32 %v3223, %v3240
        %v3243 = vadd.f32 %v3181, %v1700
        %v3244 = vxor.u32 %v3243, 2147483648
        %v3245 = vmul.f32 %v3244, 1.442695
        %v3246 = vpow.pop %v3245
        %v3247 = vadd.f32 %v3246, 1.0
        %v3248 = vrcp.pop %v3247
        %v3249 = vmul.f32 1.0, %v3248
        %v3250 = vmul.f32 %v3249, 2.0
        %v3251 = vsub.f32 %v3250, 1.0
        %v3252 = vmul.f32 %v3249, %v3038
        %3254 = vrot.lane.b32.xlu0 %v3251, 64
        %v3255 = vpop.permute.xlu0 %3254
        %v3257 = vmul.f32 %v3249, %v3255
        %3259 = vrot.lane.b32.xlu0 %v3257, 32
        %v3260 = vpop.permute.xlu0 %3259
        %v3262 = vadd.f32 %v3252, %v3260
        %v3263 = vtanh.pop %v3262
        %3265 = vrot.lane.b32.xlu0 %v3263, 64
        %v3266 = vpop.permute.xlu0 %3265
        %v3268 = vmul.f32 %v3249, %v3266
        %v3269 = vadd.f32 %v3183, %v2149
        %v3270 = vxor.u32 %v3269, 2147483648
        %v3271 = vmul.f32 %v3270, 1.442695
        %v3272 = vpow.pop %v3271
        %v3273 = vadd.f32 %v3272, 1.0
        %v3274 = vrcp.pop %v3273
        %v3275 = vmul.f32 1.0, %v3274
        %v3276 = vmul.f32 %v3275, 2.0
        %v3277 = vsub.f32 %v3276, 1.0
        %v3278 = vmul.f32 %v3275, %v3064
        %3280 = vrot.lane.b32.xlu0 %v3277, 64
        %v3281 = vpop.permute.xlu0 %3280
        %v3283 = vmul.f32 %v3275, %v3281
        %3285 = vrot.lane.b32.xlu0 %v3283, 32
        %v3286 = vpop.permute.xlu0 %3285
        %v3288 = vadd.f32 %v3278, %v3286
        %v3289 = vtanh.pop %v3288
        %3291 = vrot.lane.b32.xlu0 %v3289, 64
        %v3292 = vpop.permute.xlu0 %3291
        %v3294 = vmul.f32 %v3275, %v3292
        %3296 = vrot.lane.b32.xlu0 %v3214, 32
        %v3297 = vpop.permute.xlu0 %3296
        %s3299 = scalar_lea.vmem [#allocation4], 6
        %3300 = vst.msk [vmem:[%s3299] sm:$0x1] %vm1882, %v3297
        %3302 = vrot.lane.b32.xlu0 %v3242, 32
        %v3303 = vpop.permute.xlu0 %3302
        %s3305 = scalar_lea.vmem [#allocation5], 1
        %3306 = vst.msk [vmem:[%s3305] sm:$0x1] %vm1882, %v3303
        %3308 = vrot.lane.b32.xlu0 %v3268, 32
        %v3309 = vpop.permute.xlu0 %3308
        %s3311 = scalar_lea.vmem [#allocation6], 5
        %3312 = vst.msk [vmem:[%s3311] sm:$0x1] %vm1882, %v3309
        %3314 = vrot.lane.b32.xlu0 %v3294, 32
        %v3315 = vpop.permute.xlu0 %3314
        %s3317 = scalar_lea.vmem [#allocation7], 2
        %3318 = vst.msk [vmem:[%s3317] sm:$0x1] %vm1882, %v3315
        %3319 = vrot.lane.b32.xlu0 %v3242, 64
        %v3320 = vpop.permute.xlu0 %3319
        %3322 = vrot.lane.b32.xlu0 %v3268, 96
        %v3323 = vpop.permute.xlu0 %3322
        %v3325 = vsel %vm1132, %v3297, %v3320
        %v3326 = vsel %vm833, %v3325, %v3323
        %v3327 = vsel %vm1898, %v3326, %v3294
        %v3328 = vpack.c.bf16 %v3327, %v3327
        %3329 = vmatprep.subr.bf16.mxu0 %v1751
        %3330 = vmatpush1.bf16.msra.mxu0 %v1750
        %3331 = vmatprep.subr.bf16.mxu0 %v1753
        %3332 = vmatpush1.bf16.msra.mxu0 %v1752
        %3333 = vmatprep.subr.bf16.mxu0 %v1755
        %3334 = vmatpush1.bf16.msra.mxu0 %v1754
        %3335 = vmatprep.subr.bf16.mxu0 %v1757
        %3336 = vmatpush1.bf16.msra.mxu0 %v1756
        %3337 = vmatprep.subr.bf16.mxu0 %v1759
        %3338 = vmatpush1.bf16.msra.mxu0 %v1758
        %3339 = vmatprep.subr.bf16.mxu0 %v1761
        %3340 = vmatpush1.bf16.msra.mxu0 %v1760
        %3341 = vmatprep.subr.bf16.mxu0 %v1763
        %3342 = vmatpush1.bf16.msra.mxu0 %v1762
        %3343 = vmatprep.subr.bf16.mxu0 %v1765
        %3344 = vmatpush1.bf16.msra.mxu0 %v1764
        %3345 = vmatprep.subr.bf16.mxu0 0
        %3346 = vmatpush1.bf16.msra.mxu0 0
        %3347 = vmatprep.subr.bf16.mxu0 0
        %3348 = vmatpush1.bf16.msra.mxu0 0
        %3349 = vmatprep.subr.bf16.mxu0 0
        %3350 = vmatpush1.bf16.msra.mxu0 0
        %3351 = vmatprep.subr.bf16.mxu0 0
        %3352 = vmatpush1.bf16.msra.mxu0 0
        %3353 = vmatprep.subr.bf16.mxu0 0
        %3354 = vmatpush1.bf16.msra.mxu0 0
        %3355 = vmatprep.subr.bf16.mxu0 0
        %3356 = vmatpush1.bf16.msra.mxu0 0
        %3357 = vmatprep.subr.bf16.mxu0 0
        %3358 = vmatpush1.bf16.msra.mxu0 0
        %3359 = vmatprep.subr.bf16.mxu0 0
        %3360 = vmatpush1.bf16.msra.mxu0 0
        %3361 = vmatprep.mubr.bf16.mxu0 0
        %3362 = vmatmul.mubr.bf16.gmra.mrb[0].mxu0 %v3328
        %v3363 = vpop.f32.mrb[0].mxu0
        %v3364 = vadd.f32 0.0, %v3363
        %v3365 = vpop.f32.mrb[0].mxu0
        %v3366 = vadd.f32 0.0, %v3365
        %v3367 = vpop.f32.mrb[0].mxu0
        %v3368 = vpop.f32.mrb[0].mxu0
        %3369 = vdwg.mxu0
        %3370 = vmatprep.subr.bf16.mxu0 %v1950
        %3371 = vmatpush1.bf16.msra.mxu0 %v1949
        %3372 = vmatprep.subr.bf16.mxu0 %v1952
        %3373 = vmatpush1.bf16.msra.mxu0 %v1951
        %3374 = vmatprep.subr.bf16.mxu0 %v1954
        %3375 = vmatpush1.bf16.msra.mxu0 %v1953
        %3376 = vmatprep.subr.bf16.mxu0 %v1956
        %3377 = vmatpush1.bf16.msra.mxu0 %v1955
        %3378 = vmatprep.subr.bf16.mxu0 %v1958
        %3379 = vmatpush1.bf16.msra.mxu0 %v1957
        %3380 = vmatprep.subr.bf16.mxu0 %v1960
        %3381 = vmatpush1.bf16.msra.mxu0 %v1959
        %3382 = vmatprep.subr.bf16.mxu0 %v1962
        %3383 = vmatpush1.bf16.msra.mxu0 %v1961
        %3384 = vmatprep.subr.bf16.mxu0 %v1964
        %3385 = vmatpush1.bf16.msra.mxu0 %v1963
        %3386 = vmatprep.subr.bf16.mxu0 0
        %3387 = vmatpush1.bf16.msra.mxu0 0
        %3388 = vmatprep.subr.bf16.mxu0 0
        %3389 = vmatpush1.bf16.msra.mxu0 0
        %3390 = vmatprep.subr.bf16.mxu0 0
        %3391 = vmatpush1.bf16.msra.mxu0 0
        %3392 = vmatprep.subr.bf16.mxu0 0
        %3393 = vmatpush1.bf16.msra.mxu0 0
        %3394 = vmatprep.subr.bf16.mxu0 0
        %3395 = vmatpush1.bf16.msra.mxu0 0
        %3396 = vmatprep.subr.bf16.mxu0 0
        %3397 = vmatpush1.bf16.msra.mxu0 0
        %3398 = vmatprep.subr.bf16.mxu0 0
        %3399 = vmatpush1.bf16.msra.mxu0 0
        %3400 = vmatprep.subr.bf16.mxu0 0
        %3401 = vmatpush1.bf16.msra.mxu0 0
        %3402 = vmatprep.mubr.bf16.mxu0 0
        %3403 = vmatmul.mubr.bf16.gmra.mrb[0].mxu0 %v3328
        %v3404 = vpop.f32.mrb[0].mxu0
        %v3405 = vadd.f32 0.0, %v3404
        %v3406 = vpop.f32.mrb[0].mxu0
        %v3407 = vadd.f32 0.0, %v3406
        %v3408 = vpop.f32.mrb[0].mxu0
        %v3409 = vpop.f32.mrb[0].mxu0
        %3410 = vdwg.mxu0
        %s3411 = scalar_lea.vmem [#allocation2], 7
        %v3412 = vld [vmem:[%s3411] sm:$0x1]
        %v3413 = vadd.f32 %v3364, %v3412
        %v3414 = vxor.u32 %v3413, 2147483648
        %v3415 = vmul.f32 %v3414, 1.442695
        %v3416 = vpow.pop %v3415
        %v3417 = vadd.f32 %v3416, 1.0
        %v3418 = vrcp.pop %v3417
        %v3419 = vmul.f32 1.0, %v3418
        %v3420 = vmul.f32 %v3419, 2.0
        %v3421 = vsub.f32 %v3420, 1.0
        %v3422 = vmul.f32 %v3419, %v3208
        %3424 = vrot.lane.b32.xlu0 %v3421, 64
        %v3425 = vpop.permute.xlu0 %3424
        %v3427 = vmul.f32 %v3419, %v3425
        %3429 = vrot.lane.b32.xlu0 %v3427, 32
        %v3430 = vpop.permute.xlu0 %3429
        %v3432 = vadd.f32 %v3422, %v3430
        %v3433 = vtanh.pop %v3432
        %3435 = vrot.lane.b32.xlu0 %v3433, 64
        %v3436 = vpop.permute.xlu0 %3435
        %v3438 = vmul.f32 %v3419, %v3436
        %v3439 = vld [vmem:[#allocation3] sm:$0x1]
        %v3440 = vadd.f32 %v3366, %v3439
        %v3441 = vxor.u32 %v3440, 2147483648
        %v3442 = vmul.f32 %v3441, 1.442695
        %v3443 = vpow.pop %v3442
        %v3444 = vadd.f32 %v3443, 1.0
        %v3445 = vrcp.pop %v3444
        %v3446 = vmul.f32 1.0, %v3445
        %v3447 = vmul.f32 %v3446, 2.0
        %v3448 = vsub.f32 %v3447, 1.0
        %v3449 = vmul.f32 %v3446, %v3236
        %3451 = vrot.lane.b32.xlu0 %v3448, 64
        %v3452 = vpop.permute.xlu0 %3451
        %v3454 = vmul.f32 %v3446, %v3452
        %3456 = vrot.lane.b32.xlu0 %v3454, 32
        %v3457 = vpop.permute.xlu0 %3456
        %v3459 = vadd.f32 %v3449, %v3457
        %v3460 = vtanh.pop %v3459
        %3462 = vrot.lane.b32.xlu0 %v3460, 64
        %v3463 = vpop.permute.xlu0 %3462
        %v3465 = vmul.f32 %v3446, %v3463
        %v3466 = vadd.f32 %v3405, %v1700
        %v3467 = vxor.u32 %v3466, 2147483648
        %v3468 = vmul.f32 %v3467, 1.442695
        %v3469 = vpow.pop %v3468
        %v3470 = vadd.f32 %v3469, 1.0
        %v3471 = vrcp.pop %v3470
        %v3472 = vmul.f32 1.0, %v3471
        %v3473 = vmul.f32 %v3472, 2.0
        %v3474 = vsub.f32 %v3473, 1.0
        %v3475 = vmul.f32 %v3472, %v3262
        %3477 = vrot.lane.b32.xlu0 %v3474, 64
        %v3478 = vpop.permute.xlu0 %3477
        %v3480 = vmul.f32 %v3472, %v3478
        %3482 = vrot.lane.b32.xlu0 %v3480, 32
        %v3483 = vpop.permute.xlu0 %3482
        %v3485 = vadd.f32 %v3475, %v3483
        %v3486 = vtanh.pop %v3485
        %3488 = vrot.lane.b32.xlu0 %v3486, 64
        %v3489 = vpop.permute.xlu0 %3488
        %v3491 = vmul.f32 %v3472, %v3489
        %v3492 = vadd.f32 %v3407, %v2149
        %v3493 = vxor.u32 %v3492, 2147483648
        %v3494 = vmul.f32 %v3493, 1.442695
        %v3495 = vpow.pop %v3494
        %v3496 = vadd.f32 %v3495, 1.0
        %v3497 = vrcp.pop %v3496
        %v3498 = vmul.f32 1.0, %v3497
        %v3499 = vmul.f32 %v3498, 2.0
        %v3500 = vsub.f32 %v3499, 1.0
        %v3501 = vmul.f32 %v3498, %v3288
        %3503 = vrot.lane.b32.xlu0 %v3500, 64
        %v3504 = vpop.permute.xlu0 %3503
        %v3506 = vmul.f32 %v3498, %v3504
        %3508 = vrot.lane.b32.xlu0 %v3506, 32
        %v3509 = vpop.permute.xlu0 %3508
        %v3511 = vadd.f32 %v3501, %v3509
        %v3512 = vtanh.pop %v3511
        %3514 = vrot.lane.b32.xlu0 %v3512, 64
        %v3515 = vpop.permute.xlu0 %3514
        %v3517 = vmul.f32 %v3498, %v3515
        %3519 = vrot.lane.b32.xlu0 %v3438, 32
        %v3520 = vpop.permute.xlu0 %3519
        %s3522 = scalar_lea.vmem [#allocation4], 7
        %3523 = vst.msk [vmem:[%s3522] sm:$0x1] %vm1882, %v3520
        %3525 = vrot.lane.b32.xlu0 %v3465, 32
        %v3526 = vpop.permute.xlu0 %3525
        %3528 = vst.msk [vmem:[#allocation5] sm:$0x1] %vm1882, %v3526
        %3530 = vrot.lane.b32.xlu0 %v3491, 32
        %v3531 = vpop.permute.xlu0 %3530
        %s3533 = scalar_lea.vmem [#allocation6], 6
        %3534 = vst.msk [vmem:[%s3533] sm:$0x1] %vm1882, %v3531
        %3536 = vrot.lane.b32.xlu0 %v3517, 32
        %v3537 = vpop.permute.xlu0 %3536
        %s3539 = scalar_lea.vmem [#allocation7], 1
        %3540 = vst.msk [vmem:[%s3539] sm:$0x1] %vm1882, %v3537
        %3541 = vrot.lane.b32.xlu0 %v3465, 64
        %v3542 = vpop.permute.xlu0 %3541
        %3544 = vrot.lane.b32.xlu0 %v3491, 96
        %v3545 = vpop.permute.xlu0 %3544
        %v3547 = vsel %vm1132, %v3520, %v3542
        %v3548 = vsel %vm833, %v3547, %v3545
        %v3549 = vsel %vm1898, %v3548, %v3517
        %v3550 = vpack.c.bf16 %v3549, %v3549
        %3551 = vmatprep.subr.bf16.mxu0 %v1950
        %3552 = vmatpush1.bf16.msra.mxu0 %v1949
        %3553 = vmatprep.subr.bf16.mxu0 %v1952
        %3554 = vmatpush1.bf16.msra.mxu0 %v1951
        %3555 = vmatprep.subr.bf16.mxu0 %v1954
        %3556 = vmatpush1.bf16.msra.mxu0 %v1953
        %3557 = vmatprep.subr.bf16.mxu0 %v1956
        %3558 = vmatpush1.bf16.msra.mxu0 %v1955
        %3559 = vmatprep.subr.bf16.mxu0 %v1958
        %3560 = vmatpush1.bf16.msra.mxu0 %v1957
        %3561 = vmatprep.subr.bf16.mxu0 %v1960
        %3562 = vmatpush1.bf16.msra.mxu0 %v1959
        %3563 = vmatprep.subr.bf16.mxu0 %v1962
        %3564 = vmatpush1.bf16.msra.mxu0 %v1961
        %3565 = vmatprep.subr.bf16.mxu0 %v1964
        %3566 = vmatpush1.bf16.msra.mxu0 %v1963
        %3567 = vmatprep.subr.bf16.mxu0 0
        %3568 = vmatpush1.bf16.msra.mxu0 0
        %3569 = vmatprep.subr.bf16.mxu0 0
        %3570 = vmatpush1.bf16.msra.mxu0 0
        %3571 = vmatprep.subr.bf16.mxu0 0
        %3572 = vmatpush1.bf16.msra.mxu0 0
        %3573 = vmatprep.subr.bf16.mxu0 0
        %3574 = vmatpush1.bf16.msra.mxu0 0
        %3575 = vmatprep.subr.bf16.mxu0 0
        %3576 = vmatpush1.bf16.msra.mxu0 0
        %3577 = vmatprep.subr.bf16.mxu0 0
        %3578 = vmatpush1.bf16.msra.mxu0 0
        %3579 = vmatprep.subr.bf16.mxu0 0
        %3580 = vmatpush1.bf16.msra.mxu0 0
        %3581 = vmatprep.subr.bf16.mxu0 0
        %3582 = vmatpush1.bf16.msra.mxu0 0
        %3583 = vmatprep.mubr.bf16.mxu0 0
        %3584 = vmatmul.mubr.bf16.gmra.mrb[0].mxu0 %v3550
        %v3585 = vpop.f32.mrb[0].mxu0
        %v3586 = vadd.f32 0.0, %v3585
        %v3587 = vpop.f32.mrb[0].mxu0
        %v3588 = vadd.f32 0.0, %v3587
        %v3589 = vpop.f32.mrb[0].mxu0
        %v3590 = vpop.f32.mrb[0].mxu0
        %3591 = vdwg.mxu0
        %v3592 = vadd.f32 %v3586, %v1700
        %v3593 = vxor.u32 %v3592, 2147483648
        %v3594 = vmul.f32 %v3593, 1.442695
        %v3595 = vpow.pop %v3594
        %v3596 = vadd.f32 %v3595, 1.0
        %v3597 = vrcp.pop %v3596
        %v3598 = vmul.f32 1.0, %v3597
        %v3599 = vmul.f32 %v3598, 2.0
        %v3600 = vsub.f32 %v3599, 1.0
        %v3601 = vmul.f32 %v3598, %v3485
        %3603 = vrot.lane.b32.xlu0 %v3600, 64
        %v3604 = vpop.permute.xlu0 %3603
        %v3606 = vmul.f32 %v3598, %v3604
        %3608 = vrot.lane.b32.xlu0 %v3606, 32
        %v3609 = vpop.permute.xlu0 %3608
        %v3611 = vadd.f32 %v3601, %v3609
        %v3612 = vtanh.pop %v3611
        %3614 = vrot.lane.b32.xlu0 %v3612, 64
        %v3615 = vpop.permute.xlu0 %3614
        %v3617 = vmul.f32 %v3598, %v3615
        %v3618 = vadd.f32 %v3588, %v2149
        %v3619 = vxor.u32 %v3618, 2147483648
        %v3620 = vmul.f32 %v3619, 1.442695
        %v3621 = vpow.pop %v3620
        %v3622 = vadd.f32 %v3621, 1.0
        %v3623 = vrcp.pop %v3622
        %v3624 = vmul.f32 1.0, %v3623
        %v3625 = vmul.f32 %v3624, 2.0
        %v3626 = vsub.f32 %v3625, 1.0
        %v3627 = vmul.f32 %v3624, %v3511
        %3629 = vrot.lane.b32.xlu0 %v3626, 64
        %v3630 = vpop.permute.xlu0 %3629
        %v3632 = vmul.f32 %v3624, %v3630
        %3634 = vrot.lane.b32.xlu0 %v3632, 32
        %v3635 = vpop.permute.xlu0 %3634
        %v3637 = vadd.f32 %v3627, %v3635
        %v3638 = vtanh.pop %v3637
        %3640 = vrot.lane.b32.xlu0 %v3638, 64
        %v3641 = vpop.permute.xlu0 %3640
        %v3643 = vmul.f32 %v3624, %v3641
        %3644 = vst.msk [vmem:[%s3522] sm:$0x1] %vm1882, %v3520
        %3645 = vst.msk [vmem:[#allocation5] sm:$0x1] %vm1882, %v3526
        %3647 = vrot.lane.b32.xlu0 %v3617, 32
        %v3648 = vpop.permute.xlu0 %3647
        %s3650 = scalar_lea.vmem [#allocation6], 7
        %3651 = vst.msk [vmem:[%s3650] sm:$0x1] %vm1882, %v3648
        %3653 = vrot.lane.b32.xlu0 %v3643, 32
        %v3654 = vpop.permute.xlu0 %3653
        %3656 = vst.msk [vmem:[#allocation7] sm:$0x1] %vm1882, %v3654
        %s3657 = sld [smem:[#allocation12]]
        %s3658 = sld [smem:[#allocation12 + $0x1]]
        %s3659 = sld [smem:[#allocation12 + $0x2]]
        %v3660 = vlaneseq
        %v3661 = vshrl.u32 %v3660, 7
        %v3662 = vsub.s32 0, %v3661
        %v3663 = vrot.slane %v1437, %v3662
        %v3664 = vlaneseq
        %v3665 = vshrl.u32 %v3664, 7
        %v3666 = vsub.s32 0, %v3665
        %v3667 = vrot.slane %v1451, %v3666
        %v3668 = vlaneseq
        %v3669 = vshrl.u32 %v3668, 7
        %v3670 = vsub.s32 0, %v3669
        %v3671 = vrot.slane %v1459, %v3670
        %v3672 = vlaneseq
        %v3673 = vshrl.u32 %v3672, 7
        %v3674 = vsub.s32 0, %v3673
        %v3675 = vrot.slane %v1461, %v3674
        %v3676 = vlaneseq
        %v3677 = vshrl.u32 %v3676, 7
        %v3678 = vsub.s32 0, %v3677
        %v3679 = vrot.slane %v1444, %v3678
        %v3680 = vlaneseq
        %v3681 = vshrl.u32 %v3680, 7
        %v3682 = vsub.s32 0, %v3681
        %v3683 = vrot.slane %v1458, %v3682
        %v3684 = vlaneseq
        %v3685 = vshrl.u32 %v3684, 7
        %v3686 = vsub.s32 0, %v3685
        %v3687 = vrot.slane %v1460, %v3686
        %v3688 = vlaneseq
        %v3689 = vshrl.u32 %v3688, 7
        %v3690 = vsub.s32 0, %v3689
        %v3691 = vrot.slane %v1462, %v3690
        %3692 = vrot.lane.b32.xlu0 %v3663, 32
        %v3693 = vpop.permute.xlu0 %3692
        %3694 = vrot.lane.b32.xlu0 %v3667, 32
        %v3695 = vpop.permute.xlu0 %3694
        %3696 = vrot.lane.b32.xlu0 %v3671, 32
        %v3697 = vpop.permute.xlu0 %3696
        %3698 = vrot.lane.b32.xlu0 %v3675, 32
        %v3699 = vpop.permute.xlu0 %3698
        %3700 = vrot.lane.b32.xlu0 %v3679, 32
        %v3701 = vpop.permute.xlu0 %3700
        %3702 = vrot.lane.b32.xlu0 %v3683, 32
        %v3703 = vpop.permute.xlu0 %3702
        %3704 = vrot.lane.b32.xlu0 %v3687, 32
        %v3705 = vpop.permute.xlu0 %3704
        %3706 = vrot.lane.b32.xlu0 %v3691, 32
        %v3707 = vpop.permute.xlu0 %3706
        %v3716 = vsel %vm1132, %v1437, %v3693
        %v3717 = vsel %vm1132, %v1451, %v3695
        %v3718 = vsel %vm1132, %v1459, %v3697
        %v3719 = vsel %vm1132, %v1461, %v3699
        %v3720 = vsel %vm1132, %v1444, %v3701
        %v3721 = vsel %vm1132, %v1458, %v3703
        %v3722 = vsel %vm1132, %v1460, %v3705
        %v3723 = vsel %vm1132, %v1462, %v3707
        %v3724 = vld [vmem:[#allocation4] sm:$0x1]
        %v3725 = vld [vmem:[#allocation4 + $0x1] sm:$0x1]
        %v3726 = vld [vmem:[#allocation4 + $0x2] sm:$0x1]
        %v3727 = vld [vmem:[#allocation4 + $0x3] sm:$0x1]
        %v3728 = vld [vmem:[#allocation4 + $0x4] sm:$0x1]
        %v3729 = vld [vmem:[#allocation4 + $0x5] sm:$0x1]
        %v3730 = vld [vmem:[#allocation4 + $0x6] sm:$0x1]
        %v3731 = vld [vmem:[#allocation4 + $0x7] sm:$0x1]
        %v3732 = vld [vmem:[#allocation5] sm:$0x1]
        %v3733 = vld [vmem:[#allocation5 + $0x1] sm:$0x1]
        %v3734 = vld [vmem:[#allocation5 + $0x2] sm:$0x1]
        %v3735 = vld [vmem:[#allocation5 + $0x3] sm:$0x1]
        %v3736 = vld [vmem:[#allocation5 + $0x4] sm:$0x1]
        %v3737 = vld [vmem:[#allocation5 + $0x5] sm:$0x1]
        %v3738 = vld [vmem:[#allocation5 + $0x6] sm:$0x1]
        %v3739 = vld [vmem:[#allocation5 + $0x7] sm:$0x1]
        %v3748 = vlaneseq
        %v3749 = vshrl.u32 %v3748, 7
        %v3750 = vsub.s32 0, %v3749
        %v3751 = vrot.slane %v3732, %v3750
        %v3752 = vlaneseq
        %v3753 = vshrl.u32 %v3752, 7
        %v3754 = vsub.s32 0, %v3753
        %v3755 = vrot.slane %v3733, %v3754
        %v3756 = vlaneseq
        %v3757 = vshrl.u32 %v3756, 7
        %v3758 = vsub.s32 0, %v3757
        %v3759 = vrot.slane %v3734, %v3758
        %v3760 = vlaneseq
        %v3761 = vshrl.u32 %v3760, 7
        %v3762 = vsub.s32 0, %v3761
        %v3763 = vrot.slane %v3735, %v3762
        %v3764 = vlaneseq
        %v3765 = vshrl.u32 %v3764, 7
        %v3766 = vsub.s32 0, %v3765
        %v3767 = vrot.slane %v3736, %v3766
        %v3768 = vlaneseq
        %v3769 = vshrl.u32 %v3768, 7
        %v3770 = vsub.s32 0, %v3769
        %v3771 = vrot.slane %v3737, %v3770
        %v3772 = vlaneseq
        %v3773 = vshrl.u32 %v3772, 7
        %v3774 = vsub.s32 0, %v3773
        %v3775 = vrot.slane %v3738, %v3774
        %v3776 = vlaneseq
        %v3777 = vshrl.u32 %v3776, 7
        %v3778 = vsub.s32 0, %v3777
        %v3779 = vrot.slane %v3739, %v3778
        %3780 = vrot.lane.b32.xlu0 %v3751, 32
        %v3781 = vpop.permute.xlu0 %3780
        %3782 = vrot.lane.b32.xlu0 %v3755, 32
        %v3783 = vpop.permute.xlu0 %3782
        %3784 = vrot.lane.b32.xlu0 %v3759, 32
        %v3785 = vpop.permute.xlu0 %3784
        %3786 = vrot.lane.b32.xlu0 %v3763, 32
        %v3787 = vpop.permute.xlu0 %3786
        %3788 = vrot.lane.b32.xlu0 %v3767, 32
        %v3789 = vpop.permute.xlu0 %3788
        %3790 = vrot.lane.b32.xlu0 %v3771, 32
        %v3791 = vpop.permute.xlu0 %3790
        %3792 = vrot.lane.b32.xlu0 %v3775, 32
        %v3793 = vpop.permute.xlu0 %3792
        %3794 = vrot.lane.b32.xlu0 %v3779, 32
        %v3795 = vpop.permute.xlu0 %3794
        %v3804 = vsel %vm1132, %v3724, %v3781
        %v3805 = vsel %vm1132, %v3725, %v3783
        %v3806 = vsel %vm1132, %v3726, %v3785
        %v3807 = vsel %vm1132, %v3727, %v3787
        %v3808 = vsel %vm1132, %v3728, %v3789
        %v3809 = vsel %vm1132, %v3729, %v3791
        %v3810 = vsel %vm1132, %v3730, %v3793
        %v3811 = vsel %vm1132, %v3731, %v3795
        %v3812 = vld [vmem:[#allocation6] sm:$0x1]
        %v3813 = vld [vmem:[#allocation6 + $0x1] sm:$0x1]
        %v3814 = vld [vmem:[#allocation6 + $0x2] sm:$0x1]
        %v3815 = vld [vmem:[#allocation6 + $0x3] sm:$0x1]
        %v3816 = vld [vmem:[#allocation6 + $0x4] sm:$0x1]
        %v3817 = vld [vmem:[#allocation6 + $0x5] sm:$0x1]
        %v3818 = vld [vmem:[#allocation6 + $0x6] sm:$0x1]
        %v3819 = vld [vmem:[#allocation6 + $0x7] sm:$0x1]
        %v3820 = vld [vmem:[#allocation7] sm:$0x1]
        %v3821 = vld [vmem:[#allocation7 + $0x1] sm:$0x1]
        %v3822 = vld [vmem:[#allocation7 + $0x2] sm:$0x1]
        %v3823 = vld [vmem:[#allocation7 + $0x3] sm:$0x1]
        %v3824 = vld [vmem:[#allocation7 + $0x4] sm:$0x1]
        %v3825 = vld [vmem:[#allocation7 + $0x5] sm:$0x1]
        %v3826 = vld [vmem:[#allocation7 + $0x6] sm:$0x1]
        %v3827 = vld [vmem:[#allocation7 + $0x7] sm:$0x1]
        %v3836 = vlaneseq
        %v3837 = vshrl.u32 %v3836, 7
        %v3838 = vsub.s32 0, %v3837
        %v3839 = vrot.slane %v3820, %v3838
        %v3840 = vlaneseq
        %v3841 = vshrl.u32 %v3840, 7
        %v3842 = vsub.s32 0, %v3841
        %v3843 = vrot.slane %v3821, %v3842
        %v3844 = vlaneseq
        %v3845 = vshrl.u32 %v3844, 7
        %v3846 = vsub.s32 0, %v3845
        %v3847 = vrot.slane %v3822, %v3846
        %v3848 = vlaneseq
        %v3849 = vshrl.u32 %v3848, 7
        %v3850 = vsub.s32 0, %v3849
        %v3851 = vrot.slane %v3823, %v3850
        %v3852 = vlaneseq
        %v3853 = vshrl.u32 %v3852, 7
        %v3854 = vsub.s32 0, %v3853
        %v3855 = vrot.slane %v3824, %v3854
        %v3856 = vlaneseq
        %v3857 = vshrl.u32 %v3856, 7
        %v3858 = vsub.s32 0, %v3857
        %v3859 = vrot.slane %v3825, %v3858
        %v3860 = vlaneseq
        %v3861 = vshrl.u32 %v3860, 7
        %v3862 = vsub.s32 0, %v3861
        %v3863 = vrot.slane %v3826, %v3862
        %v3864 = vlaneseq
        %v3865 = vshrl.u32 %v3864, 7
        %v3866 = vsub.s32 0, %v3865
        %v3867 = vrot.slane %v3827, %v3866
        %3868 = vrot.lane.b32.xlu0 %v3839, 32
        %v3869 = vpop.permute.xlu0 %3868
        %3870 = vrot.lane.b32.xlu0 %v3843, 32
        %v3871 = vpop.permute.xlu0 %3870
        %3872 = vrot.lane.b32.xlu0 %v3847, 32
        %v3873 = vpop.permute.xlu0 %3872
        %3874 = vrot.lane.b32.xlu0 %v3851, 32
        %v3875 = vpop.permute.xlu0 %3874
        %3876 = vrot.lane.b32.xlu0 %v3855, 32
        %v3877 = vpop.permute.xlu0 %3876
        %3878 = vrot.lane.b32.xlu0 %v3859, 32
        %v3879 = vpop.permute.xlu0 %3878
        %3880 = vrot.lane.b32.xlu0 %v3863, 32
        %v3881 = vpop.permute.xlu0 %3880
        %3882 = vrot.lane.b32.xlu0 %v3867, 32
        %v3883 = vpop.permute.xlu0 %3882
        %v3892 = vsel %vm1132, %v3812, %v3869
        %v3893 = vsel %vm1132, %v3813, %v3871
        %v3894 = vsel %vm1132, %v3814, %v3873
        %v3895 = vsel %vm1132, %v3815, %v3875
        %v3896 = vsel %vm1132, %v3816, %v3877
        %v3897 = vsel %vm1132, %v3817, %v3879
        %v3898 = vsel %vm1132, %v3818, %v3881
        %v3899 = vsel %vm1132, %v3819, %v3883
        %v3900 = vstv %s3657
        %v3901 = vmul.f32 %v3900, %v3716
        %v3902 = vmul.f32 %v3900, %v3717
        %v3903 = vmul.f32 %v3900, %v3718
        %v3904 = vmul.f32 %v3900, %v3719
        %v3905 = vmul.f32 %v3900, %v3720
        %v3906 = vmul.f32 %v3900, %v3721
        %v3907 = vmul.f32 %v3900, %v3722
        %v3908 = vmul.f32 %v3900, %v3723
        %v3909 = vstv %s3658
        %v3910 = vmul.f32 %v3909, %v3804
        %v3911 = vmul.f32 %v3909, %v3805
        %v3912 = vmul.f32 %v3909, %v3806
        %v3913 = vmul.f32 %v3909, %v3807
        %v3914 = vmul.f32 %v3909, %v3808
        %v3915 = vmul.f32 %v3909, %v3809
        %v3916 = vmul.f32 %v3909, %v3810
        %v3917 = vmul.f32 %v3909, %v3811
        %v3918 = vadd.f32 %v3901, %v3910
        %v3919 = vadd.f32 %v3902, %v3911
        %v3920 = vadd.f32 %v3903, %v3912
        %v3921 = vadd.f32 %v3904, %v3913
        %v3922 = vadd.f32 %v3905, %v3914
        %v3923 = vadd.f32 %v3906, %v3915
        %v3924 = vadd.f32 %v3907, %v3916
        %v3925 = vadd.f32 %v3908, %v3917
        %v3926 = vstv %s3659
        %v3927 = vmul.f32 %v3926, %v3892
        %v3928 = vmul.f32 %v3926, %v3893
        %v3929 = vmul.f32 %v3926, %v3894
        %v3930 = vmul.f32 %v3926, %v3895
        %v3931 = vmul.f32 %v3926, %v3896
        %v3932 = vmul.f32 %v3926, %v3897
        %v3933 = vmul.f32 %v3926, %v3898
        %v3934 = vmul.f32 %v3926, %v3899
        %v3935 = vadd.f32 %v3918, %v3927
        %v3936 = vadd.f32 %v3919, %v3928
        %v3937 = vadd.f32 %v3920, %v3929
        %v3938 = vadd.f32 %v3921, %v3930
        %v3939 = vadd.f32 %v3922, %v3931
        %v3940 = vadd.f32 %v3923, %v3932
        %v3941 = vadd.f32 %v3924, %v3933
        %v3942 = vadd.f32 %v3925, %v3934
        %v3951 = vrot.slane %v3936, 7
        %v3952 = vsel %vm1240, %v3951, %v3935
        %v3953 = vrot.slane %v3937, 6
        %v3954 = vsel %vm1242, %v3953, %v3952
        %v3955 = vrot.slane %v3938, 5
        %v3956 = vsel %vm1244, %v3955, %v3954
        %v3957 = vrot.slane %v3939, 4
        %v3958 = vsel %vm1246, %v3957, %v3956
        %v3959 = vrot.slane %v3940, 3
        %v3960 = vsel %vm1248, %v3959, %v3958
        %v3961 = vrot.slane %v3941, 2
        %v3962 = vsel %vm1250, %v3961, %v3960
        %v3963 = vrot.slane %v3942, 1
        %v3964 = vsel %vm1252, %v3963, %v3962
        %3966 = vst.msk [vmem:[%s460] sm:$0xff] %vm833, %v3964
        %s3967 = sand.u32 %s315, 1
        %s3968 = scalar_lea.sflag [#allocation10], %s3967
        %s3969 = sand.u32 %s315, 1
        %s3970 = smul.addr %s3969, 8
        %s3971 = scalar_lea.vmem [#allocation13], %s3970
        // Predicated region
        $region81: #{elmo_forward.1} parent=71 // pred_check
          %p3972 = pneg %p325
        $region82: #{elmo_forward.1} parent=71 // pred_check_branch
          %3974 = sbr.rel (%p3972) target = $region84
        $region83: #{elmo_forward.1} parent=71 // pred_region
          %s3976 = ssub.s32 128, 128
          %3977 = vsyncadd %s3968, %s3976
          %s3978 = smul.addr %s29, 128
          %s3979 = scalar_lea.hbm %s13, %s3978
          %s3981 = sshll.u32 %s3971, 4
          %s3982 = int_to_ptr.vmem [resolvable:$true] %s3981
          %3984 = dma.vmem_to_hbm [thread:$0]  %s3982, 128, %s3979, %s3968
        $region84: #{elmo_forward.1} parent=71 // pred_fallthru
          _
      $region72: #{elmo_forward.1} parent=5 // pred_fallthru
        _
      %p3985 = scmp.le.s32.totalorder 2, %s24
      // Predicated region
      $region85: #{elmo_forward.1} parent=5 // pred_check
        %p3986 = pneg %p3985
      $region86: #{elmo_forward.1} parent=5 // pred_check_branch
        %3988 = sbr.rel (%p3986) target = $region88
      $region87: #{elmo_forward.1} parent=5 // pred_region
        %s3989 = ssub.s32 %s24, 2
        // Predicated region
        $region89: #{elmo_forward.1} parent=87 // pred_check
          %p3990 = pneg %p331
        $region90: #{elmo_forward.1} parent=87 // pred_check_branch
          %3992 = sbr.rel (%p3990) target = $region92
        $region91: #{elmo_forward.1} parent=87 // pred_region
          %s3993 = sand.u32 %s316, 1
          %s3994 = scalar_lea.sflag [#allocation10], %s3993
          %s3995 = sand.u32 %s316, 1
          %s3996 = smul.addr %s3995, 8
          %s3997 = scalar_lea.vmem [#allocation13], %s3996
          %3998 = dma.done %s3994, 128
        $region92: #{elmo_forward.1} parent=87 // pred_fallthru
          _
      $region88: #{elmo_forward.1} parent=5 // pred_fallthru
        _
    $region6: #{elmo_forward.1} parent=1 // loop_footer
      %s28 = sadd.s32 1, %s24
    $region7: #{elmo_forward.1} parent=1 // loop_footer_branch
      %23 = sbr.rel target = $region3
    $region8: #{elmo_forward.1} parent=1 // loop_exit
      _
    %3999 = vsyncpa [#allocation9], 1
    %s4000 = scalar_lea.sflag [#allocation9], 1
    %4001 = vsyncpa %s4000, 1
    %4002 = vsyncpa [#allocation10], 1
    %s4003 = scalar_lea.sflag [#allocation10], 1
    %4004 = vsyncpa %s4003, 1
    %4005 = vsyncpa [#allocation11], 1
    %s4006 = scalar_lea.sflag [#allocation11], 1
    %4007 = vsyncpa %s4006, 1

</llo_original>
